<compile_context>
chip_gen: v7x
topology: tpu7x:2x2x1
jax: 0.10.0
libtpu: 0.0.40
codegen_flags: <defaults>
</compile_context>

<pallas_src>
import functools

import jax
import jax.numpy as jnp
from jax import lax
from jax.experimental import pallas as pl
from jax.experimental.pallas import tpu as pltpu

EPS = 1e-5
LANE = 128


# ---------------------------------------------------------------------------
# Fused per-unit Pallas kernel
# ---------------------------------------------------------------------------
def _unit_kernel(*refs, Hin, Win, Ho, Wo, KH, KW, pad_t, pad_l, has_shortcut):
    if has_shortcut:
        (x_ref, s1_ref, b1_ref, w1_ref, s2_ref, b2_ref, w2_ref,
         wsc_ref, bsc_ref, o_ref, a1p_ref, a2p_ref) = refs
    else:
        (x_ref, s1_ref, b1_ref, w1_ref, s2_ref, b2_ref, w2_ref,
         o_ref, a1p_ref, a2p_ref) = refs
        wsc_ref = bsc_ref = None

    CK = x_ref.shape[-1]          # padded input-channel width seen by this unit
    CP = o_ref.shape[-1]          # padded output-channel width

    xb = x_ref[0]                 # (Hin, Win, CK)

    # --- BN1 + ReLU into a spatially zero-padded VMEM scratch ---------------
    a1p_ref[...] = jnp.zeros(a1p_ref.shape, jnp.float32)
    a1p_ref[pad_t:pad_t + Hin, pad_l:pad_l + Win, :] = jnp.maximum(
        xb * s1_ref[...] + b1_ref[...], 0.0)

    # --- conv1: implicit im2col (KH*KW shifted MXU matmuls, f32 accum) ------
    a1p = a1p_ref[...]
    h1 = jnp.zeros((Ho * Wo, CP), jnp.float32)
    for ky in range(KH):
        for kx in range(KW):
            patch = a1p[ky:ky + Ho, kx:kx + Wo, :].reshape(Ho * Wo, CK)
            h1 = h1 + jnp.dot(patch, w1_ref[ky * KW + kx],
                              preferred_element_type=jnp.float32)

    # --- BN2 + ReLU into a zero-padded scratch (pad = 1 for the 3x3 conv2) --
    a2p_ref[...] = jnp.zeros(a2p_ref.shape, jnp.float32)
    a2p_ref[1:1 + Ho, 1:1 + Wo, :] = jnp.maximum(
        h1 * s2_ref[...] + b2_ref[...], 0.0).reshape(Ho, Wo, CP)

    # --- residual path (BN_i analytically folded into the 1x1 conv) ---------
    if has_shortcut:
        out = jnp.dot(xb.reshape(Hin * Win, CK), wsc_ref[...],
                      preferred_element_type=jnp.float32) + bsc_ref[...]
    else:  # stride == 1 and Cin == Cout: identity shortcut
        out = xb.reshape(Hin * Win, CK)

    # --- conv2 (3x3, stride 1) accumulated on top of the residual -----------
    a2p = a2p_ref[...]
    for ky in range(3):
        for kx in range(3):
            patch = a2p[ky:ky + Ho, kx:kx + Wo, :].reshape(Ho * Wo, CP)
            out = out + jnp.dot(patch, w2_ref[ky * 3 + kx],
                                preferred_element_type=jnp.float32)

    o_ref[...] = out.reshape(1, Ho, Wo, CP).astype(o_ref.dtype)


def _unit_pallas(x, cfg, arrs):
    """Run one fused _PreActUnit.  x: (N, H, W, C) NHWC float32."""
    if cfg['s2d']:                      # stride-2 unit: space-to-depth rewrite
        N, H, W, C = x.shape
        x = x.reshape(N, H // 2, 2, W // 2, 2, C).transpose(0, 1, 3, 2, 4, 5)
        x = x.reshape(N, H // 2, W // 2, 4 * C)
    ck = cfg['CK']
    if x.shape[-1] != ck:               # pad channels up to a 128-lane multiple
        x = jnp.pad(x, ((0, 0), (0, 0), (0, 0), (0, ck - x.shape[-1])))

    N = x.shape[0]
    Hin, Win, Ho, Wo = cfg['Hin'], cfg['Win'], cfg['Ho'], cfg['Wo']
    KH, KW, CP = cfg['KH'], cfg['KW'], cfg['CP']
    Hp = Hin + cfg['pad_t'] + cfg['pad_b']
    Wp = Win + cfg['pad_l'] + cfg['pad_r']

    inputs = [x, arrs['s1'], arrs['b1'], arrs['w1'],
              arrs['s2'], arrs['b2'], arrs['w2']]
    in_specs = [
        pl.BlockSpec((1, Hin, Win, ck), lambda n: (n, 0, 0, 0)),
        pl.BlockSpec((1, ck), lambda n: (0, 0)),
        pl.BlockSpec((1, ck), lambda n: (0, 0)),
        pl.BlockSpec((KH * KW, ck, CP), lambda n: (0, 0, 0)),
        pl.BlockSpec((1, CP), lambda n: (0, 0)),
        pl.BlockSpec((1, CP), lambda n: (0, 0)),
        pl.BlockSpec((9, CP, CP), lambda n: (0, 0, 0)),
    ]
    if cfg['has_shortcut']:
        inputs += [arrs['wsc'], arrs['bsc']]
        in_specs += [pl.BlockSpec((ck, CP), lambda n: (0, 0)),
                     pl.BlockSpec((1, CP), lambda n: (0, 0))]

    kernel = functools.partial(
        _unit_kernel, Hin=Hin, Win=Win, Ho=Ho, Wo=Wo, KH=KH, KW=KW,
        pad_t=cfg['pad_t'], pad_l=cfg['pad_l'],
        has_shortcut=cfg['has_shortcut'])

    return pl.pallas_call(
        kernel,
        out_shape=jax.ShapeDtypeStruct((N, Ho, Wo, CP), jnp.float32),
        grid=(N,),
        in_specs=in_specs,
        out_specs=pl.BlockSpec((1, Ho, Wo, CP), lambda n: (n, 0, 0, 0)),
        scratch_shapes=[pltpu.VMEM((Hp, Wp, ck), jnp.float32),        # padded a1
                        pltpu.VMEM((Ho + 2, Wo + 2, CP), jnp.float32)],  # padded a2
        compiler_params=pltpu.CompilerParams(
            dimension_semantics=("parallel",)),
    )(*inputs)


# ---------------------------------------------------------------------------
# One-time parameter preprocessing (BN folding, lane padding, s2d regrouping)
# ---------------------------------------------------------------------------
def _round_up(v, m):
    return (v + m - 1) // m * m


def _bn_fold(gamma, beta, mean, var):
    scale = gamma / jnp.sqrt(var + EPS)
    return scale, beta - mean * scale


def prepare_unit_params(p, H, W, cin):
    stride = p['stride']
    cout = p['conv1_w'].shape[-1]
    CP = _round_up(cout, LANE)
    s1, h1 = _bn_fold(p['bn1_gamma'], p['bn1_beta'], p['bn1_mean'], p['bn1_var'])
    s2, h2 = _bn_fold(p['bn2_gamma'], p['bn2_beta'], p['bn2_mean'], p['bn2_var'])
    assert stride in (1, 2)

    if stride == 2:
        assert H % 2 == 0 and W % 2 == 0
        Hin = Ho = H // 2
        Win = Wo = W // 2
        cin_eff = 4 * cin
        CK = _round_up(cin_eff, LANE)
        KH = KW = 2
        pad_t = pad_l = 1
        pad_b = pad_r = 0
        # BN1 is pointwise -> tiled over the 4 space-to-depth parity groups.
        s1e = jnp.zeros((CK,), jnp.float32).at[:cin_eff].set(jnp.tile(s1, 4))
        h1e = jnp.zeros((CK,), jnp.float32).at[:cin_eff].set(jnp.tile(h1, 4))
        # 3x3/stride-2 conv == 2x2/stride-1 conv on the s2d input with
        # regrouped weights: W'[by,bx,(py*2+px)*cin+c,o] = W[2by+py-1, 2bx+px-1, c, o]
        w1e = jnp.zeros((4, CK, CP), jnp.float32)
        w = p['conv1_w']
        for by in range(2):
            for bx in range(2):
                for py in range(2):
                    for px in range(2):
                        ky, kx = 2 * by + py - 1, 2 * bx + px - 1
                        if 0 <= ky < 3 and 0 <= kx < 3:
                            g = (py * 2 + px) * cin
                            w1e = w1e.at[by * 2 + bx, g:g + cin, :cout].set(w[ky, kx])
        s2d = True
    else:
        Hin = Ho = H
        Win = Wo = W
        CK = _round_up(cin, LANE)
        KH = KW = 3
        pad_t = pad_l = pad_b = pad_r = 1
        s1e = jnp.zeros((CK,), jnp.float32).at[:cin].set(s1)
        h1e = jnp.zeros((CK,), jnp.float32).at[:cin].set(h1)
        w1e = jnp.zeros((9, CK, CP), jnp.float32).at[:, :cin, :cout].set(
            p['conv1_w'].reshape(9, cin, cout))
        s2d = False

    s2e = jnp.zeros((CP,), jnp.float32).at[:cout].set(s2)
    h2e = jnp.zeros((CP,), jnp.float32).at[:cout].set(h2)
    w2e = jnp.zeros((9, CP, CP), jnp.float32).at[:, :cout, :cout].set(
        p['conv2_w'].reshape(9, cout, cout))

    arrs = {'s1': s1e.reshape(1, CK), 'b1': h1e.reshape(1, CK), 'w1': w1e,
            's2': s2e.reshape(1, CP), 'b2': h2e.reshape(1, CP), 'w2': w2e}

    if p['has_shortcut']:
        si, hi = _bn_fold(p['bni_gamma'], p['bni_beta'], p['bni_mean'], p['bni_var'])
        wsc = p['convi_w'] * si[:, None]     # fold BN_i scale into the 1x1 weight
        bsc = hi @ p['convi_w']              # fold BN_i shift into a bias
        # stride==2: the 1x1/stride-2 conv reads the parity-(0,0) group, i.e.
        # the first `cin` channels of the space-to-depth input.
        arrs['wsc'] = jnp.zeros((CK, CP), jnp.float32).at[:cin, :cout].set(wsc)
        arrs['bsc'] = jnp.zeros((1, CP), jnp.float32).at[0, :cout].set(bsc)
    else:
        assert CK == CP  # identity residual needs matching padded widths

    cfg = dict(Hin=Hin, Win=Win, Ho=Ho, Wo=Wo, KH=KH, KW=KW,
               pad_t=pad_t, pad_b=pad_b, pad_l=pad_l, pad_r=pad_r,
               CK=CK, CP=CP, s2d=s2d, has_shortcut=p['has_shortcut'])
    return cfg, arrs, (Ho, Wo, cout)


def prepare_block_params(params, H, W, cin):
    prepped = []
    for p in params:
        cfg, arrs, (H, W, cin) = prepare_unit_params(p, H, W, cin)
        prepped.append((cfg, arrs))
    return prepped, cin


# ---------------------------------------------------------------------------
# Block forward (NCHW in / NCHW out, matching PyTorch)
# ---------------------------------------------------------------------------
def preact_block_forward(x_nchw, prepped, cout_real):
    x = jnp.transpose(x_nchw, (0, 2, 3, 1)).astype(jnp.float32)   # NCHW -> NHWC
    for cfg, arrs in prepped:
        x = _unit_pallas(x, cfg, arrs)       # (N, Ho, Wo, 128-padded channels)
    x = x[..., :cout_real]
    return jnp.transpose(x, (0, 3, 1, 2))                         # back to NCHW


# ---------------------------------------------------------------------------
# Deterministic parameter init (mirrors the PyTorch module's shapes)
# ---------------------------------------------------------------------------
def init_unit_params(key, cin, cout, stride):
    ks = jax.random.split(key, 16)
    p = {'stride': stride,
         'has_shortcut': (stride != 1 or cin != cout)}
    p['bn1_gamma'] = 1.0 + 0.1 * jax.random.normal(ks[0], (cin,), jnp.float32)
    p['bn1_beta'] = 0.1 * jax.random.normal(ks[1], (cin,), jnp.float32)
    p['bn1_mean'] = 0.1 * jax.random.normal(ks[2], (cin,), jnp.float32)
    p['bn1_var'] = jax.random.uniform(ks[3], (cin,), jnp.float32, 0.5, 1.5)
    p['conv1_w'] = 0.1 * jax.random.normal(ks[4], (3, 3, cin, cout), jnp.float32)  # HWIO
    p['bn2_gamma'] = 1.0 + 0.1 * jax.random.normal(ks[5], (cout,), jnp.float32)
    p['bn2_beta'] = 0.1 * jax.random.normal(ks[6], (cout,), jnp.float32)
    p['bn2_mean'] = 0.1 * jax.random.normal(ks[7], (cout,), jnp.float32)
    p['bn2_var'] = jax.random.uniform(ks[8], (cout,), jnp.float32, 0.5, 1.5)
    p['conv2_w'] = 0.1 * jax.random.normal(ks[9], (3, 3, cout, cout), jnp.float32)
    if p['has_shortcut']:
        p['bni_gamma'] = 1.0 + 0.1 * jax.random.normal(ks[10], (cin,), jnp.float32)
        p['bni_beta'] = 0.1 * jax.random.normal(ks[11], (cin,), jnp.float32)
        p['bni_mean'] = 0.1 * jax.random.normal(ks[12], (cin,), jnp.float32)
        p['bni_var'] = jax.random.uniform(ks[13], (cin,), jnp.float32, 0.5, 1.5)
        p['convi_w'] = 0.1 * jax.random.normal(ks[14], (cin, cout), jnp.float32)   # 1x1
    return p


def init_block_params(key, input_channel, output_channel, expansion, block_depth,
                      down_sample):
    assert expansion == 1, "only the expansion==1 (basic block) path is implemented"
    params = []
    cin = input_channel
    for i in range(block_depth):
        key, sub = jax.random.split(key)
        stride = int(1 + down_sample) if i == 0 else 1
        params.append(init_unit_params(sub, cin, output_channel, stride))
        cin = output_channel * expansion
    return params


# ---------------------------------------------------------------------------
# Pure-JAX reference (correctness check for the Pallas path)
# ---------------------------------------------------------------------------
def _ref_bn(x, g, b, m, v):
    return (x - m) / jnp.sqrt(v + EPS) * g + b


def _ref_conv(x, w_hwio, stride, pad):
    return lax.conv_general_dilated(
        x, w_hwio, (stride, stride), [(pad, pad), (pad, pad)],
        dimension_numbers=('NHWC', 'HWIO', 'NHWC'))


def ref_block_forward(x_nchw, params):
    x = jnp.transpose(x_nchw, (0, 2, 3, 1)).astype(jnp.float32)
    for p in params:
        s = p['stride']
        a = jnp.maximum(_ref_bn(x, p['bn1_gamma'], p['bn1_beta'],
                                p['bn1_mean'], p['bn1_var']), 0.)
        h = _ref_conv(a, p['conv1_w'], s, 1)
        a2 = jnp.maximum(_ref_bn(h, p['bn2_gamma'], p['bn2_beta'],
                                 p['bn2_mean'], p['bn2_var']), 0.)
        f = _ref_conv(a2, p['conv2_w'], 1, 1)
        if p['has_shortcut']:
            xb = _ref_bn(x, p['bni_gamma'], p['bni_beta'], p['bni_mean'], p['bni_var'])
            sc = _ref_conv(xb, p['convi_w'][None, None], s, 0)
        else:
            sc = x
        x = f + sc
    return jnp.transpose(x, (0, 3, 1, 2))


# ---------------------------------------------------------------------------
if __name__ == "__main__":
    key = jax.random.PRNGKey(0)
    k_x, k_p = jax.random.split(key)

    # _PreActBlock(input_channel=4, output_channel=8, expansion=1,
    #              block_depth=2, down_sample=True, drop_rate=0.0)
    N, C, H, W = 2, 4, 16, 16
    x = jax.random.normal(k_x, (N, C, H, W), jnp.float32)
    params = init_block_params(k_p, input_channel=4, output_channel=8,
                               expansion=1, block_depth=2, down_sample=True)

    prepped, cout_real = prepare_block_params(params, H, W, cin=C)

    out = jax.block_until_ready(preact_block_forward(x, prepped, cout_real))
    ref = jax.block_until_ready(ref_block_forward(x, params))

    assert out.shape == (N, 8, H // 2, W // 2), out.shape
    max_err = float(jnp.max(jnp.abs(out - ref)))
    assert jnp.allclose(out, ref, atol=2e-4, rtol=2e-4), max_err

    print("KERNEL_OK")
</pallas_src>

<mosaic_0001>
module attributes {stable_mosaic.version = 11 : i64} {
  func.func @_unit_kernel(%arg0: i32, %arg1: memref<1x8x8x128xf32, #tpu.memory_space<vmem>>, %arg2: memref<1x128xf32, #tpu.memory_space<vmem>>, %arg3: memref<1x128xf32, #tpu.memory_space<vmem>>, %arg4: memref<4x128x128xf32, #tpu.memory_space<vmem>>, %arg5: memref<1x128xf32, #tpu.memory_space<vmem>>, %arg6: memref<1x128xf32, #tpu.memory_space<vmem>>, %arg7: memref<9x128x128xf32, #tpu.memory_space<vmem>>, %arg8: memref<128x128xf32, #tpu.memory_space<vmem>>, %arg9: memref<1x128xf32, #tpu.memory_space<vmem>>, %arg10: memref<1x8x8x128xf32, #tpu.memory_space<vmem>>, %arg11: memref<9x9x128xf32, #tpu.memory_space<vmem>>, %arg12: memref<10x10x128xf32, #tpu.memory_space<vmem>>) attributes {dimension_semantics = [#tpu.dimension_semantics<parallel>], iteration_bounds = array<i64: 2>, scalar_prefetch = 0 : i64, scratch_operands = 2 : i64, tpu.core_type = #tpu.core_type<tc>, window_params = [{transform_indices = @transform_0, window_bounds = array<i64: 1, 8, 8, 128>}, {pipeline_mode = #tpu.pipeline_mode<synchronous>, transform_indices = @transform_1, window_bounds = array<i64: 1, 128>}, {pipeline_mode = #tpu.pipeline_mode<synchronous>, transform_indices = @transform_2, window_bounds = array<i64: 1, 128>}, {pipeline_mode = #tpu.pipeline_mode<synchronous>, transform_indices = @transform_3, window_bounds = array<i64: 4, 128, 128>}, {pipeline_mode = #tpu.pipeline_mode<synchronous>, transform_indices = @transform_4, window_bounds = array<i64: 1, 128>}, {pipeline_mode = #tpu.pipeline_mode<synchronous>, transform_indices = @transform_5, window_bounds = array<i64: 1, 128>}, {pipeline_mode = #tpu.pipeline_mode<synchronous>, transform_indices = @transform_6, window_bounds = array<i64: 9, 128, 128>}, {pipeline_mode = #tpu.pipeline_mode<synchronous>, transform_indices = @transform_7, window_bounds = array<i64: 128, 128>}, {pipeline_mode = #tpu.pipeline_mode<synchronous>, transform_indices = @transform_8, window_bounds = array<i64: 1, 128>}, {transform_indices = @transform_9, window_bounds = array<i64: 1, 8, 8, 128>}]} {
    %c0 = arith.constant 0 : index
    %c0_0 = arith.constant 0 : index
    %c0_1 = arith.constant 0 : index
    %c0_2 = arith.constant 0 : index
    %0 = vector.load %arg1[%c0, %c0_0, %c0_1, %c0_2] : memref<1x8x8x128xf32, #tpu.memory_space<vmem>>, vector<1x8x8x128xf32>
    %1 = vector.shape_cast %0 : vector<1x8x8x128xf32> to vector<8x8x128xf32>
    %cst = arith.constant 0.000000e+00 : f32
    %2 = vector.broadcast %cst : f32 to vector<9x9x128xf32>
    %c0_3 = arith.constant 0 : index
    %c0_4 = arith.constant 0 : index
    %c0_5 = arith.constant 0 : index
    %3 = vector.load %arg11[%c0_3, %c0_4, %c0_5] : memref<9x9x128xf32, #tpu.memory_space<vmem>>, vector<9x9x128xf32>
    tpu.vector_store %arg11[%c0_3, %c0_4, %c0_5], %2 {strides = array<i32>} : memref<9x9x128xf32, #tpu.memory_space<vmem>>, vector<9x9x128xf32>,
    %c0_6 = arith.constant 0 : index
    %c0_7 = arith.constant 0 : index
    %4 = vector.load %arg2[%c0_6, %c0_7] : memref<1x128xf32, #tpu.memory_space<vmem>>, vector<1x128xf32>
    %5 = vector.shape_cast %4 : vector<1x128xf32> to vector<1x1x128xf32>
    %6 = vector.broadcast %5 : vector<1x1x128xf32> to vector<8x8x128xf32>
    %7 = arith.mulf %1, %6 : vector<8x8x128xf32>
    %c0_8 = arith.constant 0 : index
    %c0_9 = arith.constant 0 : index
    %8 = vector.load %arg3[%c0_8, %c0_9] : memref<1x128xf32, #tpu.memory_space<vmem>>, vector<1x128xf32>
    %9 = vector.shape_cast %8 : vector<1x128xf32> to vector<1x1x128xf32>
    %10 = vector.broadcast %9 : vector<1x1x128xf32> to vector<8x8x128xf32>
    %11 = arith.addf %7, %10 : vector<8x8x128xf32>
    %cst_10 = arith.constant 0.000000e+00 : f32
    %12 = vector.broadcast %cst_10 : f32 to vector<8x8x128xf32>
    %13 = arith.maximumf %11, %12 : vector<8x8x128xf32>
    %c1 = arith.constant 1 : index
    %c1_11 = arith.constant 1 : index
    %c0_12 = arith.constant 0 : index
    %14 = vector.load %arg11[%c1, %c1_11, %c0_12] : memref<9x9x128xf32, #tpu.memory_space<vmem>>, vector<8x8x128xf32>
    tpu.vector_store %arg11[%c1, %c1_11, %c0_12], %13 {strides = array<i32>} : memref<9x9x128xf32, #tpu.memory_space<vmem>>, vector<8x8x128xf32>,
    %c0_13 = arith.constant 0 : index
    %c0_14 = arith.constant 0 : index
    %c0_15 = arith.constant 0 : index
    %15 = vector.load %arg11[%c0_13, %c0_14, %c0_15] : memref<9x9x128xf32, #tpu.memory_space<vmem>>, vector<9x9x128xf32>
    %cst_16 = arith.constant 0.000000e+00 : f32
    %16 = vector.broadcast %cst_16 : f32 to vector<64x128xf32>
    %17 = vector.extract_strided_slice %15 {offsets = [0, 0, 0], sizes = [8, 8, 128], strides = [1, 1, 1]} : vector<9x9x128xf32> to vector<8x8x128xf32>
    %18 = vector.shape_cast %17 : vector<8x8x128xf32> to vector<64x128xf32>
    %c0_17 = arith.constant 0 : index
    %c0_18 = arith.constant 0 : index
    %c0_19 = arith.constant 0 : index
    %19 = vector.load %arg4[%c0_17, %c0_18, %c0_19] : memref<4x128x128xf32, #tpu.memory_space<vmem>>, vector<1x128x128xf32>
    %20 = vector.shape_cast %19 : vector<1x128x128xf32> to vector<128x128xf32>
    %cst_20 = arith.constant dense<0.000000e+00> : vector<64x128xf32>
    %21 = tpu.matmul %18, %20, %cst_20 {dimension_numbers = #tpu.dot_dimension_numbers<[1], [0], [0], [1], [0, 0, 1, 1], [], []>} : vector<64x128xf32>, vector<128x128xf32>, vector<64x128xf32> -> vector<64x128xf32>
    %22 = arith.addf %16, %21 : vector<64x128xf32>
    %23 = vector.extract_strided_slice %15 {offsets = [0, 1, 0], sizes = [8, 8, 128], strides = [1, 1, 1]} : vector<9x9x128xf32> to vector<8x8x128xf32>
    %24 = vector.shape_cast %23 : vector<8x8x128xf32> to vector<64x128xf32>
    %c1_21 = arith.constant 1 : index
    %c0_22 = arith.constant 0 : index
    %c0_23 = arith.constant 0 : index
    %25 = vector.load %arg4[%c1_21, %c0_22, %c0_23] : memref<4x128x128xf32, #tpu.memory_space<vmem>>, vector<1x128x128xf32>
    %26 = vector.shape_cast %25 : vector<1x128x128xf32> to vector<128x128xf32>
    %cst_24 = arith.constant dense<0.000000e+00> : vector<64x128xf32>
    %27 = tpu.matmul %24, %26, %cst_24 {dimension_numbers = #tpu.dot_dimension_numbers<[1], [0], [0], [1], [0, 0, 1, 1], [], []>} : vector<64x128xf32>, vector<128x128xf32>, vector<64x128xf32> -> vector<64x128xf32>
    %28 = arith.addf %22, %27 : vector<64x128xf32>
    %29 = vector.extract_strided_slice %15 {offsets = [1, 0, 0], sizes = [8, 8, 128], strides = [1, 1, 1]} : vector<9x9x128xf32> to vector<8x8x128xf32>
    %30 = vector.shape_cast %29 : vector<8x8x128xf32> to vector<64x128xf32>
    %c2 = arith.constant 2 : index
    %c0_25 = arith.constant 0 : index
    %c0_26 = arith.constant 0 : index
    %31 = vector.load %arg4[%c2, %c0_25, %c0_26] : memref<4x128x128xf32, #tpu.memory_space<vmem>>, vector<1x128x128xf32>
    %32 = vector.shape_cast %31 : vector<1x128x128xf32> to vector<128x128xf32>
    %cst_27 = arith.constant dense<0.000000e+00> : vector<64x128xf32>
    %33 = tpu.matmul %30, %32, %cst_27 {dimension_numbers = #tpu.dot_dimension_numbers<[1], [0], [0], [1], [0, 0, 1, 1], [], []>} : vector<64x128xf32>, vector<128x128xf32>, vector<64x128xf32> -> vector<64x128xf32>
    %34 = arith.addf %28, %33 : vector<64x128xf32>
    %35 = vector.extract_strided_slice %15 {offsets = [1, 1, 0], sizes = [8, 8, 128], strides = [1, 1, 1]} : vector<9x9x128xf32> to vector<8x8x128xf32>
    %36 = vector.shape_cast %35 : vector<8x8x128xf32> to vector<64x128xf32>
    %c3 = arith.constant 3 : index
    %c0_28 = arith.constant 0 : index
    %c0_29 = arith.constant 0 : index
    %37 = vector.load %arg4[%c3, %c0_28, %c0_29] : memref<4x128x128xf32, #tpu.memory_space<vmem>>, vector<1x128x128xf32>
    %38 = vector.shape_cast %37 : vector<1x128x128xf32> to vector<128x128xf32>
    %cst_30 = arith.constant dense<0.000000e+00> : vector<64x128xf32>
    %39 = tpu.matmul %36, %38, %cst_30 {dimension_numbers = #tpu.dot_dimension_numbers<[1], [0], [0], [1], [0, 0, 1, 1], [], []>} : vector<64x128xf32>, vector<128x128xf32>, vector<64x128xf32> -> vector<64x128xf32>
    %40 = arith.addf %34, %39 : vector<64x128xf32>
    %cst_31 = arith.constant 0.000000e+00 : f32
    %41 = vector.broadcast %cst_31 : f32 to vector<10x10x128xf32>
    %c0_32 = arith.constant 0 : index
    %c0_33 = arith.constant 0 : index
    %c0_34 = arith.constant 0 : index
    %42 = vector.load %arg12[%c0_32, %c0_33, %c0_34] : memref<10x10x128xf32, #tpu.memory_space<vmem>>, vector<10x10x128xf32>
    tpu.vector_store %arg12[%c0_32, %c0_33, %c0_34], %41 {strides = array<i32>} : memref<10x10x128xf32, #tpu.memory_space<vmem>>, vector<10x10x128xf32>,
    %c0_35 = arith.constant 0 : index
    %c0_36 = arith.constant 0 : index
    %43 = vector.load %arg5[%c0_35, %c0_36] : memref<1x128xf32, #tpu.memory_space<vmem>>, vector<1x128xf32>
    %44 = vector.broadcast %43 : vector<1x128xf32> to vector<64x128xf32>
    %45 = arith.mulf %40, %44 : vector<64x128xf32>
    %c0_37 = arith.constant 0 : index
    %c0_38 = arith.constant 0 : index
    %46 = vector.load %arg6[%c0_37, %c0_38] : memref<1x128xf32, #tpu.memory_space<vmem>>, vector<1x128xf32>
    %47 = vector.broadcast %46 : vector<1x128xf32> to vector<64x128xf32>
    %48 = arith.addf %45, %47 : vector<64x128xf32>
    %cst_39 = arith.constant 0.000000e+00 : f32
    %49 = vector.broadcast %cst_39 : f32 to vector<64x128xf32>
    %50 = arith.maximumf %48, %49 : vector<64x128xf32>
    %51 = vector.shape_cast %50 : vector<64x128xf32> to vector<8x8x128xf32>
    %c1_40 = arith.constant 1 : index
    %c1_41 = arith.constant 1 : index
    %c0_42 = arith.constant 0 : index
    %52 = vector.load %arg12[%c1_40, %c1_41, %c0_42] : memref<10x10x128xf32, #tpu.memory_space<vmem>>, vector<8x8x128xf32>
    tpu.vector_store %arg12[%c1_40, %c1_41, %c0_42], %51 {strides = array<i32>} : memref<10x10x128xf32, #tpu.memory_space<vmem>>, vector<8x8x128xf32>,
    %53 = vector.shape_cast %1 : vector<8x8x128xf32> to vector<64x128xf32>
    %c0_43 = arith.constant 0 : index
    %c0_44 = arith.constant 0 : index
    %54 = vector.load %arg8[%c0_43, %c0_44] : memref<128x128xf32, #tpu.memory_space<vmem>>, vector<128x128xf32>
    %cst_45 = arith.constant dense<0.000000e+00> : vector<64x128xf32>
    %55 = tpu.matmul %53, %54, %cst_45 {dimension_numbers = #tpu.dot_dimension_numbers<[1], [0], [0], [1], [0, 0, 1, 1], [], []>} : vector<64x128xf32>, vector<128x128xf32>, vector<64x128xf32> -> vector<64x128xf32>
    %c0_46 = arith.constant 0 : index
    %c0_47 = arith.constant 0 : index
    %56 = vector.load %arg9[%c0_46, %c0_47] : memref<1x128xf32, #tpu.memory_space<vmem>>, vector<1x128xf32>
    %57 = vector.broadcast %56 : vector<1x128xf32> to vector<64x128xf32>
    %58 = arith.addf %55, %57 : vector<64x128xf32>
    %c0_48 = arith.constant 0 : index
    %c0_49 = arith.constant 0 : index
    %c0_50 = arith.constant 0 : index
    %59 = vector.load %arg12[%c0_48, %c0_49, %c0_50] : memref<10x10x128xf32, #tpu.memory_space<vmem>>, vector<10x10x128xf32>
    %60 = vector.extract_strided_slice %59 {offsets = [0, 0, 0], sizes = [8, 8, 128], strides = [1, 1, 1]} : vector<10x10x128xf32> to vector<8x8x128xf32>
    %61 = vector.shape_cast %60 : vector<8x8x128xf32> to vector<64x128xf32>
    %c0_51 = arith.constant 0 : index
    %c0_52 = arith.constant 0 : index
    %c0_53 = arith.constant 0 : index
    %62 = vector.load %arg7[%c0_51, %c0_52, %c0_53] : memref<9x128x128xf32, #tpu.memory_space<vmem>>, vector<1x128x128xf32>
    %63 = vector.shape_cast %62 : vector<1x128x128xf32> to vector<128x128xf32>
    %cst_54 = arith.constant dense<0.000000e+00> : vector<64x128xf32>
    %64 = tpu.matmul %61, %63, %cst_54 {dimension_numbers = #tpu.dot_dimension_numbers<[1], [0], [0], [1], [0, 0, 1, 1], [], []>} : vector<64x128xf32>, vector<128x128xf32>, vector<64x128xf32> -> vector<64x128xf32>
    %65 = arith.addf %58, %64 : vector<64x128xf32>
    %66 = vector.extract_strided_slice %59 {offsets = [0, 1, 0], sizes = [8, 8, 128], strides = [1, 1, 1]} : vector<10x10x128xf32> to vector<8x8x128xf32>
    %67 = vector.shape_cast %66 : vector<8x8x128xf32> to vector<64x128xf32>
    %c1_55 = arith.constant 1 : index
    %c0_56 = arith.constant 0 : index
    %c0_57 = arith.constant 0 : index
    %68 = vector.load %arg7[%c1_55, %c0_56, %c0_57] : memref<9x128x128xf32, #tpu.memory_space<vmem>>, vector<1x128x128xf32>
    %69 = vector.shape_cast %68 : vector<1x128x128xf32> to vector<128x128xf32>
    %cst_58 = arith.constant dense<0.000000e+00> : vector<64x128xf32>
    %70 = tpu.matmul %67, %69, %cst_58 {dimension_numbers = #tpu.dot_dimension_numbers<[1], [0], [0], [1], [0, 0, 1, 1], [], []>} : vector<64x128xf32>, vector<128x128xf32>, vector<64x128xf32> -> vector<64x128xf32>
    %71 = arith.addf %65, %70 : vector<64x128xf32>
    %72 = vector.extract_strided_slice %59 {offsets = [0, 2, 0], sizes = [8, 8, 128], strides = [1, 1, 1]} : vector<10x10x128xf32> to vector<8x8x128xf32>
    %73 = vector.shape_cast %72 : vector<8x8x128xf32> to vector<64x128xf32>
    %c2_59 = arith.constant 2 : index
    %c0_60 = arith.constant 0 : index
    %c0_61 = arith.constant 0 : index
    %74 = vector.load %arg7[%c2_59, %c0_60, %c0_61] : memref<9x128x128xf32, #tpu.memory_space<vmem>>, vector<1x128x128xf32>
    %75 = vector.shape_cast %74 : vector<1x128x128xf32> to vector<128x128xf32>
    %cst_62 = arith.constant dense<0.000000e+00> : vector<64x128xf32>
    %76 = tpu.matmul %73, %75, %cst_62 {dimension_numbers = #tpu.dot_dimension_numbers<[1], [0], [0], [1], [0, 0, 1, 1], [], []>} : vector<64x128xf32>, vector<128x128xf32>, vector<64x128xf32> -> vector<64x128xf32>
    %77 = arith.addf %71, %76 : vector<64x128xf32>
    %78 = vector.extract_strided_slice %59 {offsets = [1, 0, 0], sizes = [8, 8, 128], strides = [1, 1, 1]} : vector<10x10x128xf32> to vector<8x8x128xf32>
    %79 = vector.shape_cast %78 : vector<8x8x128xf32> to vector<64x128xf32>
    %c3_63 = arith.constant 3 : index
    %c0_64 = arith.constant 0 : index
    %c0_65 = arith.constant 0 : index
    %80 = vector.load %arg7[%c3_63, %c0_64, %c0_65] : memref<9x128x128xf32, #tpu.memory_space<vmem>>, vector<1x128x128xf32>
    %81 = vector.shape_cast %80 : vector<1x128x128xf32> to vector<128x128xf32>
    %cst_66 = arith.constant dense<0.000000e+00> : vector<64x128xf32>
    %82 = tpu.matmul %79, %81, %cst_66 {dimension_numbers = #tpu.dot_dimension_numbers<[1], [0], [0], [1], [0, 0, 1, 1], [], []>} : vector<64x128xf32>, vector<128x128xf32>, vector<64x128xf32> -> vector<64x128xf32>
    %83 = arith.addf %77, %82 : vector<64x128xf32>
    %84 = vector.extract_strided_slice %59 {offsets = [1, 1, 0], sizes = [8, 8, 128], strides = [1, 1, 1]} : vector<10x10x128xf32> to vector<8x8x128xf32>
    %85 = vector.shape_cast %84 : vector<8x8x128xf32> to vector<64x128xf32>
    %c4 = arith.constant 4 : index
    %c0_67 = arith.constant 0 : index
    %c0_68 = arith.constant 0 : index
    %86 = vector.load %arg7[%c4, %c0_67, %c0_68] : memref<9x128x128xf32, #tpu.memory_space<vmem>>, vector<1x128x128xf32>
    %87 = vector.shape_cast %86 : vector<1x128x128xf32> to vector<128x128xf32>
    %cst_69 = arith.constant dense<0.000000e+00> : vector<64x128xf32>
    %88 = tpu.matmul %85, %87, %cst_69 {dimension_numbers = #tpu.dot_dimension_numbers<[1], [0], [0], [1], [0, 0, 1, 1], [], []>} : vector<64x128xf32>, vector<128x128xf32>, vector<64x128xf32> -> vector<64x128xf32>
    %89 = arith.addf %83, %88 : vector<64x128xf32>
    %90 = vector.extract_strided_slice %59 {offsets = [1, 2, 0], sizes = [8, 8, 128], strides = [1, 1, 1]} : vector<10x10x128xf32> to vector<8x8x128xf32>
    %91 = vector.shape_cast %90 : vector<8x8x128xf32> to vector<64x128xf32>
    %c5 = arith.constant 5 : index
    %c0_70 = arith.constant 0 : index
    %c0_71 = arith.constant 0 : index
    %92 = vector.load %arg7[%c5, %c0_70, %c0_71] : memref<9x128x128xf32, #tpu.memory_space<vmem>>, vector<1x128x128xf32>
    %93 = vector.shape_cast %92 : vector<1x128x128xf32> to vector<128x128xf32>
    %cst_72 = arith.constant dense<0.000000e+00> : vector<64x128xf32>
    %94 = tpu.matmul %91, %93, %cst_72 {dimension_numbers = #tpu.dot_dimension_numbers<[1], [0], [0], [1], [0, 0, 1, 1], [], []>} : vector<64x128xf32>, vector<128x128xf32>, vector<64x128xf32> -> vector<64x128xf32>
    %95 = arith.addf %89, %94 : vector<64x128xf32>
    %96 = vector.extract_strided_slice %59 {offsets = [2, 0, 0], sizes = [8, 8, 128], strides = [1, 1, 1]} : vector<10x10x128xf32> to vector<8x8x128xf32>
    %97 = vector.shape_cast %96 : vector<8x8x128xf32> to vector<64x128xf32>
    %c6 = arith.constant 6 : index
    %c0_73 = arith.constant 0 : index
    %c0_74 = arith.constant 0 : index
    %98 = vector.load %arg7[%c6, %c0_73, %c0_74] : memref<9x128x128xf32, #tpu.memory_space<vmem>>, vector<1x128x128xf32>
    %99 = vector.shape_cast %98 : vector<1x128x128xf32> to vector<128x128xf32>
    %cst_75 = arith.constant dense<0.000000e+00> : vector<64x128xf32>
    %100 = tpu.matmul %97, %99, %cst_75 {dimension_numbers = #tpu.dot_dimension_numbers<[1], [0], [0], [1], [0, 0, 1, 1], [], []>} : vector<64x128xf32>, vector<128x128xf32>, vector<64x128xf32> -> vector<64x128xf32>
    %101 = arith.addf %95, %100 : vector<64x128xf32>
    %102 = vector.extract_strided_slice %59 {offsets = [2, 1, 0], sizes = [8, 8, 128], strides = [1, 1, 1]} : vector<10x10x128xf32> to vector<8x8x128xf32>
    %103 = vector.shape_cast %102 : vector<8x8x128xf32> to vector<64x128xf32>
    %c7 = arith.constant 7 : index
    %c0_76 = arith.constant 0 : index
    %c0_77 = arith.constant 0 : index
    %104 = vector.load %arg7[%c7, %c0_76, %c0_77] : memref<9x128x128xf32, #tpu.memory_space<vmem>>, vector<1x128x128xf32>
    %105 = vector.shape_cast %104 : vector<1x128x128xf32> to vector<128x128xf32>
    %cst_78 = arith.constant dense<0.000000e+00> : vector<64x128xf32>
    %106 = tpu.matmul %103, %105, %cst_78 {dimension_numbers = #tpu.dot_dimension_numbers<[1], [0], [0], [1], [0, 0, 1, 1], [], []>} : vector<64x128xf32>, vector<128x128xf32>, vector<64x128xf32> -> vector<64x128xf32>
    %107 = arith.addf %101, %106 : vector<64x128xf32>
    %108 = vector.extract_strided_slice %59 {offsets = [2, 2, 0], sizes = [8, 8, 128], strides = [1, 1, 1]} : vector<10x10x128xf32> to vector<8x8x128xf32>
    %109 = vector.shape_cast %108 : vector<8x8x128xf32> to vector<64x128xf32>
    %c8 = arith.constant 8 : index
    %c0_79 = arith.constant 0 : index
    %c0_80 = arith.constant 0 : index
    %110 = vector.load %arg7[%c8, %c0_79, %c0_80] : memref<9x128x128xf32, #tpu.memory_space<vmem>>, vector<1x128x128xf32>
    %111 = vector.shape_cast %110 : vector<1x128x128xf32> to vector<128x128xf32>
    %cst_81 = arith.constant dense<0.000000e+00> : vector<64x128xf32>
    %112 = tpu.matmul %109, %111, %cst_81 {dimension_numbers = #tpu.dot_dimension_numbers<[1], [0], [0], [1], [0, 0, 1, 1], [], []>} : vector<64x128xf32>, vector<128x128xf32>, vector<64x128xf32> -> vector<64x128xf32>
    %113 = arith.addf %107, %112 : vector<64x128xf32>
    %114 = vector.shape_cast %113 : vector<64x128xf32> to vector<1x8x8x128xf32>
    %c0_82 = arith.constant 0 : index
    %c0_83 = arith.constant 0 : index
    %c0_84 = arith.constant 0 : index
    %c0_85 = arith.constant 0 : index
    %115 = vector.load %arg10[%c0_82, %c0_83, %c0_84, %c0_85] : memref<1x8x8x128xf32, #tpu.memory_space<vmem>>, vector<1x8x8x128xf32>
    tpu.vector_store %arg10[%c0_82, %c0_83, %c0_84, %c0_85], %114 {strides = array<i32>} : memref<1x8x8x128xf32, #tpu.memory_space<vmem>>, vector<1x8x8x128xf32>,
    return
  }
  func.func @transform_0(%arg0: i32) -> (i32, i32, i32, i32) {
    %c0_i32 = arith.constant 0 : i32
    %c0_i32_0 = arith.constant 0 : i32
    %c0_i32_1 = arith.constant 0 : i32
    %c0_i32_2 = arith.constant 0 : i32
    return %arg0, %c0_i32, %c0_i32_0, %c0_i32_1 : i32, i32, i32, i32
  }
  func.func @transform_1(%arg0: i32) -> (i32, i32) {
    %c0_i32 = arith.constant 0 : i32
    %c0_i32_0 = arith.constant 0 : i32
    %c0_i32_1 = arith.constant 0 : i32
    return %c0_i32, %c0_i32_0 : i32, i32
  }
  func.func @transform_2(%arg0: i32) -> (i32, i32) {
    %c0_i32 = arith.constant 0 : i32
    %c0_i32_0 = arith.constant 0 : i32
    %c0_i32_1 = arith.constant 0 : i32
    return %c0_i32, %c0_i32_0 : i32, i32
  }
  func.func @transform_3(%arg0: i32) -> (i32, i32, i32) {
    %c0_i32 = arith.constant 0 : i32
    %c0_i32_0 = arith.constant 0 : i32
    %c0_i32_1 = arith.constant 0 : i32
    %c0_i32_2 = arith.constant 0 : i32
    return %c0_i32, %c0_i32_0, %c0_i32_1 : i32, i32, i32
  }
  func.func @transform_4(%arg0: i32) -> (i32, i32) {
    %c0_i32 = arith.constant 0 : i32
    %c0_i32_0 = arith.constant 0 : i32
    %c0_i32_1 = arith.constant 0 : i32
    return %c0_i32, %c0_i32_0 : i32, i32
  }
  func.func @transform_5(%arg0: i32) -> (i32, i32) {
    %c0_i32 = arith.constant 0 : i32
    %c0_i32_0 = arith.constant 0 : i32
    %c0_i32_1 = arith.constant 0 : i32
    return %c0_i32, %c0_i32_0 : i32, i32
  }
  func.func @transform_6(%arg0: i32) -> (i32, i32, i32) {
    %c0_i32 = arith.constant 0 : i32
    %c0_i32_0 = arith.constant 0 : i32
    %c0_i32_1 = arith.constant 0 : i32
    %c0_i32_2 = arith.constant 0 : i32
    return %c0_i32, %c0_i32_0, %c0_i32_1 : i32, i32, i32
  }
  func.func @transform_7(%arg0: i32) -> (i32, i32) {
    %c0_i32 = arith.constant 0 : i32
    %c0_i32_0 = arith.constant 0 : i32
    %c0_i32_1 = arith.constant 0 : i32
    return %c0_i32, %c0_i32_0 : i32, i32
  }
  func.func @transform_8(%arg0: i32) -> (i32, i32) {
    %c0_i32 = arith.constant 0 : i32
    %c0_i32_0 = arith.constant 0 : i32
    %c0_i32_1 = arith.constant 0 : i32
    return %c0_i32, %c0_i32_0 : i32, i32
  }
  func.func @transform_9(%arg0: i32) -> (i32, i32, i32, i32) {
    %c0_i32 = arith.constant 0 : i32
    %c0_i32_0 = arith.constant 0 : i32
    %c0_i32_1 = arith.constant 0 : i32
    %c0_i32_2 = arith.constant 0 : i32
    return %arg0, %c0_i32, %c0_i32_0, %c0_i32_1 : i32, i32, i32, i32
  }
}

</mosaic_0001>

<llo_original>
// kernel: tpu_custom_call.1
$region0: #{tpu_custom_call.1}
  #allocation0 [shape = 'u32[]', space=smem, size = 0x4, offset = 0x4, fixed_abs, tag = 'smem constant byte address 0x4 - core index']
  #allocation1 [shape = 'u32[144,128]{1,0:T(1,128)}', space=vmem, size = 0x12000, scoped, tag = 'internal scratch']
  #allocation2 [shape = 'f32[9,9,128]{2,1,0:T(8,128)}', space=vmem, size = 0x12000, scoped, tag = 'scratch operand']
  #allocation3 [shape = 'f32[10,10,128]{2,1,0:T(8,128)}', space=vmem, size = 0x14000, scoped, tag = 'scratch operand']
  %s0 = inlined_call_operand.hbm [shape: f32[2,8,8,128], index: 0, kind: input, shape index: {}]
  %s1 = inlined_call_operand.vmem [shape: f32[1,128], index: 1, kind: input, shape index: {}]
  %s2 = inlined_call_operand.vmem [shape: f32[1,128], index: 2, kind: input, shape index: {}]
  %s3 = inlined_call_operand.hbm [shape: f32[4,128,128], index: 3, kind: input, shape index: {}]
  %s4 = inlined_call_operand.vmem [shape: f32[1,128], index: 4, kind: input, shape index: {}]
  %s5 = inlined_call_operand.vmem [shape: f32[1,128], index: 5, kind: input, shape index: {}]
  %s6 = inlined_call_operand.hbm [shape: f32[9,128,128], index: 6, kind: input, shape index: {}]
  %s7 = inlined_call_operand.hbm [shape: f32[128,128], index: 7, kind: input, shape index: {}]
  %s8 = inlined_call_operand.vmem [shape: f32[1,128], index: 8, kind: input, shape index: {}]
  %s9 = inlined_call_operand.hbm [shape: f32[2,8,8,128], index: 9, kind: output, shape index: {}]
  %s10 = sld [smem:[#allocation0]]
  $region85: #{tpu_custom_call.1} parent=0
    _
  %s12 = ssub.s32 1, %s10
  %s13 = scalar_select 0, %s12, %s10
  $region1: #{tpu_custom_call.1} parent=0
    #allocation4 [shape = 'u8[65536]{0}', space=vmem, size = 0x10000, scoped, tag = 'input window, operand 0']
    #allocation5 [shape = 's32[2]{0}', space=sflag, size = 0x8, scoped, tag = 'scoped memory for tpu_custom_call.1']
    #allocation6 [shape = 's32[2]{0}', space=sflag, size = 0x8, scoped, tag = 'scoped memory for tpu_custom_call.1']
    #allocation7 [shape = 'u8[262144]{0}', space=vmem, size = 0x40000, scoped, tag = 'input window, operand 3, single buffered']
    #allocation8 [shape = 's32[1]{0}', space=sflag, size = 0x4, scoped, tag = 'scoped memory for tpu_custom_call.1']
    #allocation9 [shape = 'u8[589824]{0}', space=vmem, size = 0x90000, scoped, tag = 'input window, operand 6, single buffered']
    #allocation10 [shape = 'u8[65536]{0}', space=vmem, size = 0x10000, scoped, tag = 'input window, operand 7, single buffered']
    #allocation11 [shape = 's32[1]{0}', space=sflag, size = 0x4, scoped, tag = 'scoped memory for tpu_custom_call.1']
    #allocation12 [shape = 'u8[65536]{0}', space=vmem, size = 0x10000, scoped, tag = 'output window, operand 0']
    %14 = vsyncpa [#allocation5], 0
    %s15 = scalar_lea.sflag [#allocation5], 1
    %16 = vsyncpa %s15, 0
    %17 = vsyncpa [#allocation8], 0
    %18 = vsyncpa [#allocation11], 0
    %19 = vsyncpa [#allocation6], 0
    %s20 = scalar_lea.sflag [#allocation6], 1
    %21 = vsyncpa %s20, 0
    loop: start=0, step=1, limit=4
    $region2: #{tpu_custom_call.1} parent=1 // loop_pre_header
      _
    $region3: #{tpu_custom_call.1} parent=1 // loop_header
      %s23 = sphi 0, %s27
      %p24 = scmp.ge.s32.totalorder %s23, 4
      %s33 = sphi 0, %s35
      %s36 = sphi 0, %s33
      %s37 = sphi 0, %s36
      %s53 = sphi 0, %s37
      %s57 = sphi 0, %s57
      %s59 = sphi 0, %s57
      %s60 = sphi 0, %s59
      %s74 = sphi 0, %s60
      %s78 = sphi 0, %s78
      %s80 = sphi 0, %s78
      %s81 = sphi 0, %s80
      %s95 = sphi 0, %s81
      %s99 = sphi 0, %s99
      %s101 = sphi 0, %s99
      %s102 = sphi 0, %s101
      %s116 = sphi 0, %s102
      %s120 = sphi 0, %s120
      %s122 = sphi 0, %s120
      %s123 = sphi 0, %s122
      %s137 = sphi 0, %s123
      %s141 = sphi 0, %s141
      %s143 = sphi 0, %s141
      %s144 = sphi 0, %s143
      %s158 = sphi 0, %s144
      %s162 = sphi 0, %s162
      %s164 = sphi 0, %s162
      %s165 = sphi 0, %s164
      %s179 = sphi 0, %s165
      %s183 = sphi 0, %s183
      %s185 = sphi 0, %s183
      %s186 = sphi 0, %s185
      %s200 = sphi 0, %s186
      %s204 = sphi 0, %s204
      %s206 = sphi 0, %s204
      %s207 = sphi 0, %s206
      %s221 = sphi 0, %s207
      %s227 = sphi 0, %s229
      %s230 = sphi 0, %s227
      %s231 = sphi 0, %s230
      %s247 = sphi 0, %s231
    $region4: #{tpu_custom_call.1} parent=1 // loop_header_branch
      %26 = sbr.rel (%p24) target = $region8
    $region5: #{tpu_custom_call.1} parent=1 // loop_body
      %s28 = ssub.s32 %s23, 1
      %s29 = ssub.s32 %s23, 2
      %s30 = sadd.s32 %s23, 1
      %s31 = ssub.s32 %s23, %s30
      %p32 = scmp.eq.s32.totalorder %s31, 0
      %s34 = sadd.s32 %s33, 1
      %s35 = scalar_select %p32, %s33, %s34
      %p38 = pneg %p32
      %p39 = scmp.eq.s32.totalorder %s23, 1
      %p40 = por %p38, %p39
      %p41 = scmp.ne.s32.totalorder %s33, %s36
      %p42 = scmp.eq.s32.totalorder %s23, 0
      %p43 = por %p41, %p42
      %p44 = scmp.ne.s32.totalorder %s33, %s36
      %p45 = scmp.eq.s32.totalorder %s28, 1
      %p46 = por %p44, %p45
      %p47 = scmp.ne.s32.totalorder %s36, %s37
      %p48 = scmp.eq.s32.totalorder %s28, 0
      %p49 = por %p47, %p48
      %p50 = scmp.ne.s32.totalorder %s36, %s37
      %p51 = scmp.eq.s32.totalorder %s29, 1
      %p52 = por %p50, %p51
      %p54 = scmp.ne.s32.totalorder %s37, %s53
      %p55 = scmp.eq.s32.totalorder %s29, 0
      %p56 = por %p54, %p55
      %s58 = sadd.s32 %s57, 1
      %p61 = scmp.eq.s32.totalorder %s23, 1
      %p62 = scmp.ne.s32.totalorder %s57, %s59
      %p63 = scmp.eq.s32.totalorder %s23, 0
      %p64 = por %p62, %p63
      %p65 = scmp.ne.s32.totalorder %s57, %s59
      %p66 = scmp.eq.s32.totalorder %s28, 1
      %p67 = por %p65, %p66
      %p68 = scmp.ne.s32.totalorder %s59, %s60
      %p69 = scmp.eq.s32.totalorder %s28, 0
      %p70 = por %p68, %p69
      %p71 = scmp.ne.s32.totalorder %s59, %s60
      %p72 = scmp.eq.s32.totalorder %s29, 1
      %p73 = por %p71, %p72
      %p75 = scmp.ne.s32.totalorder %s60, %s74
      %p76 = scmp.eq.s32.totalorder %s29, 0
      %p77 = por %p75, %p76
      %s79 = sadd.s32 %s78, 1
      %p82 = scmp.eq.s32.totalorder %s23, 1
      %p83 = scmp.ne.s32.totalorder %s78, %s80
      %p84 = scmp.eq.s32.totalorder %s23, 0
      %p85 = por %p83, %p84
      %p86 = scmp.ne.s32.totalorder %s78, %s80
      %p87 = scmp.eq.s32.totalorder %s28, 1
      %p88 = por %p86, %p87
      %p89 = scmp.ne.s32.totalorder %s80, %s81
      %p90 = scmp.eq.s32.totalorder %s28, 0
      %p91 = por %p89, %p90
      %p92 = scmp.ne.s32.totalorder %s80, %s81
      %p93 = scmp.eq.s32.totalorder %s29, 1
      %p94 = por %p92, %p93
      %p96 = scmp.ne.s32.totalorder %s81, %s95
      %p97 = scmp.eq.s32.totalorder %s29, 0
      %p98 = por %p96, %p97
      %s100 = sadd.s32 %s99, 1
      %p103 = scmp.eq.s32.totalorder %s23, 1
      %p104 = scmp.ne.s32.totalorder %s99, %s101
      %p105 = scmp.eq.s32.totalorder %s23, 0
      %p106 = por %p104, %p105
      %p107 = scmp.ne.s32.totalorder %s99, %s101
      %p108 = scmp.eq.s32.totalorder %s28, 1
      %p109 = por %p107, %p108
      %p110 = scmp.ne.s32.totalorder %s101, %s102
      %p111 = scmp.eq.s32.totalorder %s28, 0
      %p112 = por %p110, %p111
      %p113 = scmp.ne.s32.totalorder %s101, %s102
      %p114 = scmp.eq.s32.totalorder %s29, 1
      %p115 = por %p113, %p114
      %p117 = scmp.ne.s32.totalorder %s102, %s116
      %p118 = scmp.eq.s32.totalorder %s29, 0
      %p119 = por %p117, %p118
      %s121 = sadd.s32 %s120, 1
      %p124 = scmp.eq.s32.totalorder %s23, 1
      %p125 = scmp.ne.s32.totalorder %s120, %s122
      %p126 = scmp.eq.s32.totalorder %s23, 0
      %p127 = por %p125, %p126
      %p128 = scmp.ne.s32.totalorder %s120, %s122
      %p129 = scmp.eq.s32.totalorder %s28, 1
      %p130 = por %p128, %p129
      %p131 = scmp.ne.s32.totalorder %s122, %s123
      %p132 = scmp.eq.s32.totalorder %s28, 0
      %p133 = por %p131, %p132
      %p134 = scmp.ne.s32.totalorder %s122, %s123
      %p135 = scmp.eq.s32.totalorder %s29, 1
      %p136 = por %p134, %p135
      %p138 = scmp.ne.s32.totalorder %s123, %s137
      %p139 = scmp.eq.s32.totalorder %s29, 0
      %p140 = por %p138, %p139
      %s142 = sadd.s32 %s141, 1
      %p145 = scmp.eq.s32.totalorder %s23, 1
      %p146 = scmp.ne.s32.totalorder %s141, %s143
      %p147 = scmp.eq.s32.totalorder %s23, 0
      %p148 = por %p146, %p147
      %p149 = scmp.ne.s32.totalorder %s141, %s143
      %p150 = scmp.eq.s32.totalorder %s28, 1
      %p151 = por %p149, %p150
      %p152 = scmp.ne.s32.totalorder %s143, %s144
      %p153 = scmp.eq.s32.totalorder %s28, 0
      %p154 = por %p152, %p153
      %p155 = scmp.ne.s32.totalorder %s143, %s144
      %p156 = scmp.eq.s32.totalorder %s29, 1
      %p157 = por %p155, %p156
      %p159 = scmp.ne.s32.totalorder %s144, %s158
      %p160 = scmp.eq.s32.totalorder %s29, 0
      %p161 = por %p159, %p160
      %s163 = sadd.s32 %s162, 1
      %p166 = scmp.eq.s32.totalorder %s23, 1
      %p167 = scmp.ne.s32.totalorder %s162, %s164
      %p168 = scmp.eq.s32.totalorder %s23, 0
      %p169 = por %p167, %p168
      %p170 = scmp.ne.s32.totalorder %s162, %s164
      %p171 = scmp.eq.s32.totalorder %s28, 1
      %p172 = por %p170, %p171
      %p173 = scmp.ne.s32.totalorder %s164, %s165
      %p174 = scmp.eq.s32.totalorder %s28, 0
      %p175 = por %p173, %p174
      %p176 = scmp.ne.s32.totalorder %s164, %s165
      %p177 = scmp.eq.s32.totalorder %s29, 1
      %p178 = por %p176, %p177
      %p180 = scmp.ne.s32.totalorder %s165, %s179
      %p181 = scmp.eq.s32.totalorder %s29, 0
      %p182 = por %p180, %p181
      %s184 = sadd.s32 %s183, 1
      %p187 = scmp.eq.s32.totalorder %s23, 1
      %p188 = scmp.ne.s32.totalorder %s183, %s185
      %p189 = scmp.eq.s32.totalorder %s23, 0
      %p190 = por %p188, %p189
      %p191 = scmp.ne.s32.totalorder %s183, %s185
      %p192 = scmp.eq.s32.totalorder %s28, 1
      %p193 = por %p191, %p192
      %p194 = scmp.ne.s32.totalorder %s185, %s186
      %p195 = scmp.eq.s32.totalorder %s28, 0
      %p196 = por %p194, %p195
      %p197 = scmp.ne.s32.totalorder %s185, %s186
      %p198 = scmp.eq.s32.totalorder %s29, 1
      %p199 = por %p197, %p198
      %p201 = scmp.ne.s32.totalorder %s186, %s200
      %p202 = scmp.eq.s32.totalorder %s29, 0
      %p203 = por %p201, %p202
      %s205 = sadd.s32 %s204, 1
      %p208 = scmp.eq.s32.totalorder %s23, 1
      %p209 = scmp.ne.s32.totalorder %s204, %s206
      %p210 = scmp.eq.s32.totalorder %s23, 0
      %p211 = por %p209, %p210
      %p212 = scmp.ne.s32.totalorder %s204, %s206
      %p213 = scmp.eq.s32.totalorder %s28, 1
      %p214 = por %p212, %p213
      %p215 = scmp.ne.s32.totalorder %s206, %s207
      %p216 = scmp.eq.s32.totalorder %s28, 0
      %p217 = por %p215, %p216
      %p218 = scmp.ne.s32.totalorder %s206, %s207
      %p219 = scmp.eq.s32.totalorder %s29, 1
      %p220 = por %p218, %p219
      %p222 = scmp.ne.s32.totalorder %s207, %s221
      %p223 = scmp.eq.s32.totalorder %s29, 0
      %p224 = por %p222, %p223
      %s225 = ssub.s32 %s23, %s30
      %p226 = scmp.eq.s32.totalorder %s225, 0
      %s228 = sadd.s32 %s227, 1
      %s229 = scalar_select %p226, %s227, %s228
      %p232 = pneg %p226
      %p233 = scmp.eq.s32.totalorder %s23, 1
      %p234 = por %p232, %p233
      %p235 = scmp.ne.s32.totalorder %s227, %s230
      %p236 = scmp.eq.s32.totalorder %s23, 0
      %p237 = por %p235, %p236
      %p238 = scmp.ne.s32.totalorder %s227, %s230
      %p239 = scmp.eq.s32.totalorder %s28, 1
      %p240 = por %p238, %p239
      %p241 = scmp.ne.s32.totalorder %s230, %s231
      %p242 = scmp.eq.s32.totalorder %s28, 0
      %p243 = por %p241, %p242
      %p244 = scmp.ne.s32.totalorder %s230, %s231
      %p245 = scmp.eq.s32.totalorder %s29, 1
      %p246 = por %p244, %p245
      %p248 = scmp.ne.s32.totalorder %s231, %s247
      %p249 = scmp.eq.s32.totalorder %s29, 0
      %p250 = por %p248, %p249
      %p251 = scmp.le.s32.totalorder 1, %s23
      %p252 = scmp.lt.s32.totalorder %s23, 3
      %p253 = pnand %p251, %p252
      %p254 = pneg %p253
      // Predicated region
      $region9: #{tpu_custom_call.1} parent=5 // pred_check
        _
      $region10: #{tpu_custom_call.1} parent=5 // pred_check_branch
        %256 = sbr.rel (%p253) target = $region12
      $region11: #{tpu_custom_call.1} parent=5 // pred_region
        %s257 = ssub.s32 %s23, 1
        // Predicated region
        $region13: #{tpu_custom_call.1} parent=11 // pred_check
          %p258 = pneg %p70
        $region14: #{tpu_custom_call.1} parent=11 // pred_check_branch
          %260 = sbr.rel (%p258) target = $region16
        $region15: #{tpu_custom_call.1} parent=11 // pred_region
          _
        $region16: #{tpu_custom_call.1} parent=11 // pred_fallthru
          _
        // Predicated region
        $region17: #{tpu_custom_call.1} parent=11 // pred_check
          %p261 = pneg %p91
        $region18: #{tpu_custom_call.1} parent=11 // pred_check_branch
          %263 = sbr.rel (%p261) target = $region20
        $region19: #{tpu_custom_call.1} parent=11 // pred_region
          _
        $region20: #{tpu_custom_call.1} parent=11 // pred_fallthru
          _
        // Predicated region
        $region21: #{tpu_custom_call.1} parent=11 // pred_check
          %p264 = pneg %p112
        $region22: #{tpu_custom_call.1} parent=11 // pred_check_branch
          %266 = sbr.rel (%p264) target = $region24
        $region23: #{tpu_custom_call.1} parent=11 // pred_region
          %s268 = ssub.s32 8192, 8192
          %269 = vsyncadd [#allocation8], %s268
          %s270 = sshll.u32 [#allocation7], 4
          %s271 = int_to_ptr.vmem [resolvable:$true] %s270
          %276 = dma.hbm_to_vmem [thread:$0]  %s3, 8192, %s271, [#allocation8], 128, 128, 8
        $region24: #{tpu_custom_call.1} parent=11 // pred_fallthru
          _
        // Predicated region
        $region25: #{tpu_custom_call.1} parent=11 // pred_check
          %p277 = pneg %p133
        $region26: #{tpu_custom_call.1} parent=11 // pred_check_branch
          %279 = sbr.rel (%p277) target = $region28
        $region27: #{tpu_custom_call.1} parent=11 // pred_region
          _
        $region28: #{tpu_custom_call.1} parent=11 // pred_fallthru
          _
        // Predicated region
        $region29: #{tpu_custom_call.1} parent=11 // pred_check
          %p280 = pneg %p154
        $region30: #{tpu_custom_call.1} parent=11 // pred_check_branch
          %282 = sbr.rel (%p280) target = $region32
        $region31: #{tpu_custom_call.1} parent=11 // pred_region
          _
        $region32: #{tpu_custom_call.1} parent=11 // pred_fallthru
          _
        // Predicated region
        $region33: #{tpu_custom_call.1} parent=11 // pred_check
          %p283 = pneg %p175
        $region34: #{tpu_custom_call.1} parent=11 // pred_check_branch
          %285 = sbr.rel (%p283) target = $region36
        $region35: #{tpu_custom_call.1} parent=11 // pred_region
          %s287 = ssub.s32 18432, 18432
          %288 = vsyncadd [#allocation8], %s287
          %s289 = sshll.u32 [#allocation9], 4
          %s290 = int_to_ptr.vmem [resolvable:$true] %s289
          %295 = dma.hbm_to_vmem [thread:$0]  %s6, 18432, %s290, [#allocation8], 128, 128, 8
        $region36: #{tpu_custom_call.1} parent=11 // pred_fallthru
          _
        // Predicated region
        $region37: #{tpu_custom_call.1} parent=11 // pred_check
          %p296 = pneg %p196
        $region38: #{tpu_custom_call.1} parent=11 // pred_check_branch
          %298 = sbr.rel (%p296) target = $region40
        $region39: #{tpu_custom_call.1} parent=11 // pred_region
          %s300 = ssub.s32 2048, 2048
          %301 = vsyncadd [#allocation11], %s300
          %s302 = sshll.u32 [#allocation10], 4
          %s303 = int_to_ptr.vmem [resolvable:$true] %s302
          %308 = dma.hbm_to_vmem [thread:$0]  %s7, 2048, %s303, [#allocation11], 128, 128, 8
        $region40: #{tpu_custom_call.1} parent=11 // pred_fallthru
          _
        // Predicated region
        $region41: #{tpu_custom_call.1} parent=11 // pred_check
          %p309 = pneg %p217
        $region42: #{tpu_custom_call.1} parent=11 // pred_check_branch
          %311 = sbr.rel (%p309) target = $region44
        $region43: #{tpu_custom_call.1} parent=11 // pred_region
          _
        $region44: #{tpu_custom_call.1} parent=11 // pred_fallthru
          _
      $region12: #{tpu_custom_call.1} parent=5 // pred_fallthru
        _
      %p312 = scmp.lt.s32.totalorder %s23, 2
      // Predicated region
      $region45: #{tpu_custom_call.1} parent=5 // pred_check
        %p313 = pneg %p312
      $region46: #{tpu_custom_call.1} parent=5 // pred_check_branch
        %315 = sbr.rel (%p313) target = $region48
      $region47: #{tpu_custom_call.1} parent=5 // pred_region
        // Predicated region
        $region49: #{tpu_custom_call.1} parent=47 // pred_check
          %p316 = pneg %p43
        $region50: #{tpu_custom_call.1} parent=47 // pred_check_branch
          %318 = sbr.rel (%p316) target = $region52
        $region51: #{tpu_custom_call.1} parent=47 // pred_region
          %s319 = sand.u32 %s33, 1
          %s320 = scalar_lea.sflag [#allocation5], %s319
          %s321 = sand.u32 %s33, 1
          %s322 = smul.addr %s321, 64
          %s323 = scalar_lea.vmem [#allocation4], %s322
          %s325 = ssub.s32 1024, 1024
          %326 = vsyncadd %s320, %s325
          %s327 = smul.addr %s23, 8
          %s328 = smul.addr %s327, 128
          %s329 = scalar_lea.hbm %s0, %s328
          %s330 = sshll.u32 %s323, 4
          %s331 = int_to_ptr.vmem [resolvable:$true] %s330
          %336 = dma.hbm_to_vmem [thread:$0]  %s329, 1024, %s331, %s320, 128, 128, 8
        $region52: #{tpu_custom_call.1} parent=47 // pred_fallthru
          _
      $region48: #{tpu_custom_call.1} parent=5 // pred_fallthru
        _
      %p337 = scmp.le.s32.totalorder 1, %s23
      %p338 = scmp.lt.s32.totalorder %s23, 3
      %p339 = pnand %p337, %p338
      %p340 = pneg %p339
      // Predicated region
      $region53: #{tpu_custom_call.1} parent=5 // pred_check
        _
      $region54: #{tpu_custom_call.1} parent=5 // pred_check_branch
        %342 = sbr.rel (%p339) target = $region56
      $region55: #{tpu_custom_call.1} parent=5 // pred_region
        %s343 = ssub.s32 %s23, 1
        %s344 = sand.u32 %s36, 1
        %s345 = scalar_lea.sflag [#allocation5], %s344
        %s346 = sand.u32 %s36, 1
        %s347 = smul.addr %s346, 64
        %s348 = scalar_lea.vmem [#allocation4], %s347
        // Predicated region
        $region57: #{tpu_custom_call.1} parent=55 // pred_check
          %p349 = pneg %p49
        $region58: #{tpu_custom_call.1} parent=55 // pred_check_branch
          %351 = sbr.rel (%p349) target = $region60
        $region59: #{tpu_custom_call.1} parent=55 // pred_region
          %352 = dma.done %s345, 1024
        $region60: #{tpu_custom_call.1} parent=55 // pred_fallthru
          _
        // Predicated region
        $region61: #{tpu_custom_call.1} parent=55 // pred_check
          %p353 = pneg %p112
        $region62: #{tpu_custom_call.1} parent=55 // pred_check_branch
          %355 = sbr.rel (%p353) target = $region64
        $region63: #{tpu_custom_call.1} parent=55 // pred_region
          %356 = dma.done [#allocation8], 8192
        $region64: #{tpu_custom_call.1} parent=55 // pred_fallthru
          _
        // Predicated region
        $region65: #{tpu_custom_call.1} parent=55 // pred_check
          %p357 = pneg %p175
        $region66: #{tpu_custom_call.1} parent=55 // pred_check_branch
          %359 = sbr.rel (%p357) target = $region68
        $region67: #{tpu_custom_call.1} parent=55 // pred_region
          %360 = dma.done [#allocation8], 18432
        $region68: #{tpu_custom_call.1} parent=55 // pred_fallthru
          _
        // Predicated region
        $region69: #{tpu_custom_call.1} parent=55 // pred_check
          %p361 = pneg %p196
        $region70: #{tpu_custom_call.1} parent=55 // pred_check_branch
          %363 = sbr.rel (%p361) target = $region72
        $region71: #{tpu_custom_call.1} parent=55 // pred_region
          %364 = dma.done [#allocation11], 2048
        $region72: #{tpu_custom_call.1} parent=55 // pred_fallthru
          _
        %s365 = sand.u32 %s36, 1
        %s366 = scalar_lea.sflag [#allocation5], %s365
        %s367 = sand.u32 %s36, 1
        %s368 = smul.addr %s367, 64
        %s369 = scalar_lea.vmem [#allocation4], %s368
        %p370 = pneg %p49
        %p371 = pneg %p46
        %p372 = pneg %p70
        %p373 = pneg %p67
        %p374 = pneg %p91
        %p375 = pneg %p88
        %p376 = pneg %p112
        %p377 = pneg %p109
        %p378 = pneg %p133
        %p379 = pneg %p130
        %p380 = pneg %p154
        %p381 = pneg %p151
        %p382 = pneg %p175
        %p383 = pneg %p172
        %p384 = pneg %p196
        %p385 = pneg %p193
        %p386 = pneg %p217
        %p387 = pneg %p214
        %p388 = pneg %p243
        %p389 = pneg %p240
        %s390 = sand.u32 %s230, 1
        %s391 = scalar_lea.sflag [#allocation6], %s390
        %s392 = sand.u32 %s230, 1
        %s393 = smul.addr %s392, 64
        %s394 = scalar_lea.vmem [#allocation12], %s393
        %v395 = vld [vmem:[%s348] sm:$0xff]
        %v396 = vld [vmem:[%s348 + $0x8] sm:$0xff]
        %v397 = vld [vmem:[%s348 + $0x10] sm:$0xff]
        %v398 = vld [vmem:[%s348 + $0x18] sm:$0xff]
        %v399 = vld [vmem:[%s348 + $0x20] sm:$0xff]
        %v400 = vld [vmem:[%s348 + $0x28] sm:$0xff]
        %v401 = vld [vmem:[%s348 + $0x30] sm:$0xff]
        %v402 = vld [vmem:[%s348 + $0x38] sm:$0xff]
        %403 = vst [vmem:[#allocation2] sm:$0xff] 0.0
        %404 = vst [vmem:[#allocation2 + $0x8] sm:$0x1] 0.0
        %405 = vst [vmem:[#allocation2 + $0x10] sm:$0xff] 0.0
        %406 = vst [vmem:[#allocation2 + $0x18] sm:$0x1] 0.0
        %407 = vst [vmem:[#allocation2 + $0x20] sm:$0xff] 0.0
        %408 = vst [vmem:[#allocation2 + $0x28] sm:$0x1] 0.0
        %409 = vst [vmem:[#allocation2 + $0x30] sm:$0xff] 0.0
        %410 = vst [vmem:[#allocation2 + $0x38] sm:$0x1] 0.0
        %411 = vst [vmem:[#allocation2 + $0x40] sm:$0xff] 0.0
        %412 = vst [vmem:[#allocation2 + $0x48] sm:$0x1] 0.0
        %413 = vst [vmem:[#allocation2 + $0x50] sm:$0xff] 0.0
        %414 = vst [vmem:[#allocation2 + $0x58] sm:$0x1] 0.0
        %415 = vst [vmem:[#allocation2 + $0x60] sm:$0xff] 0.0
        %416 = vst [vmem:[#allocation2 + $0x68] sm:$0x1] 0.0
        %417 = vst [vmem:[#allocation2 + $0x70] sm:$0xff] 0.0
        %418 = vst [vmem:[#allocation2 + $0x78] sm:$0x1] 0.0
        %419 = vst [vmem:[#allocation2 + $0x80] sm:$0xff] 0.0
        %420 = vst [vmem:[#allocation2 + $0x88] sm:$0x1] 0.0
        %v421 = vld [vmem:[%s1] sm:$0x1]
        %v423 = vlaneseq
        %v424 = vshrl.u32 %v423, 7
        %v425 = vsub.s32 0, %v424
        %v426 = vrot.slane %v421, %v425
        %v428 = vmul.f32 %v395, %v426
        %v429 = vmul.f32 %v396, %v426
        %v430 = vmul.f32 %v397, %v426
        %v431 = vmul.f32 %v398, %v426
        %v432 = vmul.f32 %v399, %v426
        %v433 = vmul.f32 %v400, %v426
        %v434 = vmul.f32 %v401, %v426
        %v435 = vmul.f32 %v402, %v426
        %v436 = vld [vmem:[%s2] sm:$0x1]
        %v438 = vlaneseq
        %v439 = vshrl.u32 %v438, 7
        %v440 = vsub.s32 0, %v439
        %v441 = vrot.slane %v436, %v440
        %v443 = vadd.f32 %v428, %v441
        %v444 = vadd.f32 %v429, %v441
        %v445 = vadd.f32 %v430, %v441
        %v446 = vadd.f32 %v431, %v441
        %v447 = vadd.f32 %v432, %v441
        %v448 = vadd.f32 %v433, %v441
        %v449 = vadd.f32 %v434, %v441
        %v450 = vadd.f32 %v435, %v441
        %v451 = vmax.f32 %v443, 0.0
        %v452 = vmax.f32 %v444, 0.0
        %v453 = vmax.f32 %v445, 0.0
        %v454 = vmax.f32 %v446, 0.0
        %v455 = vmax.f32 %v447, 0.0
        %v456 = vmax.f32 %v448, 0.0
        %v457 = vmax.f32 %v449, 0.0
        %v458 = vmax.f32 %v450, 0.0
        %s459 = scalar_lea.vmem [#allocation2], 16
        %460 = vst [vmem:[%s459 + $0x1] sm:$0xff] %v451
        %461 = vst [vmem:[%s459 + $0x11] sm:$0xff] %v452
        %462 = vst [vmem:[%s459 + $0x21] sm:$0xff] %v453
        %463 = vst [vmem:[%s459 + $0x31] sm:$0xff] %v454
        %464 = vst [vmem:[%s459 + $0x41] sm:$0xff] %v455
        %465 = vst [vmem:[%s459 + $0x51] sm:$0xff] %v456
        %466 = vst [vmem:[%s459 + $0x61] sm:$0xff] %v457
        %467 = vst [vmem:[%s459 + $0x71] sm:$0xff] %v458
        %v468 = vld [vmem:[#allocation2] sm:$0xff]
        %v469 = vld [vmem:[#allocation2 + $0x8] sm:$0x1]
        %v470 = vld [vmem:[#allocation2 + $0x10] sm:$0xff]
        %v471 = vld [vmem:[#allocation2 + $0x18] sm:$0x1]
        %v472 = vld [vmem:[#allocation2 + $0x20] sm:$0xff]
        %v473 = vld [vmem:[#allocation2 + $0x28] sm:$0x1]
        %v474 = vld [vmem:[#allocation2 + $0x30] sm:$0xff]
        %v475 = vld [vmem:[#allocation2 + $0x38] sm:$0x1]
        %v476 = vld [vmem:[#allocation2 + $0x40] sm:$0xff]
        %v477 = vld [vmem:[#allocation2 + $0x48] sm:$0x1]
        %v478 = vld [vmem:[#allocation2 + $0x50] sm:$0xff]
        %v479 = vld [vmem:[#allocation2 + $0x58] sm:$0x1]
        %v480 = vld [vmem:[#allocation2 + $0x60] sm:$0xff]
        %v481 = vld [vmem:[#allocation2 + $0x68] sm:$0x1]
        %v482 = vld [vmem:[#allocation2 + $0x70] sm:$0xff]
        %v483 = vld [vmem:[#allocation2 + $0x78] sm:$0x1]
        %v484 = vld [vmem:[#allocation2 + $0x80] sm:$0xff]
        %v485 = vld [vmem:[#allocation2 + $0x88] sm:$0x1]
        %v486 = vld [vmem:[#allocation7] sm:$0xff]
        %v487 = vld [vmem:[#allocation7 + $0x8] sm:$0xff]
        %v488 = vld [vmem:[#allocation7 + $0x10] sm:$0xff]
        %v489 = vld [vmem:[#allocation7 + $0x18] sm:$0xff]
        %v490 = vld [vmem:[#allocation7 + $0x20] sm:$0xff]
        %v491 = vld [vmem:[#allocation7 + $0x28] sm:$0xff]
        %v492 = vld [vmem:[#allocation7 + $0x30] sm:$0xff]
        %v493 = vld [vmem:[#allocation7 + $0x38] sm:$0xff]
        %v494 = vld [vmem:[#allocation7 + $0x40] sm:$0xff]
        %v495 = vld [vmem:[#allocation7 + $0x48] sm:$0xff]
        %v496 = vld [vmem:[#allocation7 + $0x50] sm:$0xff]
        %v497 = vld [vmem:[#allocation7 + $0x58] sm:$0xff]
        %v498 = vld [vmem:[#allocation7 + $0x60] sm:$0xff]
        %v499 = vld [vmem:[#allocation7 + $0x68] sm:$0xff]
        %v500 = vld [vmem:[#allocation7 + $0x70] sm:$0xff]
        %v501 = vld [vmem:[#allocation7 + $0x78] sm:$0xff]
        %vm518 = vcmask 1046528
        %v519 = vrot.slane %v468, 1
        %v520 = vrot.slane %v469, 1
        %v521 = vsel %vm518, %v519, %v520
        %v522 = vrot.slane %v470, 1
        %v523 = vrot.slane %v471, 1
        %v524 = vsel %vm518, %v522, %v523
        %v525 = vrot.slane %v472, 1
        %v526 = vrot.slane %v473, 1
        %v527 = vsel %vm518, %v525, %v526
        %v528 = vrot.slane %v474, 1
        %v529 = vrot.slane %v475, 1
        %v530 = vsel %vm518, %v528, %v529
        %v531 = vrot.slane %v476, 1
        %v532 = vrot.slane %v477, 1
        %v533 = vsel %vm518, %v531, %v532
        %v534 = vrot.slane %v478, 1
        %v535 = vrot.slane %v479, 1
        %v536 = vsel %vm518, %v534, %v535
        %v537 = vrot.slane %v480, 1
        %v538 = vrot.slane %v481, 1
        %v539 = vsel %vm518, %v537, %v538
        %v540 = vrot.slane %v482, 1
        %v541 = vrot.slane %v483, 1
        %v542 = vsel %vm518, %v540, %v541
        %s551 = scalar_lea.vmem [#allocation7], 128
        %v552 = vld [vmem:[%s551] sm:$0xff]
        %v553 = vld [vmem:[%s551 + $0x8] sm:$0xff]
        %v554 = vld [vmem:[%s551 + $0x10] sm:$0xff]
        %v555 = vld [vmem:[%s551 + $0x18] sm:$0xff]
        %v556 = vld [vmem:[%s551 + $0x20] sm:$0xff]
        %v557 = vld [vmem:[%s551 + $0x28] sm:$0xff]
        %v558 = vld [vmem:[%s551 + $0x30] sm:$0xff]
        %v559 = vld [vmem:[%s551 + $0x38] sm:$0xff]
        %v560 = vld [vmem:[%s551 + $0x40] sm:$0xff]
        %v561 = vld [vmem:[%s551 + $0x48] sm:$0xff]
        %v562 = vld [vmem:[%s551 + $0x50] sm:$0xff]
        %v563 = vld [vmem:[%s551 + $0x58] sm:$0xff]
        %v564 = vld [vmem:[%s551 + $0x60] sm:$0xff]
        %v565 = vld [vmem:[%s551 + $0x68] sm:$0xff]
        %v566 = vld [vmem:[%s551 + $0x70] sm:$0xff]
        %v567 = vld [vmem:[%s551 + $0x78] sm:$0xff]
        %568 = vmatprep.subr.mxu0 0.0
        %569 = vmatpush1.msra.mxu0 %v552
        %570 = vmatprep.subr.mxu0 0.0
        %571 = vmatpush1.msra.mxu0 %v553
        %572 = vmatprep.subr.mxu0 0.0
        %573 = vmatpush1.msra.mxu0 %v554
        %574 = vmatprep.subr.mxu0 0.0
        %575 = vmatpush1.msra.mxu0 %v555
        %576 = vmatprep.subr.mxu0 0.0
        %577 = vmatpush1.msra.mxu0 %v556
        %578 = vmatprep.subr.mxu0 0.0
        %579 = vmatpush1.msra.mxu0 %v557
        %580 = vmatprep.subr.mxu0 0.0
        %581 = vmatpush1.msra.mxu0 %v558
        %582 = vmatprep.subr.mxu0 0.0
        %583 = vmatpush1.msra.mxu0 %v559
        %584 = vmatprep.subr.mxu0 0.0
        %585 = vmatpush1.msra.mxu0 %v560
        %586 = vmatprep.subr.mxu0 0.0
        %587 = vmatpush1.msra.mxu0 %v561
        %588 = vmatprep.subr.mxu0 0.0
        %589 = vmatpush1.msra.mxu0 %v562
        %590 = vmatprep.subr.mxu0 0.0
        %591 = vmatpush1.msra.mxu0 %v563
        %592 = vmatprep.subr.mxu0 0.0
        %593 = vmatpush1.msra.mxu0 %v564
        %594 = vmatprep.subr.mxu0 0.0
        %595 = vmatpush1.msra.mxu0 %v565
        %596 = vmatprep.subr.mxu0 0.0
        %597 = vmatpush1.msra.mxu0 %v566
        %598 = vmatprep.subr.mxu0 0.0
        %599 = vmatpush1.msra.mxu0 %v567
        %600 = vmatprep.subr.mxu0 0.0
        %601 = vmatpush1.msra.mxu0 0.0
        %602 = vmatprep.subr.mxu0 0.0
        %603 = vmatpush1.msra.mxu0 0.0
        %604 = vmatprep.subr.mxu0 0.0
        %605 = vmatpush1.msra.mxu0 0.0
        %606 = vmatprep.subr.mxu0 0.0
        %607 = vmatpush1.msra.mxu0 0.0
        %608 = vmatprep.subr.mxu0 0.0
        %609 = vmatpush1.msra.mxu0 0.0
        %610 = vmatprep.subr.mxu0 0.0
        %611 = vmatpush1.msra.mxu0 0.0
        %612 = vmatprep.subr.mxu0 0.0
        %613 = vmatpush1.msra.mxu0 0.0
        %614 = vmatprep.subr.mxu0 0.0
        %615 = vmatpush1.msra.mxu0 0.0
        %616 = vmatprep.subr.mxu0 0.0
        %617 = vmatpush1.msra.mxu0 0.0
        %618 = vmatprep.subr.mxu0 0.0
        %619 = vmatpush1.msra.mxu0 0.0
        %620 = vmatprep.subr.mxu0 0.0
        %621 = vmatpush1.msra.mxu0 0.0
        %622 = vmatprep.subr.mxu0 0.0
        %623 = vmatpush1.msra.mxu0 0.0
        %624 = vmatprep.subr.mxu0 0.0
        %625 = vmatpush1.msra.mxu0 0.0
        %626 = vmatprep.subr.mxu0 0.0
        %627 = vmatpush1.msra.mxu0 0.0
        %628 = vmatprep.subr.mxu0 0.0
        %629 = vmatpush1.msra.mxu0 0.0
        %630 = vmatprep.subr.mxu0 0.0
        %631 = vmatpush1.msra.mxu0 0.0
        %632 = vmatprep.mubr.f32.mxu0 0.0
        %633 = vmatmul.mubr.f32.gmra.mrb[0].mxu0 %v521
        %v634 = vpop.f32.mrb[0].mxu0
        %v635 = vadd.f32 0.0, %v634
        %v636 = vpop.f32.mrb[0].mxu0
        %637 = vmatprep.mubr.f32.mxu0 0.0
        %638 = vmatmul.mubr.f32.gmra.mrb[0].mxu0 %v524
        %v639 = vpop.f32.mrb[0].mxu0
        %v640 = vadd.f32 0.0, %v639
        %v641 = vpop.f32.mrb[0].mxu0
        %642 = vmatprep.mubr.f32.mxu0 0.0
        %643 = vmatmul.mubr.f32.gmra.mrb[0].mxu0 %v527
        %v644 = vpop.f32.mrb[0].mxu0
        %v645 = vadd.f32 0.0, %v644
        %v646 = vpop.f32.mrb[0].mxu0
        %647 = vmatprep.mubr.f32.mxu0 0.0
        %648 = vmatmul.mubr.f32.gmra.mrb[0].mxu0 %v530
        %v649 = vpop.f32.mrb[0].mxu0
        %v650 = vadd.f32 0.0, %v649
        %v651 = vpop.f32.mrb[0].mxu0
        %652 = vmatprep.mubr.f32.mxu0 0.0
        %653 = vmatmul.mubr.f32.gmra.mrb[0].mxu0 %v533
        %v654 = vpop.f32.mrb[0].mxu0
        %v655 = vadd.f32 0.0, %v654
        %v656 = vpop.f32.mrb[0].mxu0
        %657 = vmatprep.mubr.f32.mxu0 0.0
        %658 = vmatmul.mubr.f32.gmra.mrb[0].mxu0 %v536
        %v659 = vpop.f32.mrb[0].mxu0
        %v660 = vadd.f32 0.0, %v659
        %v661 = vpop.f32.mrb[0].mxu0
        %662 = vmatprep.mubr.f32.mxu0 0.0
        %663 = vmatmul.mubr.f32.gmra.mrb[0].mxu0 %v539
        %v664 = vpop.f32.mrb[0].mxu0
        %v665 = vadd.f32 0.0, %v664
        %v666 = vpop.f32.mrb[0].mxu0
        %667 = vmatprep.mubr.f32.mxu0 0.0
        %668 = vmatmul.mubr.f32.gmra.mrb[0].mxu0 %v542
        %v669 = vpop.f32.mrb[0].mxu0
        %v670 = vadd.f32 0.0, %v669
        %v671 = vpop.f32.mrb[0].mxu0
        %672 = vdwg.mxu0
        %673 = vmatprep.subr.mxu0 0.0
        %674 = vmatpush1.msra.mxu0 %v486
        %675 = vmatprep.subr.mxu0 0.0
        %676 = vmatpush1.msra.mxu0 %v487
        %677 = vmatprep.subr.mxu0 0.0
        %678 = vmatpush1.msra.mxu0 %v488
        %679 = vmatprep.subr.mxu0 0.0
        %680 = vmatpush1.msra.mxu0 %v489
        %681 = vmatprep.subr.mxu0 0.0
        %682 = vmatpush1.msra.mxu0 %v490
        %683 = vmatprep.subr.mxu0 0.0
        %684 = vmatpush1.msra.mxu0 %v491
        %685 = vmatprep.subr.mxu0 0.0
        %686 = vmatpush1.msra.mxu0 %v492
        %687 = vmatprep.subr.mxu0 0.0
        %688 = vmatpush1.msra.mxu0 %v493
        %689 = vmatprep.subr.mxu0 0.0
        %690 = vmatpush1.msra.mxu0 %v494
        %691 = vmatprep.subr.mxu0 0.0
        %692 = vmatpush1.msra.mxu0 %v495
        %693 = vmatprep.subr.mxu0 0.0
        %694 = vmatpush1.msra.mxu0 %v496
        %695 = vmatprep.subr.mxu0 0.0
        %696 = vmatpush1.msra.mxu0 %v497
        %697 = vmatprep.subr.mxu0 0.0
        %698 = vmatpush1.msra.mxu0 %v498
        %699 = vmatprep.subr.mxu0 0.0
        %700 = vmatpush1.msra.mxu0 %v499
        %701 = vmatprep.subr.mxu0 0.0
        %702 = vmatpush1.msra.mxu0 %v500
        %703 = vmatprep.subr.mxu0 0.0
        %704 = vmatpush1.msra.mxu0 %v501
        %705 = vmatprep.subr.mxu0 0.0
        %706 = vmatpush1.msra.mxu0 0.0
        %707 = vmatprep.subr.mxu0 0.0
        %708 = vmatpush1.msra.mxu0 0.0
        %709 = vmatprep.subr.mxu0 0.0
        %710 = vmatpush1.msra.mxu0 0.0
        %711 = vmatprep.subr.mxu0 0.0
        %712 = vmatpush1.msra.mxu0 0.0
        %713 = vmatprep.subr.mxu0 0.0
        %714 = vmatpush1.msra.mxu0 0.0
        %715 = vmatprep.subr.mxu0 0.0
        %716 = vmatpush1.msra.mxu0 0.0
        %717 = vmatprep.subr.mxu0 0.0
        %718 = vmatpush1.msra.mxu0 0.0
        %719 = vmatprep.subr.mxu0 0.0
        %720 = vmatpush1.msra.mxu0 0.0
        %721 = vmatprep.subr.mxu0 0.0
        %722 = vmatpush1.msra.mxu0 0.0
        %723 = vmatprep.subr.mxu0 0.0
        %724 = vmatpush1.msra.mxu0 0.0
        %725 = vmatprep.subr.mxu0 0.0
        %726 = vmatpush1.msra.mxu0 0.0
        %727 = vmatprep.subr.mxu0 0.0
        %728 = vmatpush1.msra.mxu0 0.0
        %729 = vmatprep.subr.mxu0 0.0
        %730 = vmatpush1.msra.mxu0 0.0
        %731 = vmatprep.subr.mxu0 0.0
        %732 = vmatpush1.msra.mxu0 0.0
        %733 = vmatprep.subr.mxu0 0.0
        %734 = vmatpush1.msra.mxu0 0.0
        %735 = vmatprep.subr.mxu0 0.0
        %736 = vmatpush1.msra.mxu0 0.0
        %737 = vmatprep.mubr.f32.mxu0 0.0
        %738 = vmatmul.mubr.f32.gmra.mrb[0].mxu0 %v468
        %v739 = vpop.f32.mrb[0].mxu0
        %v740 = vadd.f32 %v635, %v739
        %v741 = vpop.f32.mrb[0].mxu0
        %742 = vmatprep.mubr.f32.mxu0 0.0
        %743 = vmatmul.mubr.f32.gmra.mrb[0].mxu0 %v470
        %v744 = vpop.f32.mrb[0].mxu0
        %v745 = vadd.f32 %v640, %v744
        %v746 = vpop.f32.mrb[0].mxu0
        %747 = vmatprep.mubr.f32.mxu0 0.0
        %748 = vmatmul.mubr.f32.gmra.mrb[0].mxu0 %v472
        %v749 = vpop.f32.mrb[0].mxu0
        %v750 = vadd.f32 %v645, %v749
        %v751 = vpop.f32.mrb[0].mxu0
        %752 = vmatprep.mubr.f32.mxu0 0.0
        %753 = vmatmul.mubr.f32.gmra.mrb[0].mxu0 %v474
        %v754 = vpop.f32.mrb[0].mxu0
        %v755 = vadd.f32 %v650, %v754
        %v756 = vpop.f32.mrb[0].mxu0
        %757 = vmatprep.mubr.f32.mxu0 0.0
        %758 = vmatmul.mubr.f32.gmra.mrb[0].mxu0 %v476
        %v759 = vpop.f32.mrb[0].mxu0
        %v760 = vadd.f32 %v655, %v759
        %v761 = vpop.f32.mrb[0].mxu0
        %762 = vmatprep.mubr.f32.mxu0 0.0
        %763 = vmatmul.mubr.f32.gmra.mrb[0].mxu0 %v478
        %v764 = vpop.f32.mrb[0].mxu0
        %v765 = vadd.f32 %v660, %v764
        %v766 = vpop.f32.mrb[0].mxu0
        %767 = vmatprep.mubr.f32.mxu0 0.0
        %768 = vmatmul.mubr.f32.gmra.mrb[0].mxu0 %v480
        %v769 = vpop.f32.mrb[0].mxu0
        %v770 = vadd.f32 %v665, %v769
        %v771 = vpop.f32.mrb[0].mxu0
        %772 = vmatprep.mubr.f32.mxu0 0.0
        %773 = vmatmul.mubr.f32.gmra.mrb[0].mxu0 %v482
        %v774 = vpop.f32.mrb[0].mxu0
        %v775 = vadd.f32 %v670, %v774
        %v776 = vpop.f32.mrb[0].mxu0
        %777 = vdwg.mxu0
        %s778 = scalar_lea.vmem [#allocation7], 256
        %v779 = vld [vmem:[%s778] sm:$0xff]
        %v780 = vld [vmem:[%s778 + $0x8] sm:$0xff]
        %v781 = vld [vmem:[%s778 + $0x10] sm:$0xff]
        %v782 = vld [vmem:[%s778 + $0x18] sm:$0xff]
        %v783 = vld [vmem:[%s778 + $0x20] sm:$0xff]
        %v784 = vld [vmem:[%s778 + $0x28] sm:$0xff]
        %v785 = vld [vmem:[%s778 + $0x30] sm:$0xff]
        %v786 = vld [vmem:[%s778 + $0x38] sm:$0xff]
        %v787 = vld [vmem:[%s778 + $0x40] sm:$0xff]
        %v788 = vld [vmem:[%s778 + $0x48] sm:$0xff]
        %v789 = vld [vmem:[%s778 + $0x50] sm:$0xff]
        %v790 = vld [vmem:[%s778 + $0x58] sm:$0xff]
        %v791 = vld [vmem:[%s778 + $0x60] sm:$0xff]
        %v792 = vld [vmem:[%s778 + $0x68] sm:$0xff]
        %v793 = vld [vmem:[%s778 + $0x70] sm:$0xff]
        %v794 = vld [vmem:[%s778 + $0x78] sm:$0xff]
        %795 = vmatprep.subr.mxu0 0.0
        %796 = vmatpush1.msra.mxu0 %v779
        %797 = vmatprep.subr.mxu0 0.0
        %798 = vmatpush1.msra.mxu0 %v780
        %799 = vmatprep.subr.mxu0 0.0
        %800 = vmatpush1.msra.mxu0 %v781
        %801 = vmatprep.subr.mxu0 0.0
        %802 = vmatpush1.msra.mxu0 %v782
        %803 = vmatprep.subr.mxu0 0.0
        %804 = vmatpush1.msra.mxu0 %v783
        %805 = vmatprep.subr.mxu0 0.0
        %806 = vmatpush1.msra.mxu0 %v784
        %807 = vmatprep.subr.mxu0 0.0
        %808 = vmatpush1.msra.mxu0 %v785
        %809 = vmatprep.subr.mxu0 0.0
        %810 = vmatpush1.msra.mxu0 %v786
        %811 = vmatprep.subr.mxu0 0.0
        %812 = vmatpush1.msra.mxu0 %v787
        %813 = vmatprep.subr.mxu0 0.0
        %814 = vmatpush1.msra.mxu0 %v788
        %815 = vmatprep.subr.mxu0 0.0
        %816 = vmatpush1.msra.mxu0 %v789
        %817 = vmatprep.subr.mxu0 0.0
        %818 = vmatpush1.msra.mxu0 %v790
        %819 = vmatprep.subr.mxu0 0.0
        %820 = vmatpush1.msra.mxu0 %v791
        %821 = vmatprep.subr.mxu0 0.0
        %822 = vmatpush1.msra.mxu0 %v792
        %823 = vmatprep.subr.mxu0 0.0
        %824 = vmatpush1.msra.mxu0 %v793
        %825 = vmatprep.subr.mxu0 0.0
        %826 = vmatpush1.msra.mxu0 %v794
        %827 = vmatprep.subr.mxu0 0.0
        %828 = vmatpush1.msra.mxu0 0.0
        %829 = vmatprep.subr.mxu0 0.0
        %830 = vmatpush1.msra.mxu0 0.0
        %831 = vmatprep.subr.mxu0 0.0
        %832 = vmatpush1.msra.mxu0 0.0
        %833 = vmatprep.subr.mxu0 0.0
        %834 = vmatpush1.msra.mxu0 0.0
        %835 = vmatprep.subr.mxu0 0.0
        %836 = vmatpush1.msra.mxu0 0.0
        %837 = vmatprep.subr.mxu0 0.0
        %838 = vmatpush1.msra.mxu0 0.0
        %839 = vmatprep.subr.mxu0 0.0
        %840 = vmatpush1.msra.mxu0 0.0
        %841 = vmatprep.subr.mxu0 0.0
        %842 = vmatpush1.msra.mxu0 0.0
        %843 = vmatprep.subr.mxu0 0.0
        %844 = vmatpush1.msra.mxu0 0.0
        %845 = vmatprep.subr.mxu0 0.0
        %846 = vmatpush1.msra.mxu0 0.0
        %847 = vmatprep.subr.mxu0 0.0
        %848 = vmatpush1.msra.mxu0 0.0
        %849 = vmatprep.subr.mxu0 0.0
        %850 = vmatpush1.msra.mxu0 0.0
        %851 = vmatprep.subr.mxu0 0.0
        %852 = vmatpush1.msra.mxu0 0.0
        %853 = vmatprep.subr.mxu0 0.0
        %854 = vmatpush1.msra.mxu0 0.0
        %855 = vmatprep.subr.mxu0 0.0
        %856 = vmatpush1.msra.mxu0 0.0
        %857 = vmatprep.subr.mxu0 0.0
        %858 = vmatpush1.msra.mxu0 0.0
        %859 = vmatprep.mubr.f32.mxu0 0.0
        %860 = vmatmul.mubr.f32.gmra.mrb[0].mxu0 %v470
        %v861 = vpop.f32.mrb[0].mxu0
        %v862 = vadd.f32 0.0, %v861
        %v863 = vpop.f32.mrb[0].mxu0
        %864 = vmatprep.mubr.f32.mxu0 0.0
        %865 = vmatmul.mubr.f32.gmra.mrb[0].mxu0 %v472
        %v866 = vpop.f32.mrb[0].mxu0
        %v867 = vadd.f32 0.0, %v866
        %v868 = vpop.f32.mrb[0].mxu0
        %869 = vmatprep.mubr.f32.mxu0 0.0
        %870 = vmatmul.mubr.f32.gmra.mrb[0].mxu0 %v474
        %v871 = vpop.f32.mrb[0].mxu0
        %v872 = vadd.f32 0.0, %v871
        %v873 = vpop.f32.mrb[0].mxu0
        %874 = vmatprep.mubr.f32.mxu0 0.0
        %875 = vmatmul.mubr.f32.gmra.mrb[0].mxu0 %v476
        %v876 = vpop.f32.mrb[0].mxu0
        %v877 = vadd.f32 0.0, %v876
        %v878 = vpop.f32.mrb[0].mxu0
        %879 = vmatprep.mubr.f32.mxu0 0.0
        %880 = vmatmul.mubr.f32.gmra.mrb[0].mxu0 %v478
        %v881 = vpop.f32.mrb[0].mxu0
        %v882 = vadd.f32 0.0, %v881
        %v883 = vpop.f32.mrb[0].mxu0
        %884 = vmatprep.mubr.f32.mxu0 0.0
        %885 = vmatmul.mubr.f32.gmra.mrb[0].mxu0 %v480
        %v886 = vpop.f32.mrb[0].mxu0
        %v887 = vadd.f32 0.0, %v886
        %v888 = vpop.f32.mrb[0].mxu0
        %889 = vmatprep.mubr.f32.mxu0 0.0
        %890 = vmatmul.mubr.f32.gmra.mrb[0].mxu0 %v482
        %v891 = vpop.f32.mrb[0].mxu0
        %v892 = vadd.f32 0.0, %v891
        %v893 = vpop.f32.mrb[0].mxu0
        %894 = vmatprep.mubr.f32.mxu0 0.0
        %895 = vmatmul.mubr.f32.gmra.mrb[0].mxu0 %v484
        %v896 = vpop.f32.mrb[0].mxu0
        %v897 = vadd.f32 0.0, %v896
        %v898 = vpop.f32.mrb[0].mxu0
        %899 = vdwg.mxu0
        %v900 = vadd.f32 %v740, %v862
        %v901 = vadd.f32 %v745, %v867
        %v902 = vadd.f32 %v750, %v872
        %v903 = vadd.f32 %v755, %v877
        %v904 = vadd.f32 %v760, %v882
        %v905 = vadd.f32 %v765, %v887
        %v906 = vadd.f32 %v770, %v892
        %v907 = vadd.f32 %v775, %v897
        %v910 = vrot.slane %v484, 1
        %v911 = vrot.slane %v485, 1
        %v912 = vsel %vm518, %v910, %v911
        %s914 = scalar_lea.vmem [#allocation7], 384
        %v915 = vld [vmem:[%s914] sm:$0xff]
        %v916 = vld [vmem:[%s914 + $0x8] sm:$0xff]
        %v917 = vld [vmem:[%s914 + $0x10] sm:$0xff]
        %v918 = vld [vmem:[%s914 + $0x18] sm:$0xff]
        %v919 = vld [vmem:[%s914 + $0x20] sm:$0xff]
        %v920 = vld [vmem:[%s914 + $0x28] sm:$0xff]
        %v921 = vld [vmem:[%s914 + $0x30] sm:$0xff]
        %v922 = vld [vmem:[%s914 + $0x38] sm:$0xff]
        %v923 = vld [vmem:[%s914 + $0x40] sm:$0xff]
        %v924 = vld [vmem:[%s914 + $0x48] sm:$0xff]
        %v925 = vld [vmem:[%s914 + $0x50] sm:$0xff]
        %v926 = vld [vmem:[%s914 + $0x58] sm:$0xff]
        %v927 = vld [vmem:[%s914 + $0x60] sm:$0xff]
        %v928 = vld [vmem:[%s914 + $0x68] sm:$0xff]
        %v929 = vld [vmem:[%s914 + $0x70] sm:$0xff]
        %v930 = vld [vmem:[%s914 + $0x78] sm:$0xff]
        %931 = vmatprep.subr.mxu0 0.0
        %932 = vmatpush1.msra.mxu0 %v915
        %933 = vmatprep.subr.mxu0 0.0
        %934 = vmatpush1.msra.mxu0 %v916
        %935 = vmatprep.subr.mxu0 0.0
        %936 = vmatpush1.msra.mxu0 %v917
        %937 = vmatprep.subr.mxu0 0.0
        %938 = vmatpush1.msra.mxu0 %v918
        %939 = vmatprep.subr.mxu0 0.0
        %940 = vmatpush1.msra.mxu0 %v919
        %941 = vmatprep.subr.mxu0 0.0
        %942 = vmatpush1.msra.mxu0 %v920
        %943 = vmatprep.subr.mxu0 0.0
        %944 = vmatpush1.msra.mxu0 %v921
        %945 = vmatprep.subr.mxu0 0.0
        %946 = vmatpush1.msra.mxu0 %v922
        %947 = vmatprep.subr.mxu0 0.0
        %948 = vmatpush1.msra.mxu0 %v923
        %949 = vmatprep.subr.mxu0 0.0
        %950 = vmatpush1.msra.mxu0 %v924
        %951 = vmatprep.subr.mxu0 0.0
        %952 = vmatpush1.msra.mxu0 %v925
        %953 = vmatprep.subr.mxu0 0.0
        %954 = vmatpush1.msra.mxu0 %v926
        %955 = vmatprep.subr.mxu0 0.0
        %956 = vmatpush1.msra.mxu0 %v927
        %957 = vmatprep.subr.mxu0 0.0
        %958 = vmatpush1.msra.mxu0 %v928
        %959 = vmatprep.subr.mxu0 0.0
        %960 = vmatpush1.msra.mxu0 %v929
        %961 = vmatprep.subr.mxu0 0.0
        %962 = vmatpush1.msra.mxu0 %v930
        %963 = vmatprep.subr.mxu0 0.0
        %964 = vmatpush1.msra.mxu0 0.0
        %965 = vmatprep.subr.mxu0 0.0
        %966 = vmatpush1.msra.mxu0 0.0
        %967 = vmatprep.subr.mxu0 0.0
        %968 = vmatpush1.msra.mxu0 0.0
        %969 = vmatprep.subr.mxu0 0.0
        %970 = vmatpush1.msra.mxu0 0.0
        %971 = vmatprep.subr.mxu0 0.0
        %972 = vmatpush1.msra.mxu0 0.0
        %973 = vmatprep.subr.mxu0 0.0
        %974 = vmatpush1.msra.mxu0 0.0
        %975 = vmatprep.subr.mxu0 0.0
        %976 = vmatpush1.msra.mxu0 0.0
        %977 = vmatprep.subr.mxu0 0.0
        %978 = vmatpush1.msra.mxu0 0.0
        %979 = vmatprep.subr.mxu0 0.0
        %980 = vmatpush1.msra.mxu0 0.0
        %981 = vmatprep.subr.mxu0 0.0
        %982 = vmatpush1.msra.mxu0 0.0
        %983 = vmatprep.subr.mxu0 0.0
        %984 = vmatpush1.msra.mxu0 0.0
        %985 = vmatprep.subr.mxu0 0.0
        %986 = vmatpush1.msra.mxu0 0.0
        %987 = vmatprep.subr.mxu0 0.0
        %988 = vmatpush1.msra.mxu0 0.0
        %989 = vmatprep.subr.mxu0 0.0
        %990 = vmatpush1.msra.mxu0 0.0
        %991 = vmatprep.subr.mxu0 0.0
        %992 = vmatpush1.msra.mxu0 0.0
        %993 = vmatprep.subr.mxu0 0.0
        %994 = vmatpush1.msra.mxu0 0.0
        %995 = vmatprep.mubr.f32.mxu0 0.0
        %996 = vmatmul.mubr.f32.gmra.mrb[0].mxu0 %v524
        %v997 = vpop.f32.mrb[0].mxu0
        %v998 = vadd.f32 0.0, %v997
        %v999 = vpop.f32.mrb[0].mxu0
        %1000 = vmatprep.mubr.f32.mxu0 0.0
        %1001 = vmatmul.mubr.f32.gmra.mrb[0].mxu0 %v527
        %v1002 = vpop.f32.mrb[0].mxu0
        %v1003 = vadd.f32 0.0, %v1002
        %v1004 = vpop.f32.mrb[0].mxu0
        %1005 = vmatprep.mubr.f32.mxu0 0.0
        %1006 = vmatmul.mubr.f32.gmra.mrb[0].mxu0 %v530
        %v1007 = vpop.f32.mrb[0].mxu0
        %v1008 = vadd.f32 0.0, %v1007
        %v1009 = vpop.f32.mrb[0].mxu0
        %1010 = vmatprep.mubr.f32.mxu0 0.0
        %1011 = vmatmul.mubr.f32.gmra.mrb[0].mxu0 %v533
        %v1012 = vpop.f32.mrb[0].mxu0
        %v1013 = vadd.f32 0.0, %v1012
        %v1014 = vpop.f32.mrb[0].mxu0
        %1015 = vmatprep.mubr.f32.mxu0 0.0
        %1016 = vmatmul.mubr.f32.gmra.mrb[0].mxu0 %v536
        %v1017 = vpop.f32.mrb[0].mxu0
        %v1018 = vadd.f32 0.0, %v1017
        %v1019 = vpop.f32.mrb[0].mxu0
        %1020 = vmatprep.mubr.f32.mxu0 0.0
        %1021 = vmatmul.mubr.f32.gmra.mrb[0].mxu0 %v539
        %v1022 = vpop.f32.mrb[0].mxu0
        %v1023 = vadd.f32 0.0, %v1022
        %v1024 = vpop.f32.mrb[0].mxu0
        %1025 = vmatprep.mubr.f32.mxu0 0.0
        %1026 = vmatmul.mubr.f32.gmra.mrb[0].mxu0 %v542
        %v1027 = vpop.f32.mrb[0].mxu0
        %v1028 = vadd.f32 0.0, %v1027
        %v1029 = vpop.f32.mrb[0].mxu0
        %1030 = vmatprep.mubr.f32.mxu0 0.0
        %1031 = vmatmul.mubr.f32.gmra.mrb[0].mxu0 %v912
        %v1032 = vpop.f32.mrb[0].mxu0
        %v1033 = vadd.f32 0.0, %v1032
        %v1034 = vpop.f32.mrb[0].mxu0
        %1035 = vdwg.mxu0
        %v1036 = vadd.f32 %v900, %v998
        %v1037 = vadd.f32 %v901, %v1003
        %v1038 = vadd.f32 %v902, %v1008
        %v1039 = vadd.f32 %v903, %v1013
        %v1040 = vadd.f32 %v904, %v1018
        %v1041 = vadd.f32 %v905, %v1023
        %v1042 = vadd.f32 %v906, %v1028
        %v1043 = vadd.f32 %v907, %v1033
        %1044 = vst [vmem:[#allocation3] sm:$0xff] 0.0
        %1045 = vst [vmem:[#allocation3 + $0x8] sm:$0x3] 0.0
        %1046 = vst [vmem:[#allocation3 + $0x10] sm:$0xff] 0.0
        %1047 = vst [vmem:[#allocation3 + $0x18] sm:$0x3] 0.0
        %1048 = vst [vmem:[#allocation3 + $0x20] sm:$0xff] 0.0
        %1049 = vst [vmem:[#allocation3 + $0x28] sm:$0x3] 0.0
        %1050 = vst [vmem:[#allocation3 + $0x30] sm:$0xff] 0.0
        %1051 = vst [vmem:[#allocation3 + $0x38] sm:$0x3] 0.0
        %1052 = vst [vmem:[#allocation3 + $0x40] sm:$0xff] 0.0
        %1053 = vst [vmem:[#allocation3 + $0x48] sm:$0x3] 0.0
        %1054 = vst [vmem:[#allocation3 + $0x50] sm:$0xff] 0.0
        %1055 = vst [vmem:[#allocation3 + $0x58] sm:$0x3] 0.0
        %1056 = vst [vmem:[#allocation3 + $0x60] sm:$0xff] 0.0
        %1057 = vst [vmem:[#allocation3 + $0x68] sm:$0x3] 0.0
        %1058 = vst [vmem:[#allocation3 + $0x70] sm:$0xff] 0.0
        %1059 = vst [vmem:[#allocation3 + $0x78] sm:$0x3] 0.0
        %1060 = vst [vmem:[#allocation3 + $0x80] sm:$0xff] 0.0
        %1061 = vst [vmem:[#allocation3 + $0x88] sm:$0x3] 0.0
        %1062 = vst [vmem:[#allocation3 + $0x90] sm:$0xff] 0.0
        %1063 = vst [vmem:[#allocation3 + $0x98] sm:$0x3] 0.0
        %v1064 = vld [vmem:[%s4] sm:$0x1]
        %v1066 = vlaneseq
        %v1067 = vshrl.u32 %v1066, 7
        %v1068 = vsub.s32 0, %v1067
        %v1069 = vrot.slane %v1064, %v1068
        %v1071 = vmul.f32 %v1036, %v1069
        %v1072 = vmul.f32 %v1037, %v1069
        %v1073 = vmul.f32 %v1038, %v1069
        %v1074 = vmul.f32 %v1039, %v1069
        %v1075 = vmul.f32 %v1040, %v1069
        %v1076 = vmul.f32 %v1041, %v1069
        %v1077 = vmul.f32 %v1042, %v1069
        %v1078 = vmul.f32 %v1043, %v1069
        %v1079 = vld [vmem:[%s5] sm:$0x1]
        %v1081 = vlaneseq
        %v1082 = vshrl.u32 %v1081, 7
        %v1083 = vsub.s32 0, %v1082
        %v1084 = vrot.slane %v1079, %v1083
        %v1086 = vadd.f32 %v1071, %v1084
        %v1087 = vadd.f32 %v1072, %v1084
        %v1088 = vadd.f32 %v1073, %v1084
        %v1089 = vadd.f32 %v1074, %v1084
        %v1090 = vadd.f32 %v1075, %v1084
        %v1091 = vadd.f32 %v1076, %v1084
        %v1092 = vadd.f32 %v1077, %v1084
        %v1093 = vadd.f32 %v1078, %v1084
        %v1094 = vmax.f32 %v1086, 0.0
        %v1095 = vmax.f32 %v1087, 0.0
        %v1096 = vmax.f32 %v1088, 0.0
        %v1097 = vmax.f32 %v1089, 0.0
        %v1098 = vmax.f32 %v1090, 0.0
        %v1099 = vmax.f32 %v1091, 0.0
        %v1100 = vmax.f32 %v1092, 0.0
        %v1101 = vmax.f32 %v1093, 0.0
        %s1102 = scalar_lea.vmem [#allocation3], 16
        %1103 = vst [vmem:[%s1102 + $0x1] sm:$0xff] %v1094
        %1104 = vst [vmem:[%s1102 + $0x11] sm:$0xff] %v1095
        %1105 = vst [vmem:[%s1102 + $0x21] sm:$0xff] %v1096
        %1106 = vst [vmem:[%s1102 + $0x31] sm:$0xff] %v1097
        %1107 = vst [vmem:[%s1102 + $0x41] sm:$0xff] %v1098
        %1108 = vst [vmem:[%s1102 + $0x51] sm:$0xff] %v1099
        %1109 = vst [vmem:[%s1102 + $0x61] sm:$0xff] %v1100
        %1110 = vst [vmem:[%s1102 + $0x71] sm:$0xff] %v1101
        %v1111 = vld [vmem:[#allocation10] sm:$0xff]
        %v1112 = vld [vmem:[#allocation10 + $0x8] sm:$0xff]
        %v1113 = vld [vmem:[#allocation10 + $0x10] sm:$0xff]
        %v1114 = vld [vmem:[#allocation10 + $0x18] sm:$0xff]
        %v1115 = vld [vmem:[#allocation10 + $0x20] sm:$0xff]
        %v1116 = vld [vmem:[#allocation10 + $0x28] sm:$0xff]
        %v1117 = vld [vmem:[#allocation10 + $0x30] sm:$0xff]
        %v1118 = vld [vmem:[#allocation10 + $0x38] sm:$0xff]
        %v1119 = vld [vmem:[#allocation10 + $0x40] sm:$0xff]
        %v1120 = vld [vmem:[#allocation10 + $0x48] sm:$0xff]
        %v1121 = vld [vmem:[#allocation10 + $0x50] sm:$0xff]
        %v1122 = vld [vmem:[#allocation10 + $0x58] sm:$0xff]
        %v1123 = vld [vmem:[#allocation10 + $0x60] sm:$0xff]
        %v1124 = vld [vmem:[#allocation10 + $0x68] sm:$0xff]
        %v1125 = vld [vmem:[#allocation10 + $0x70] sm:$0xff]
        %v1126 = vld [vmem:[#allocation10 + $0x78] sm:$0xff]
        %v1127 = vld [vmem:[%s8] sm:$0x1]
        %v1129 = vlaneseq
        %v1130 = vshrl.u32 %v1129, 7
        %v1131 = vsub.s32 0, %v1130
        %v1132 = vrot.slane %v1127, %v1131
        %1134 = vmatprep.subr.mxu0 0.0
        %1135 = vmatpush1.msra.mxu0 %v1111
        %1136 = vmatprep.subr.mxu0 0.0
        %1137 = vmatpush1.msra.mxu0 %v1112
        %1138 = vmatprep.subr.mxu0 0.0
        %1139 = vmatpush1.msra.mxu0 %v1113
        %1140 = vmatprep.subr.mxu0 0.0
        %1141 = vmatpush1.msra.mxu0 %v1114
        %1142 = vmatprep.subr.mxu0 0.0
        %1143 = vmatpush1.msra.mxu0 %v1115
        %1144 = vmatprep.subr.mxu0 0.0
        %1145 = vmatpush1.msra.mxu0 %v1116
        %1146 = vmatprep.subr.mxu0 0.0
        %1147 = vmatpush1.msra.mxu0 %v1117
        %1148 = vmatprep.subr.mxu0 0.0
        %1149 = vmatpush1.msra.mxu0 %v1118
        %1150 = vmatprep.subr.mxu0 0.0
        %1151 = vmatpush1.msra.mxu0 %v1119
        %1152 = vmatprep.subr.mxu0 0.0
        %1153 = vmatpush1.msra.mxu0 %v1120
        %1154 = vmatprep.subr.mxu0 0.0
        %1155 = vmatpush1.msra.mxu0 %v1121
        %1156 = vmatprep.subr.mxu0 0.0
        %1157 = vmatpush1.msra.mxu0 %v1122
        %1158 = vmatprep.subr.mxu0 0.0
        %1159 = vmatpush1.msra.mxu0 %v1123
        %1160 = vmatprep.subr.mxu0 0.0
        %1161 = vmatpush1.msra.mxu0 %v1124
        %1162 = vmatprep.subr.mxu0 0.0
        %1163 = vmatpush1.msra.mxu0 %v1125
        %1164 = vmatprep.subr.mxu0 0.0
        %1165 = vmatpush1.msra.mxu0 %v1126
        %1166 = vmatprep.subr.mxu0 0.0
        %1167 = vmatpush1.msra.mxu0 0.0
        %1168 = vmatprep.subr.mxu0 0.0
        %1169 = vmatpush1.msra.mxu0 0.0
        %1170 = vmatprep.subr.mxu0 0.0
        %1171 = vmatpush1.msra.mxu0 0.0
        %1172 = vmatprep.subr.mxu0 0.0
        %1173 = vmatpush1.msra.mxu0 0.0
        %1174 = vmatprep.subr.mxu0 0.0
        %1175 = vmatpush1.msra.mxu0 0.0
        %1176 = vmatprep.subr.mxu0 0.0
        %1177 = vmatpush1.msra.mxu0 0.0
        %1178 = vmatprep.subr.mxu0 0.0
        %1179 = vmatpush1.msra.mxu0 0.0
        %1180 = vmatprep.subr.mxu0 0.0
        %1181 = vmatpush1.msra.mxu0 0.0
        %1182 = vmatprep.subr.mxu0 0.0
        %1183 = vmatpush1.msra.mxu0 0.0
        %1184 = vmatprep.subr.mxu0 0.0
        %1185 = vmatpush1.msra.mxu0 0.0
        %1186 = vmatprep.subr.mxu0 0.0
        %1187 = vmatpush1.msra.mxu0 0.0
        %1188 = vmatprep.subr.mxu0 0.0
        %1189 = vmatpush1.msra.mxu0 0.0
        %1190 = vmatprep.subr.mxu0 0.0
        %1191 = vmatpush1.msra.mxu0 0.0
        %1192 = vmatprep.subr.mxu0 0.0
        %1193 = vmatpush1.msra.mxu0 0.0
        %1194 = vmatprep.subr.mxu0 0.0
        %1195 = vmatpush1.msra.mxu0 0.0
        %1196 = vmatprep.subr.mxu0 0.0
        %1197 = vmatpush1.msra.mxu0 0.0
        %1198 = vmatprep.mubr.f32.mxu0 0.0
        %1199 = vmatmul.mubr.f32.gmra.mrb[0].mxu0 %v395
        %v1200 = vpop.f32.mrb[0].mxu0
        %v1201 = vadd.f32 %v1132, %v1200
        %v1202 = vpop.f32.mrb[0].mxu0
        %1203 = vmatprep.mubr.f32.mxu0 0.0
        %1204 = vmatmul.mubr.f32.gmra.mrb[0].mxu0 %v396
        %v1205 = vpop.f32.mrb[0].mxu0
        %v1206 = vadd.f32 %v1132, %v1205
        %v1207 = vpop.f32.mrb[0].mxu0
        %1208 = vmatprep.mubr.f32.mxu0 0.0
        %1209 = vmatmul.mubr.f32.gmra.mrb[0].mxu0 %v397
        %v1210 = vpop.f32.mrb[0].mxu0
        %v1211 = vadd.f32 %v1132, %v1210
        %v1212 = vpop.f32.mrb[0].mxu0
        %1213 = vmatprep.mubr.f32.mxu0 0.0
        %1214 = vmatmul.mubr.f32.gmra.mrb[0].mxu0 %v398
        %v1215 = vpop.f32.mrb[0].mxu0
        %v1216 = vadd.f32 %v1132, %v1215
        %v1217 = vpop.f32.mrb[0].mxu0
        %1218 = vmatprep.mubr.f32.mxu0 0.0
        %1219 = vmatmul.mubr.f32.gmra.mrb[0].mxu0 %v399
        %v1220 = vpop.f32.mrb[0].mxu0
        %v1221 = vadd.f32 %v1132, %v1220
        %v1222 = vpop.f32.mrb[0].mxu0
        %1223 = vmatprep.mubr.f32.mxu0 0.0
        %1224 = vmatmul.mubr.f32.gmra.mrb[0].mxu0 %v400
        %v1225 = vpop.f32.mrb[0].mxu0
        %v1226 = vadd.f32 %v1132, %v1225
        %v1227 = vpop.f32.mrb[0].mxu0
        %1228 = vmatprep.mubr.f32.mxu0 0.0
        %1229 = vmatmul.mubr.f32.gmra.mrb[0].mxu0 %v401
        %v1230 = vpop.f32.mrb[0].mxu0
        %v1231 = vadd.f32 %v1132, %v1230
        %v1232 = vpop.f32.mrb[0].mxu0
        %1233 = vmatprep.mubr.f32.mxu0 0.0
        %1234 = vmatmul.mubr.f32.gmra.mrb[0].mxu0 %v402
        %v1235 = vpop.f32.mrb[0].mxu0
        %v1236 = vadd.f32 %v1132, %v1235
        %v1237 = vpop.f32.mrb[0].mxu0
        %1238 = vdwg.mxu0
        %v1239 = vld [vmem:[#allocation3] sm:$0xff]
        %v1240 = vld [vmem:[#allocation3 + $0x8] sm:$0x3]
        %v1241 = vld [vmem:[#allocation3 + $0x10] sm:$0xff]
        %v1242 = vld [vmem:[#allocation3 + $0x18] sm:$0x3]
        %v1243 = vld [vmem:[#allocation3 + $0x20] sm:$0xff]
        %v1244 = vld [vmem:[#allocation3 + $0x28] sm:$0x3]
        %v1245 = vld [vmem:[#allocation3 + $0x30] sm:$0xff]
        %v1246 = vld [vmem:[#allocation3 + $0x38] sm:$0x3]
        %v1247 = vld [vmem:[#allocation3 + $0x40] sm:$0xff]
        %v1248 = vld [vmem:[#allocation3 + $0x48] sm:$0x3]
        %v1249 = vld [vmem:[#allocation3 + $0x50] sm:$0xff]
        %v1250 = vld [vmem:[#allocation3 + $0x58] sm:$0x3]
        %v1251 = vld [vmem:[#allocation3 + $0x60] sm:$0xff]
        %v1252 = vld [vmem:[#allocation3 + $0x68] sm:$0x3]
        %v1253 = vld [vmem:[#allocation3 + $0x70] sm:$0xff]
        %v1254 = vld [vmem:[#allocation3 + $0x78] sm:$0x3]
        %v1255 = vld [vmem:[#allocation3 + $0x80] sm:$0xff]
        %v1256 = vld [vmem:[#allocation3 + $0x88] sm:$0x3]
        %v1257 = vld [vmem:[#allocation3 + $0x90] sm:$0xff]
        %v1258 = vld [vmem:[#allocation3 + $0x98] sm:$0x3]
        %v1259 = vld [vmem:[#allocation9] sm:$0xff]
        %v1260 = vld [vmem:[#allocation9 + $0x8] sm:$0xff]
        %v1261 = vld [vmem:[#allocation9 + $0x10] sm:$0xff]
        %v1262 = vld [vmem:[#allocation9 + $0x18] sm:$0xff]
        %v1263 = vld [vmem:[#allocation9 + $0x20] sm:$0xff]
        %v1264 = vld [vmem:[#allocation9 + $0x28] sm:$0xff]
        %v1265 = vld [vmem:[#allocation9 + $0x30] sm:$0xff]
        %v1266 = vld [vmem:[#allocation9 + $0x38] sm:$0xff]
        %v1267 = vld [vmem:[#allocation9 + $0x40] sm:$0xff]
        %v1268 = vld [vmem:[#allocation9 + $0x48] sm:$0xff]
        %v1269 = vld [vmem:[#allocation9 + $0x50] sm:$0xff]
        %v1270 = vld [vmem:[#allocation9 + $0x58] sm:$0xff]
        %v1271 = vld [vmem:[#allocation9 + $0x60] sm:$0xff]
        %v1272 = vld [vmem:[#allocation9 + $0x68] sm:$0xff]
        %v1273 = vld [vmem:[#allocation9 + $0x70] sm:$0xff]
        %v1274 = vld [vmem:[#allocation9 + $0x78] sm:$0xff]
        %1275 = vmatprep.subr.mxu0 0.0
        %1276 = vmatpush1.msra.mxu0 %v1259
        %1277 = vmatprep.subr.mxu0 0.0
        %1278 = vmatpush1.msra.mxu0 %v1260
        %1279 = vmatprep.subr.mxu0 0.0
        %1280 = vmatpush1.msra.mxu0 %v1261
        %1281 = vmatprep.subr.mxu0 0.0
        %1282 = vmatpush1.msra.mxu0 %v1262
        %1283 = vmatprep.subr.mxu0 0.0
        %1284 = vmatpush1.msra.mxu0 %v1263
        %1285 = vmatprep.subr.mxu0 0.0
        %1286 = vmatpush1.msra.mxu0 %v1264
        %1287 = vmatprep.subr.mxu0 0.0
        %1288 = vmatpush1.msra.mxu0 %v1265
        %1289 = vmatprep.subr.mxu0 0.0
        %1290 = vmatpush1.msra.mxu0 %v1266
        %1291 = vmatprep.subr.mxu0 0.0
        %1292 = vmatpush1.msra.mxu0 %v1267
        %1293 = vmatprep.subr.mxu0 0.0
        %1294 = vmatpush1.msra.mxu0 %v1268
        %1295 = vmatprep.subr.mxu0 0.0
        %1296 = vmatpush1.msra.mxu0 %v1269
        %1297 = vmatprep.subr.mxu0 0.0
        %1298 = vmatpush1.msra.mxu0 %v1270
        %1299 = vmatprep.subr.mxu0 0.0
        %1300 = vmatpush1.msra.mxu0 %v1271
        %1301 = vmatprep.subr.mxu0 0.0
        %1302 = vmatpush1.msra.mxu0 %v1272
        %1303 = vmatprep.subr.mxu0 0.0
        %1304 = vmatpush1.msra.mxu0 %v1273
        %1305 = vmatprep.subr.mxu0 0.0
        %1306 = vmatpush1.msra.mxu0 %v1274
        %1307 = vmatprep.subr.mxu0 0.0
        %1308 = vmatpush1.msra.mxu0 0.0
        %1309 = vmatprep.subr.mxu0 0.0
        %1310 = vmatpush1.msra.mxu0 0.0
        %1311 = vmatprep.subr.mxu0 0.0
        %1312 = vmatpush1.msra.mxu0 0.0
        %1313 = vmatprep.subr.mxu0 0.0
        %1314 = vmatpush1.msra.mxu0 0.0
        %1315 = vmatprep.subr.mxu0 0.0
        %1316 = vmatpush1.msra.mxu0 0.0
        %1317 = vmatprep.subr.mxu0 0.0
        %1318 = vmatpush1.msra.mxu0 0.0
        %1319 = vmatprep.subr.mxu0 0.0
        %1320 = vmatpush1.msra.mxu0 0.0
        %1321 = vmatprep.subr.mxu0 0.0
        %1322 = vmatpush1.msra.mxu0 0.0
        %1323 = vmatprep.subr.mxu0 0.0
        %1324 = vmatpush1.msra.mxu0 0.0
        %1325 = vmatprep.subr.mxu0 0.0
        %1326 = vmatpush1.msra.mxu0 0.0
        %1327 = vmatprep.subr.mxu0 0.0
        %1328 = vmatpush1.msra.mxu0 0.0
        %1329 = vmatprep.subr.mxu0 0.0
        %1330 = vmatpush1.msra.mxu0 0.0
        %1331 = vmatprep.subr.mxu0 0.0
        %1332 = vmatpush1.msra.mxu0 0.0
        %1333 = vmatprep.subr.mxu0 0.0
        %1334 = vmatpush1.msra.mxu0 0.0
        %1335 = vmatprep.subr.mxu0 0.0
        %1336 = vmatpush1.msra.mxu0 0.0
        %1337 = vmatprep.subr.mxu0 0.0
        %1338 = vmatpush1.msra.mxu0 0.0
        %1339 = vmatprep.mubr.f32.mxu0 0.0
        %1340 = vmatmul.mubr.f32.gmra.mrb[0].mxu0 %v1239
        %v1341 = vpop.f32.mrb[0].mxu0
        %v1342 = vadd.f32 0.0, %v1341
        %v1343 = vpop.f32.mrb[0].mxu0
        %1344 = vmatprep.mubr.f32.mxu0 0.0
        %1345 = vmatmul.mubr.f32.gmra.mrb[0].mxu0 %v1241
        %v1346 = vpop.f32.mrb[0].mxu0
        %v1347 = vadd.f32 0.0, %v1346
        %v1348 = vpop.f32.mrb[0].mxu0
        %1349 = vmatprep.mubr.f32.mxu0 0.0
        %1350 = vmatmul.mubr.f32.gmra.mrb[0].mxu0 %v1243
        %v1351 = vpop.f32.mrb[0].mxu0
        %v1352 = vadd.f32 0.0, %v1351
        %v1353 = vpop.f32.mrb[0].mxu0
        %1354 = vmatprep.mubr.f32.mxu0 0.0
        %1355 = vmatmul.mubr.f32.gmra.mrb[0].mxu0 %v1245
        %v1356 = vpop.f32.mrb[0].mxu0
        %v1357 = vadd.f32 0.0, %v1356
        %v1358 = vpop.f32.mrb[0].mxu0
        %1359 = vmatprep.mubr.f32.mxu0 0.0
        %1360 = vmatmul.mubr.f32.gmra.mrb[0].mxu0 %v1247
        %v1361 = vpop.f32.mrb[0].mxu0
        %v1362 = vadd.f32 0.0, %v1361
        %v1363 = vpop.f32.mrb[0].mxu0
        %1364 = vmatprep.mubr.f32.mxu0 0.0
        %1365 = vmatmul.mubr.f32.gmra.mrb[0].mxu0 %v1249
        %v1366 = vpop.f32.mrb[0].mxu0
        %v1367 = vadd.f32 0.0, %v1366
        %v1368 = vpop.f32.mrb[0].mxu0
        %1369 = vmatprep.mubr.f32.mxu0 0.0
        %1370 = vmatmul.mubr.f32.gmra.mrb[0].mxu0 %v1251
        %v1371 = vpop.f32.mrb[0].mxu0
        %v1372 = vadd.f32 0.0, %v1371
        %v1373 = vpop.f32.mrb[0].mxu0
        %1374 = vmatprep.mubr.f32.mxu0 0.0
        %1375 = vmatmul.mubr.f32.gmra.mrb[0].mxu0 %v1253
        %v1376 = vpop.f32.mrb[0].mxu0
        %v1377 = vadd.f32 0.0, %v1376
        %v1378 = vpop.f32.mrb[0].mxu0
        %1379 = vdwg.mxu0
        %v1380 = vadd.f32 %v1201, %v1342
        %v1381 = vadd.f32 %v1206, %v1347
        %v1382 = vadd.f32 %v1211, %v1352
        %v1383 = vadd.f32 %v1216, %v1357
        %v1384 = vadd.f32 %v1221, %v1362
        %v1385 = vadd.f32 %v1226, %v1367
        %v1386 = vadd.f32 %v1231, %v1372
        %v1387 = vadd.f32 %v1236, %v1377
        %v1404 = vrot.slane %v1239, 1
        %v1405 = vrot.slane %v1240, 1
        %v1406 = vsel %vm518, %v1404, %v1405
        %v1407 = vrot.slane %v1241, 1
        %v1408 = vrot.slane %v1242, 1
        %v1409 = vsel %vm518, %v1407, %v1408
        %v1410 = vrot.slane %v1243, 1
        %v1411 = vrot.slane %v1244, 1
        %v1412 = vsel %vm518, %v1410, %v1411
        %v1413 = vrot.slane %v1245, 1
        %v1414 = vrot.slane %v1246, 1
        %v1415 = vsel %vm518, %v1413, %v1414
        %v1416 = vrot.slane %v1247, 1
        %v1417 = vrot.slane %v1248, 1
        %v1418 = vsel %vm518, %v1416, %v1417
        %v1419 = vrot.slane %v1249, 1
        %v1420 = vrot.slane %v1250, 1
        %v1421 = vsel %vm518, %v1419, %v1420
        %v1422 = vrot.slane %v1251, 1
        %v1423 = vrot.slane %v1252, 1
        %v1424 = vsel %vm518, %v1422, %v1423
        %v1425 = vrot.slane %v1253, 1
        %v1426 = vrot.slane %v1254, 1
        %v1427 = vsel %vm518, %v1425, %v1426
        %s1436 = scalar_lea.vmem [#allocation9], 128
        %v1437 = vld [vmem:[%s1436] sm:$0xff]
        %v1438 = vld [vmem:[%s1436 + $0x8] sm:$0xff]
        %v1439 = vld [vmem:[%s1436 + $0x10] sm:$0xff]
        %v1440 = vld [vmem:[%s1436 + $0x18] sm:$0xff]
        %v1441 = vld [vmem:[%s1436 + $0x20] sm:$0xff]
        %v1442 = vld [vmem:[%s1436 + $0x28] sm:$0xff]
        %v1443 = vld [vmem:[%s1436 + $0x30] sm:$0xff]
        %v1444 = vld [vmem:[%s1436 + $0x38] sm:$0xff]
        %v1445 = vld [vmem:[%s1436 + $0x40] sm:$0xff]
        %v1446 = vld [vmem:[%s1436 + $0x48] sm:$0xff]
        %v1447 = vld [vmem:[%s1436 + $0x50] sm:$0xff]
        %v1448 = vld [vmem:[%s1436 + $0x58] sm:$0xff]
        %v1449 = vld [vmem:[%s1436 + $0x60] sm:$0xff]
        %v1450 = vld [vmem:[%s1436 + $0x68] sm:$0xff]
        %v1451 = vld [vmem:[%s1436 + $0x70] sm:$0xff]
        %v1452 = vld [vmem:[%s1436 + $0x78] sm:$0xff]
        %1453 = vmatprep.subr.mxu0 0.0
        %1454 = vmatpush1.msra.mxu0 %v1437
        %1455 = vmatprep.subr.mxu0 0.0
        %1456 = vmatpush1.msra.mxu0 %v1438
        %1457 = vmatprep.subr.mxu0 0.0
        %1458 = vmatpush1.msra.mxu0 %v1439
        %1459 = vmatprep.subr.mxu0 0.0
        %1460 = vmatpush1.msra.mxu0 %v1440
        %1461 = vmatprep.subr.mxu0 0.0
        %1462 = vmatpush1.msra.mxu0 %v1441
        %1463 = vmatprep.subr.mxu0 0.0
        %1464 = vmatpush1.msra.mxu0 %v1442
        %1465 = vmatprep.subr.mxu0 0.0
        %1466 = vmatpush1.msra.mxu0 %v1443
        %1467 = vmatprep.subr.mxu0 0.0
        %1468 = vmatpush1.msra.mxu0 %v1444
        %1469 = vmatprep.subr.mxu0 0.0
        %1470 = vmatpush1.msra.mxu0 %v1445
        %1471 = vmatprep.subr.mxu0 0.0
        %1472 = vmatpush1.msra.mxu0 %v1446
        %1473 = vmatprep.subr.mxu0 0.0
        %1474 = vmatpush1.msra.mxu0 %v1447
        %1475 = vmatprep.subr.mxu0 0.0
        %1476 = vmatpush1.msra.mxu0 %v1448
        %1477 = vmatprep.subr.mxu0 0.0
        %1478 = vmatpush1.msra.mxu0 %v1449
        %1479 = vmatprep.subr.mxu0 0.0
        %1480 = vmatpush1.msra.mxu0 %v1450
        %1481 = vmatprep.subr.mxu0 0.0
        %1482 = vmatpush1.msra.mxu0 %v1451
        %1483 = vmatprep.subr.mxu0 0.0
        %1484 = vmatpush1.msra.mxu0 %v1452
        %1485 = vmatprep.subr.mxu0 0.0
        %1486 = vmatpush1.msra.mxu0 0.0
        %1487 = vmatprep.subr.mxu0 0.0
        %1488 = vmatpush1.msra.mxu0 0.0
        %1489 = vmatprep.subr.mxu0 0.0
        %1490 = vmatpush1.msra.mxu0 0.0
        %1491 = vmatprep.subr.mxu0 0.0
        %1492 = vmatpush1.msra.mxu0 0.0
        %1493 = vmatprep.subr.mxu0 0.0
        %1494 = vmatpush1.msra.mxu0 0.0
        %1495 = vmatprep.subr.mxu0 0.0
        %1496 = vmatpush1.msra.mxu0 0.0
        %1497 = vmatprep.subr.mxu0 0.0
        %1498 = vmatpush1.msra.mxu0 0.0
        %1499 = vmatprep.subr.mxu0 0.0
        %1500 = vmatpush1.msra.mxu0 0.0
        %1501 = vmatprep.subr.mxu0 0.0
        %1502 = vmatpush1.msra.mxu0 0.0
        %1503 = vmatprep.subr.mxu0 0.0
        %1504 = vmatpush1.msra.mxu0 0.0
        %1505 = vmatprep.subr.mxu0 0.0
        %1506 = vmatpush1.msra.mxu0 0.0
        %1507 = vmatprep.subr.mxu0 0.0
        %1508 = vmatpush1.msra.mxu0 0.0
        %1509 = vmatprep.subr.mxu0 0.0
        %1510 = vmatpush1.msra.mxu0 0.0
        %1511 = vmatprep.subr.mxu0 0.0
        %1512 = vmatpush1.msra.mxu0 0.0
        %1513 = vmatprep.subr.mxu0 0.0
        %1514 = vmatpush1.msra.mxu0 0.0
        %1515 = vmatprep.subr.mxu0 0.0
        %1516 = vmatpush1.msra.mxu0 0.0
        %1517 = vmatprep.mubr.f32.mxu0 0.0
        %1518 = vmatmul.mubr.f32.gmra.mrb[0].mxu0 %v1406
        %v1519 = vpop.f32.mrb[0].mxu0
        %v1520 = vadd.f32 0.0, %v1519
        %v1521 = vpop.f32.mrb[0].mxu0
        %1522 = vmatprep.mubr.f32.mxu0 0.0
        %1523 = vmatmul.mubr.f32.gmra.mrb[0].mxu0 %v1409
        %v1524 = vpop.f32.mrb[0].mxu0
        %v1525 = vadd.f32 0.0, %v1524
        %v1526 = vpop.f32.mrb[0].mxu0
        %1527 = vmatprep.mubr.f32.mxu0 0.0
        %1528 = vmatmul.mubr.f32.gmra.mrb[0].mxu0 %v1412
        %v1529 = vpop.f32.mrb[0].mxu0
        %v1530 = vadd.f32 0.0, %v1529
        %v1531 = vpop.f32.mrb[0].mxu0
        %1532 = vmatprep.mubr.f32.mxu0 0.0
        %1533 = vmatmul.mubr.f32.gmra.mrb[0].mxu0 %v1415
        %v1534 = vpop.f32.mrb[0].mxu0
        %v1535 = vadd.f32 0.0, %v1534
        %v1536 = vpop.f32.mrb[0].mxu0
        %1537 = vmatprep.mubr.f32.mxu0 0.0
        %1538 = vmatmul.mubr.f32.gmra.mrb[0].mxu0 %v1418
        %v1539 = vpop.f32.mrb[0].mxu0
        %v1540 = vadd.f32 0.0, %v1539
        %v1541 = vpop.f32.mrb[0].mxu0
        %1542 = vmatprep.mubr.f32.mxu0 0.0
        %1543 = vmatmul.mubr.f32.gmra.mrb[0].mxu0 %v1421
        %v1544 = vpop.f32.mrb[0].mxu0
        %v1545 = vadd.f32 0.0, %v1544
        %v1546 = vpop.f32.mrb[0].mxu0
        %1547 = vmatprep.mubr.f32.mxu0 0.0
        %1548 = vmatmul.mubr.f32.gmra.mrb[0].mxu0 %v1424
        %v1549 = vpop.f32.mrb[0].mxu0
        %v1550 = vadd.f32 0.0, %v1549
        %v1551 = vpop.f32.mrb[0].mxu0
        %1552 = vmatprep.mubr.f32.mxu0 0.0
        %1553 = vmatmul.mubr.f32.gmra.mrb[0].mxu0 %v1427
        %v1554 = vpop.f32.mrb[0].mxu0
        %v1555 = vadd.f32 0.0, %v1554
        %v1556 = vpop.f32.mrb[0].mxu0
        %1557 = vdwg.mxu0
        %v1558 = vadd.f32 %v1380, %v1520
        %v1559 = vadd.f32 %v1381, %v1525
        %v1560 = vadd.f32 %v1382, %v1530
        %v1561 = vadd.f32 %v1383, %v1535
        %v1562 = vadd.f32 %v1384, %v1540
        %v1563 = vadd.f32 %v1385, %v1545
        %v1564 = vadd.f32 %v1386, %v1550
        %v1565 = vadd.f32 %v1387, %v1555
        %vm1566 = vcmask 1045504
        %v1567 = vrot.slane %v1239, 2
        %v1568 = vrot.slane %v1240, 2
        %v1569 = vsel %vm1566, %v1567, %v1568
        %v1570 = vrot.slane %v1241, 2
        %v1571 = vrot.slane %v1242, 2
        %v1572 = vsel %vm1566, %v1570, %v1571
        %v1573 = vrot.slane %v1243, 2
        %v1574 = vrot.slane %v1244, 2
        %v1575 = vsel %vm1566, %v1573, %v1574
        %v1576 = vrot.slane %v1245, 2
        %v1577 = vrot.slane %v1246, 2
        %v1578 = vsel %vm1566, %v1576, %v1577
        %v1579 = vrot.slane %v1247, 2
        %v1580 = vrot.slane %v1248, 2
        %v1581 = vsel %vm1566, %v1579, %v1580
        %v1582 = vrot.slane %v1249, 2
        %v1583 = vrot.slane %v1250, 2
        %v1584 = vsel %vm1566, %v1582, %v1583
        %v1585 = vrot.slane %v1251, 2
        %v1586 = vrot.slane %v1252, 2
        %v1587 = vsel %vm1566, %v1585, %v1586
        %v1588 = vrot.slane %v1253, 2
        %v1589 = vrot.slane %v1254, 2
        %v1590 = vsel %vm1566, %v1588, %v1589
        %s1599 = scalar_lea.vmem [#allocation9], 256
        %v1600 = vld [vmem:[%s1599] sm:$0xff]
        %v1601 = vld [vmem:[%s1599 + $0x8] sm:$0xff]
        %v1602 = vld [vmem:[%s1599 + $0x10] sm:$0xff]
        %v1603 = vld [vmem:[%s1599 + $0x18] sm:$0xff]
        %v1604 = vld [vmem:[%s1599 + $0x20] sm:$0xff]
        %v1605 = vld [vmem:[%s1599 + $0x28] sm:$0xff]
        %v1606 = vld [vmem:[%s1599 + $0x30] sm:$0xff]
        %v1607 = vld [vmem:[%s1599 + $0x38] sm:$0xff]
        %v1608 = vld [vmem:[%s1599 + $0x40] sm:$0xff]
        %v1609 = vld [vmem:[%s1599 + $0x48] sm:$0xff]
        %v1610 = vld [vmem:[%s1599 + $0x50] sm:$0xff]
        %v1611 = vld [vmem:[%s1599 + $0x58] sm:$0xff]
        %v1612 = vld [vmem:[%s1599 + $0x60] sm:$0xff]
        %v1613 = vld [vmem:[%s1599 + $0x68] sm:$0xff]
        %v1614 = vld [vmem:[%s1599 + $0x70] sm:$0xff]
        %v1615 = vld [vmem:[%s1599 + $0x78] sm:$0xff]
        %1616 = vmatprep.subr.mxu0 0.0
        %1617 = vmatpush1.msra.mxu0 %v1600
        %1618 = vmatprep.subr.mxu0 0.0
        %1619 = vmatpush1.msra.mxu0 %v1601
        %1620 = vmatprep.subr.mxu0 0.0
        %1621 = vmatpush1.msra.mxu0 %v1602
        %1622 = vmatprep.subr.mxu0 0.0
        %1623 = vmatpush1.msra.mxu0 %v1603
        %1624 = vmatprep.subr.mxu0 0.0
        %1625 = vmatpush1.msra.mxu0 %v1604
        %1626 = vmatprep.subr.mxu0 0.0
        %1627 = vmatpush1.msra.mxu0 %v1605
        %1628 = vmatprep.subr.mxu0 0.0
        %1629 = vmatpush1.msra.mxu0 %v1606
        %1630 = vmatprep.subr.mxu0 0.0
        %1631 = vmatpush1.msra.mxu0 %v1607
        %1632 = vmatprep.subr.mxu0 0.0
        %1633 = vmatpush1.msra.mxu0 %v1608
        %1634 = vmatprep.subr.mxu0 0.0
        %1635 = vmatpush1.msra.mxu0 %v1609
        %1636 = vmatprep.subr.mxu0 0.0
        %1637 = vmatpush1.msra.mxu0 %v1610
        %1638 = vmatprep.subr.mxu0 0.0
        %1639 = vmatpush1.msra.mxu0 %v1611
        %1640 = vmatprep.subr.mxu0 0.0
        %1641 = vmatpush1.msra.mxu0 %v1612
        %1642 = vmatprep.subr.mxu0 0.0
        %1643 = vmatpush1.msra.mxu0 %v1613
        %1644 = vmatprep.subr.mxu0 0.0
        %1645 = vmatpush1.msra.mxu0 %v1614
        %1646 = vmatprep.subr.mxu0 0.0
        %1647 = vmatpush1.msra.mxu0 %v1615
        %1648 = vmatprep.subr.mxu0 0.0
        %1649 = vmatpush1.msra.mxu0 0.0
        %1650 = vmatprep.subr.mxu0 0.0
        %1651 = vmatpush1.msra.mxu0 0.0
        %1652 = vmatprep.subr.mxu0 0.0
        %1653 = vmatpush1.msra.mxu0 0.0
        %1654 = vmatprep.subr.mxu0 0.0
        %1655 = vmatpush1.msra.mxu0 0.0
        %1656 = vmatprep.subr.mxu0 0.0
        %1657 = vmatpush1.msra.mxu0 0.0
        %1658 = vmatprep.subr.mxu0 0.0
        %1659 = vmatpush1.msra.mxu0 0.0
        %1660 = vmatprep.subr.mxu0 0.0
        %1661 = vmatpush1.msra.mxu0 0.0
        %1662 = vmatprep.subr.mxu0 0.0
        %1663 = vmatpush1.msra.mxu0 0.0
        %1664 = vmatprep.subr.mxu0 0.0
        %1665 = vmatpush1.msra.mxu0 0.0
        %1666 = vmatprep.subr.mxu0 0.0
        %1667 = vmatpush1.msra.mxu0 0.0
        %1668 = vmatprep.subr.mxu0 0.0
        %1669 = vmatpush1.msra.mxu0 0.0
        %1670 = vmatprep.subr.mxu0 0.0
        %1671 = vmatpush1.msra.mxu0 0.0
        %1672 = vmatprep.subr.mxu0 0.0
        %1673 = vmatpush1.msra.mxu0 0.0
        %1674 = vmatprep.subr.mxu0 0.0
        %1675 = vmatpush1.msra.mxu0 0.0
        %1676 = vmatprep.subr.mxu0 0.0
        %1677 = vmatpush1.msra.mxu0 0.0
        %1678 = vmatprep.subr.mxu0 0.0
        %1679 = vmatpush1.msra.mxu0 0.0
        %1680 = vmatprep.mubr.f32.mxu0 0.0
        %1681 = vmatmul.mubr.f32.gmra.mrb[0].mxu0 %v1569
        %v1682 = vpop.f32.mrb[0].mxu0
        %v1683 = vadd.f32 0.0, %v1682
        %v1684 = vpop.f32.mrb[0].mxu0
        %1685 = vmatprep.mubr.f32.mxu0 0.0
        %1686 = vmatmul.mubr.f32.gmra.mrb[0].mxu0 %v1572
        %v1687 = vpop.f32.mrb[0].mxu0
        %v1688 = vadd.f32 0.0, %v1687
        %v1689 = vpop.f32.mrb[0].mxu0
        %1690 = vmatprep.mubr.f32.mxu0 0.0
        %1691 = vmatmul.mubr.f32.gmra.mrb[0].mxu0 %v1575
        %v1692 = vpop.f32.mrb[0].mxu0
        %v1693 = vadd.f32 0.0, %v1692
        %v1694 = vpop.f32.mrb[0].mxu0
        %1695 = vmatprep.mubr.f32.mxu0 0.0
        %1696 = vmatmul.mubr.f32.gmra.mrb[0].mxu0 %v1578
        %v1697 = vpop.f32.mrb[0].mxu0
        %v1698 = vadd.f32 0.0, %v1697
        %v1699 = vpop.f32.mrb[0].mxu0
        %1700 = vmatprep.mubr.f32.mxu0 0.0
        %1701 = vmatmul.mubr.f32.gmra.mrb[0].mxu0 %v1581
        %v1702 = vpop.f32.mrb[0].mxu0
        %v1703 = vadd.f32 0.0, %v1702
        %v1704 = vpop.f32.mrb[0].mxu0
        %1705 = vmatprep.mubr.f32.mxu0 0.0
        %1706 = vmatmul.mubr.f32.gmra.mrb[0].mxu0 %v1584
        %v1707 = vpop.f32.mrb[0].mxu0
        %v1708 = vadd.f32 0.0, %v1707
        %v1709 = vpop.f32.mrb[0].mxu0
        %1710 = vmatprep.mubr.f32.mxu0 0.0
        %1711 = vmatmul.mubr.f32.gmra.mrb[0].mxu0 %v1587
        %v1712 = vpop.f32.mrb[0].mxu0
        %v1713 = vadd.f32 0.0, %v1712
        %v1714 = vpop.f32.mrb[0].mxu0
        %1715 = vmatprep.mubr.f32.mxu0 0.0
        %1716 = vmatmul.mubr.f32.gmra.mrb[0].mxu0 %v1590
        %v1717 = vpop.f32.mrb[0].mxu0
        %v1718 = vadd.f32 0.0, %v1717
        %v1719 = vpop.f32.mrb[0].mxu0
        %1720 = vdwg.mxu0
        %v1721 = vadd.f32 %v1558, %v1683
        %v1722 = vadd.f32 %v1559, %v1688
        %v1723 = vadd.f32 %v1560, %v1693
        %v1724 = vadd.f32 %v1561, %v1698
        %v1725 = vadd.f32 %v1562, %v1703
        %v1726 = vadd.f32 %v1563, %v1708
        %v1727 = vadd.f32 %v1564, %v1713
        %v1728 = vadd.f32 %v1565, %v1718
        %s1729 = scalar_lea.vmem [#allocation9], 384
        %v1730 = vld [vmem:[%s1729] sm:$0xff]
        %v1731 = vld [vmem:[%s1729 + $0x8] sm:$0xff]
        %v1732 = vld [vmem:[%s1729 + $0x10] sm:$0xff]
        %v1733 = vld [vmem:[%s1729 + $0x18] sm:$0xff]
        %v1734 = vld [vmem:[%s1729 + $0x20] sm:$0xff]
        %v1735 = vld [vmem:[%s1729 + $0x28] sm:$0xff]
        %v1736 = vld [vmem:[%s1729 + $0x30] sm:$0xff]
        %v1737 = vld [vmem:[%s1729 + $0x38] sm:$0xff]
        %v1738 = vld [vmem:[%s1729 + $0x40] sm:$0xff]
        %v1739 = vld [vmem:[%s1729 + $0x48] sm:$0xff]
        %v1740 = vld [vmem:[%s1729 + $0x50] sm:$0xff]
        %v1741 = vld [vmem:[%s1729 + $0x58] sm:$0xff]
        %v1742 = vld [vmem:[%s1729 + $0x60] sm:$0xff]
        %v1743 = vld [vmem:[%s1729 + $0x68] sm:$0xff]
        %v1744 = vld [vmem:[%s1729 + $0x70] sm:$0xff]
        %v1745 = vld [vmem:[%s1729 + $0x78] sm:$0xff]
        %1746 = vmatprep.subr.mxu0 0.0
        %1747 = vmatpush1.msra.mxu0 %v1730
        %1748 = vmatprep.subr.mxu0 0.0
        %1749 = vmatpush1.msra.mxu0 %v1731
        %1750 = vmatprep.subr.mxu0 0.0
        %1751 = vmatpush1.msra.mxu0 %v1732
        %1752 = vmatprep.subr.mxu0 0.0
        %1753 = vmatpush1.msra.mxu0 %v1733
        %1754 = vmatprep.subr.mxu0 0.0
        %1755 = vmatpush1.msra.mxu0 %v1734
        %1756 = vmatprep.subr.mxu0 0.0
        %1757 = vmatpush1.msra.mxu0 %v1735
        %1758 = vmatprep.subr.mxu0 0.0
        %1759 = vmatpush1.msra.mxu0 %v1736
        %1760 = vmatprep.subr.mxu0 0.0
        %1761 = vmatpush1.msra.mxu0 %v1737
        %1762 = vmatprep.subr.mxu0 0.0
        %1763 = vmatpush1.msra.mxu0 %v1738
        %1764 = vmatprep.subr.mxu0 0.0
        %1765 = vmatpush1.msra.mxu0 %v1739
        %1766 = vmatprep.subr.mxu0 0.0
        %1767 = vmatpush1.msra.mxu0 %v1740
        %1768 = vmatprep.subr.mxu0 0.0
        %1769 = vmatpush1.msra.mxu0 %v1741
        %1770 = vmatprep.subr.mxu0 0.0
        %1771 = vmatpush1.msra.mxu0 %v1742
        %1772 = vmatprep.subr.mxu0 0.0
        %1773 = vmatpush1.msra.mxu0 %v1743
        %1774 = vmatprep.subr.mxu0 0.0
        %1775 = vmatpush1.msra.mxu0 %v1744
        %1776 = vmatprep.subr.mxu0 0.0
        %1777 = vmatpush1.msra.mxu0 %v1745
        %1778 = vmatprep.subr.mxu0 0.0
        %1779 = vmatpush1.msra.mxu0 0.0
        %1780 = vmatprep.subr.mxu0 0.0
        %1781 = vmatpush1.msra.mxu0 0.0
        %1782 = vmatprep.subr.mxu0 0.0
        %1783 = vmatpush1.msra.mxu0 0.0
        %1784 = vmatprep.subr.mxu0 0.0
        %1785 = vmatpush1.msra.mxu0 0.0
        %1786 = vmatprep.subr.mxu0 0.0
        %1787 = vmatpush1.msra.mxu0 0.0
        %1788 = vmatprep.subr.mxu0 0.0
        %1789 = vmatpush1.msra.mxu0 0.0
        %1790 = vmatprep.subr.mxu0 0.0
        %1791 = vmatpush1.msra.mxu0 0.0
        %1792 = vmatprep.subr.mxu0 0.0
        %1793 = vmatpush1.msra.mxu0 0.0
        %1794 = vmatprep.subr.mxu0 0.0
        %1795 = vmatpush1.msra.mxu0 0.0
        %1796 = vmatprep.subr.mxu0 0.0
        %1797 = vmatpush1.msra.mxu0 0.0
        %1798 = vmatprep.subr.mxu0 0.0
        %1799 = vmatpush1.msra.mxu0 0.0
        %1800 = vmatprep.subr.mxu0 0.0
        %1801 = vmatpush1.msra.mxu0 0.0
        %1802 = vmatprep.subr.mxu0 0.0
        %1803 = vmatpush1.msra.mxu0 0.0
        %1804 = vmatprep.subr.mxu0 0.0
        %1805 = vmatpush1.msra.mxu0 0.0
        %1806 = vmatprep.subr.mxu0 0.0
        %1807 = vmatpush1.msra.mxu0 0.0
        %1808 = vmatprep.subr.mxu0 0.0
        %1809 = vmatpush1.msra.mxu0 0.0
        %1810 = vmatprep.mubr.f32.mxu0 0.0
        %1811 = vmatmul.mubr.f32.gmra.mrb[0].mxu0 %v1241
        %v1812 = vpop.f32.mrb[0].mxu0
        %v1813 = vadd.f32 0.0, %v1812
        %v1814 = vpop.f32.mrb[0].mxu0
        %1815 = vmatprep.mubr.f32.mxu0 0.0
        %1816 = vmatmul.mubr.f32.gmra.mrb[0].mxu0 %v1243
        %v1817 = vpop.f32.mrb[0].mxu0
        %v1818 = vadd.f32 0.0, %v1817
        %v1819 = vpop.f32.mrb[0].mxu0
        %1820 = vmatprep.mubr.f32.mxu0 0.0
        %1821 = vmatmul.mubr.f32.gmra.mrb[0].mxu0 %v1245
        %v1822 = vpop.f32.mrb[0].mxu0
        %v1823 = vadd.f32 0.0, %v1822
        %v1824 = vpop.f32.mrb[0].mxu0
        %1825 = vmatprep.mubr.f32.mxu0 0.0
        %1826 = vmatmul.mubr.f32.gmra.mrb[0].mxu0 %v1247
        %v1827 = vpop.f32.mrb[0].mxu0
        %v1828 = vadd.f32 0.0, %v1827
        %v1829 = vpop.f32.mrb[0].mxu0
        %1830 = vmatprep.mubr.f32.mxu0 0.0
        %1831 = vmatmul.mubr.f32.gmra.mrb[0].mxu0 %v1249
        %v1832 = vpop.f32.mrb[0].mxu0
        %v1833 = vadd.f32 0.0, %v1832
        %v1834 = vpop.f32.mrb[0].mxu0
        %1835 = vmatprep.mubr.f32.mxu0 0.0
        %1836 = vmatmul.mubr.f32.gmra.mrb[0].mxu0 %v1251
        %v1837 = vpop.f32.mrb[0].mxu0
        %v1838 = vadd.f32 0.0, %v1837
        %v1839 = vpop.f32.mrb[0].mxu0
        %1840 = vmatprep.mubr.f32.mxu0 0.0
        %1841 = vmatmul.mubr.f32.gmra.mrb[0].mxu0 %v1253
        %v1842 = vpop.f32.mrb[0].mxu0
        %v1843 = vadd.f32 0.0, %v1842
        %v1844 = vpop.f32.mrb[0].mxu0
        %1845 = vmatprep.mubr.f32.mxu0 0.0
        %1846 = vmatmul.mubr.f32.gmra.mrb[0].mxu0 %v1255
        %v1847 = vpop.f32.mrb[0].mxu0
        %v1848 = vadd.f32 0.0, %v1847
        %v1849 = vpop.f32.mrb[0].mxu0
        %1850 = vdwg.mxu0
        %v1851 = vadd.f32 %v1721, %v1813
        %v1852 = vadd.f32 %v1722, %v1818
        %v1853 = vadd.f32 %v1723, %v1823
        %v1854 = vadd.f32 %v1724, %v1828
        %v1855 = vadd.f32 %v1725, %v1833
        %v1856 = vadd.f32 %v1726, %v1838
        %v1857 = vadd.f32 %v1727, %v1843
        %v1858 = vadd.f32 %v1728, %v1848
        %v1861 = vrot.slane %v1255, 1
        %v1862 = vrot.slane %v1256, 1
        %v1863 = vsel %vm518, %v1861, %v1862
        %s1865 = scalar_lea.vmem [#allocation9], 512
        %v1866 = vld [vmem:[%s1865] sm:$0xff]
        %v1867 = vld [vmem:[%s1865 + $0x8] sm:$0xff]
        %v1868 = vld [vmem:[%s1865 + $0x10] sm:$0xff]
        %v1869 = vld [vmem:[%s1865 + $0x18] sm:$0xff]
        %v1870 = vld [vmem:[%s1865 + $0x20] sm:$0xff]
        %v1871 = vld [vmem:[%s1865 + $0x28] sm:$0xff]
        %v1872 = vld [vmem:[%s1865 + $0x30] sm:$0xff]
        %v1873 = vld [vmem:[%s1865 + $0x38] sm:$0xff]
        %v1874 = vld [vmem:[%s1865 + $0x40] sm:$0xff]
        %v1875 = vld [vmem:[%s1865 + $0x48] sm:$0xff]
        %v1876 = vld [vmem:[%s1865 + $0x50] sm:$0xff]
        %v1877 = vld [vmem:[%s1865 + $0x58] sm:$0xff]
        %v1878 = vld [vmem:[%s1865 + $0x60] sm:$0xff]
        %v1879 = vld [vmem:[%s1865 + $0x68] sm:$0xff]
        %v1880 = vld [vmem:[%s1865 + $0x70] sm:$0xff]
        %v1881 = vld [vmem:[%s1865 + $0x78] sm:$0xff]
        %1882 = vmatprep.subr.mxu0 0.0
        %1883 = vmatpush1.msra.mxu0 %v1866
        %1884 = vmatprep.subr.mxu0 0.0
        %1885 = vmatpush1.msra.mxu0 %v1867
        %1886 = vmatprep.subr.mxu0 0.0
        %1887 = vmatpush1.msra.mxu0 %v1868
        %1888 = vmatprep.subr.mxu0 0.0
        %1889 = vmatpush1.msra.mxu0 %v1869
        %1890 = vmatprep.subr.mxu0 0.0
        %1891 = vmatpush1.msra.mxu0 %v1870
        %1892 = vmatprep.subr.mxu0 0.0
        %1893 = vmatpush1.msra.mxu0 %v1871
        %1894 = vmatprep.subr.mxu0 0.0
        %1895 = vmatpush1.msra.mxu0 %v1872
        %1896 = vmatprep.subr.mxu0 0.0
        %1897 = vmatpush1.msra.mxu0 %v1873
        %1898 = vmatprep.subr.mxu0 0.0
        %1899 = vmatpush1.msra.mxu0 %v1874
        %1900 = vmatprep.subr.mxu0 0.0
        %1901 = vmatpush1.msra.mxu0 %v1875
        %1902 = vmatprep.subr.mxu0 0.0
        %1903 = vmatpush1.msra.mxu0 %v1876
        %1904 = vmatprep.subr.mxu0 0.0
        %1905 = vmatpush1.msra.mxu0 %v1877
        %1906 = vmatprep.subr.mxu0 0.0
        %1907 = vmatpush1.msra.mxu0 %v1878
        %1908 = vmatprep.subr.mxu0 0.0
        %1909 = vmatpush1.msra.mxu0 %v1879
        %1910 = vmatprep.subr.mxu0 0.0
        %1911 = vmatpush1.msra.mxu0 %v1880
        %1912 = vmatprep.subr.mxu0 0.0
        %1913 = vmatpush1.msra.mxu0 %v1881
        %1914 = vmatprep.subr.mxu0 0.0
        %1915 = vmatpush1.msra.mxu0 0.0
        %1916 = vmatprep.subr.mxu0 0.0
        %1917 = vmatpush1.msra.mxu0 0.0
        %1918 = vmatprep.subr.mxu0 0.0
        %1919 = vmatpush1.msra.mxu0 0.0
        %1920 = vmatprep.subr.mxu0 0.0
        %1921 = vmatpush1.msra.mxu0 0.0
        %1922 = vmatprep.subr.mxu0 0.0
        %1923 = vmatpush1.msra.mxu0 0.0
        %1924 = vmatprep.subr.mxu0 0.0
        %1925 = vmatpush1.msra.mxu0 0.0
        %1926 = vmatprep.subr.mxu0 0.0
        %1927 = vmatpush1.msra.mxu0 0.0
        %1928 = vmatprep.subr.mxu0 0.0
        %1929 = vmatpush1.msra.mxu0 0.0
        %1930 = vmatprep.subr.mxu0 0.0
        %1931 = vmatpush1.msra.mxu0 0.0
        %1932 = vmatprep.subr.mxu0 0.0
        %1933 = vmatpush1.msra.mxu0 0.0
        %1934 = vmatprep.subr.mxu0 0.0
        %1935 = vmatpush1.msra.mxu0 0.0
        %1936 = vmatprep.subr.mxu0 0.0
        %1937 = vmatpush1.msra.mxu0 0.0
        %1938 = vmatprep.subr.mxu0 0.0
        %1939 = vmatpush1.msra.mxu0 0.0
        %1940 = vmatprep.subr.mxu0 0.0
        %1941 = vmatpush1.msra.mxu0 0.0
        %1942 = vmatprep.subr.mxu0 0.0
        %1943 = vmatpush1.msra.mxu0 0.0
        %1944 = vmatprep.subr.mxu0 0.0
        %1945 = vmatpush1.msra.mxu0 0.0
        %1946 = vmatprep.mubr.f32.mxu0 0.0
        %1947 = vmatmul.mubr.f32.gmra.mrb[0].mxu0 %v1409
        %v1948 = vpop.f32.mrb[0].mxu0
        %v1949 = vadd.f32 0.0, %v1948
        %v1950 = vpop.f32.mrb[0].mxu0
        %1951 = vmatprep.mubr.f32.mxu0 0.0
        %1952 = vmatmul.mubr.f32.gmra.mrb[0].mxu0 %v1412
        %v1953 = vpop.f32.mrb[0].mxu0
        %v1954 = vadd.f32 0.0, %v1953
        %v1955 = vpop.f32.mrb[0].mxu0
        %1956 = vmatprep.mubr.f32.mxu0 0.0
        %1957 = vmatmul.mubr.f32.gmra.mrb[0].mxu0 %v1415
        %v1958 = vpop.f32.mrb[0].mxu0
        %v1959 = vadd.f32 0.0, %v1958
        %v1960 = vpop.f32.mrb[0].mxu0
        %1961 = vmatprep.mubr.f32.mxu0 0.0
        %1962 = vmatmul.mubr.f32.gmra.mrb[0].mxu0 %v1418
        %v1963 = vpop.f32.mrb[0].mxu0
        %v1964 = vadd.f32 0.0, %v1963
        %v1965 = vpop.f32.mrb[0].mxu0
        %1966 = vmatprep.mubr.f32.mxu0 0.0
        %1967 = vmatmul.mubr.f32.gmra.mrb[0].mxu0 %v1421
        %v1968 = vpop.f32.mrb[0].mxu0
        %v1969 = vadd.f32 0.0, %v1968
        %v1970 = vpop.f32.mrb[0].mxu0
        %1971 = vmatprep.mubr.f32.mxu0 0.0
        %1972 = vmatmul.mubr.f32.gmra.mrb[0].mxu0 %v1424
        %v1973 = vpop.f32.mrb[0].mxu0
        %v1974 = vadd.f32 0.0, %v1973
        %v1975 = vpop.f32.mrb[0].mxu0
        %1976 = vmatprep.mubr.f32.mxu0 0.0
        %1977 = vmatmul.mubr.f32.gmra.mrb[0].mxu0 %v1427
        %v1978 = vpop.f32.mrb[0].mxu0
        %v1979 = vadd.f32 0.0, %v1978
        %v1980 = vpop.f32.mrb[0].mxu0
        %1981 = vmatprep.mubr.f32.mxu0 0.0
        %1982 = vmatmul.mubr.f32.gmra.mrb[0].mxu0 %v1863
        %v1983 = vpop.f32.mrb[0].mxu0
        %v1984 = vadd.f32 0.0, %v1983
        %v1985 = vpop.f32.mrb[0].mxu0
        %1986 = vdwg.mxu0
        %v1987 = vadd.f32 %v1851, %v1949
        %v1988 = vadd.f32 %v1852, %v1954
        %v1989 = vadd.f32 %v1853, %v1959
        %v1990 = vadd.f32 %v1854, %v1964
        %v1991 = vadd.f32 %v1855, %v1969
        %v1992 = vadd.f32 %v1856, %v1974
        %v1993 = vadd.f32 %v1857, %v1979
        %v1994 = vadd.f32 %v1858, %v1984
        %v1995 = vrot.slane %v1255, 2
        %v1996 = vrot.slane %v1256, 2
        %v1997 = vsel %vm1566, %v1995, %v1996
        %s1999 = scalar_lea.vmem [#allocation9], 640
        %v2000 = vld [vmem:[%s1999] sm:$0xff]
        %v2001 = vld [vmem:[%s1999 + $0x8] sm:$0xff]
        %v2002 = vld [vmem:[%s1999 + $0x10] sm:$0xff]
        %v2003 = vld [vmem:[%s1999 + $0x18] sm:$0xff]
        %v2004 = vld [vmem:[%s1999 + $0x20] sm:$0xff]
        %v2005 = vld [vmem:[%s1999 + $0x28] sm:$0xff]
        %v2006 = vld [vmem:[%s1999 + $0x30] sm:$0xff]
        %v2007 = vld [vmem:[%s1999 + $0x38] sm:$0xff]
        %v2008 = vld [vmem:[%s1999 + $0x40] sm:$0xff]
        %v2009 = vld [vmem:[%s1999 + $0x48] sm:$0xff]
        %v2010 = vld [vmem:[%s1999 + $0x50] sm:$0xff]
        %v2011 = vld [vmem:[%s1999 + $0x58] sm:$0xff]
        %v2012 = vld [vmem:[%s1999 + $0x60] sm:$0xff]
        %v2013 = vld [vmem:[%s1999 + $0x68] sm:$0xff]
        %v2014 = vld [vmem:[%s1999 + $0x70] sm:$0xff]
        %v2015 = vld [vmem:[%s1999 + $0x78] sm:$0xff]
        %2016 = vmatprep.subr.mxu0 0.0
        %2017 = vmatpush1.msra.mxu0 %v2000
        %2018 = vmatprep.subr.mxu0 0.0
        %2019 = vmatpush1.msra.mxu0 %v2001
        %2020 = vmatprep.subr.mxu0 0.0
        %2021 = vmatpush1.msra.mxu0 %v2002
        %2022 = vmatprep.subr.mxu0 0.0
        %2023 = vmatpush1.msra.mxu0 %v2003
        %2024 = vmatprep.subr.mxu0 0.0
        %2025 = vmatpush1.msra.mxu0 %v2004
        %2026 = vmatprep.subr.mxu0 0.0
        %2027 = vmatpush1.msra.mxu0 %v2005
        %2028 = vmatprep.subr.mxu0 0.0
        %2029 = vmatpush1.msra.mxu0 %v2006
        %2030 = vmatprep.subr.mxu0 0.0
        %2031 = vmatpush1.msra.mxu0 %v2007
        %2032 = vmatprep.subr.mxu0 0.0
        %2033 = vmatpush1.msra.mxu0 %v2008
        %2034 = vmatprep.subr.mxu0 0.0
        %2035 = vmatpush1.msra.mxu0 %v2009
        %2036 = vmatprep.subr.mxu0 0.0
        %2037 = vmatpush1.msra.mxu0 %v2010
        %2038 = vmatprep.subr.mxu0 0.0
        %2039 = vmatpush1.msra.mxu0 %v2011
        %2040 = vmatprep.subr.mxu0 0.0
        %2041 = vmatpush1.msra.mxu0 %v2012
        %2042 = vmatprep.subr.mxu0 0.0
        %2043 = vmatpush1.msra.mxu0 %v2013
        %2044 = vmatprep.subr.mxu0 0.0
        %2045 = vmatpush1.msra.mxu0 %v2014
        %2046 = vmatprep.subr.mxu0 0.0
        %2047 = vmatpush1.msra.mxu0 %v2015
        %2048 = vmatprep.subr.mxu0 0.0
        %2049 = vmatpush1.msra.mxu0 0.0
        %2050 = vmatprep.subr.mxu0 0.0
        %2051 = vmatpush1.msra.mxu0 0.0
        %2052 = vmatprep.subr.mxu0 0.0
        %2053 = vmatpush1.msra.mxu0 0.0
        %2054 = vmatprep.subr.mxu0 0.0
        %2055 = vmatpush1.msra.mxu0 0.0
        %2056 = vmatprep.subr.mxu0 0.0
        %2057 = vmatpush1.msra.mxu0 0.0
        %2058 = vmatprep.subr.mxu0 0.0
        %2059 = vmatpush1.msra.mxu0 0.0
        %2060 = vmatprep.subr.mxu0 0.0
        %2061 = vmatpush1.msra.mxu0 0.0
        %2062 = vmatprep.subr.mxu0 0.0
        %2063 = vmatpush1.msra.mxu0 0.0
        %2064 = vmatprep.subr.mxu0 0.0
        %2065 = vmatpush1.msra.mxu0 0.0
        %2066 = vmatprep.subr.mxu0 0.0
        %2067 = vmatpush1.msra.mxu0 0.0
        %2068 = vmatprep.subr.mxu0 0.0
        %2069 = vmatpush1.msra.mxu0 0.0
        %2070 = vmatprep.subr.mxu0 0.0
        %2071 = vmatpush1.msra.mxu0 0.0
        %2072 = vmatprep.subr.mxu0 0.0
        %2073 = vmatpush1.msra.mxu0 0.0
        %2074 = vmatprep.subr.mxu0 0.0
        %2075 = vmatpush1.msra.mxu0 0.0
        %2076 = vmatprep.subr.mxu0 0.0
        %2077 = vmatpush1.msra.mxu0 0.0
        %2078 = vmatprep.subr.mxu0 0.0
        %2079 = vmatpush1.msra.mxu0 0.0
        %2080 = vmatprep.mubr.f32.mxu0 0.0
        %2081 = vmatmul.mubr.f32.gmra.mrb[0].mxu0 %v1572
        %v2082 = vpop.f32.mrb[0].mxu0
        %v2083 = vadd.f32 0.0, %v2082
        %v2084 = vpop.f32.mrb[0].mxu0
        %2085 = vmatprep.mubr.f32.mxu0 0.0
        %2086 = vmatmul.mubr.f32.gmra.mrb[0].mxu0 %v1575
        %v2087 = vpop.f32.mrb[0].mxu0
        %v2088 = vadd.f32 0.0, %v2087
        %v2089 = vpop.f32.mrb[0].mxu0
        %2090 = vmatprep.mubr.f32.mxu0 0.0
        %2091 = vmatmul.mubr.f32.gmra.mrb[0].mxu0 %v1578
        %v2092 = vpop.f32.mrb[0].mxu0
        %v2093 = vadd.f32 0.0, %v2092
        %v2094 = vpop.f32.mrb[0].mxu0
        %2095 = vmatprep.mubr.f32.mxu0 0.0
        %2096 = vmatmul.mubr.f32.gmra.mrb[0].mxu0 %v1581
        %v2097 = vpop.f32.mrb[0].mxu0
        %v2098 = vadd.f32 0.0, %v2097
        %v2099 = vpop.f32.mrb[0].mxu0
        %2100 = vmatprep.mubr.f32.mxu0 0.0
        %2101 = vmatmul.mubr.f32.gmra.mrb[0].mxu0 %v1584
        %v2102 = vpop.f32.mrb[0].mxu0
        %v2103 = vadd.f32 0.0, %v2102
        %v2104 = vpop.f32.mrb[0].mxu0
        %2105 = vmatprep.mubr.f32.mxu0 0.0
        %2106 = vmatmul.mubr.f32.gmra.mrb[0].mxu0 %v1587
        %v2107 = vpop.f32.mrb[0].mxu0
        %v2108 = vadd.f32 0.0, %v2107
        %v2109 = vpop.f32.mrb[0].mxu0
        %2110 = vmatprep.mubr.f32.mxu0 0.0
        %2111 = vmatmul.mubr.f32.gmra.mrb[0].mxu0 %v1590
        %v2112 = vpop.f32.mrb[0].mxu0
        %v2113 = vadd.f32 0.0, %v2112
        %v2114 = vpop.f32.mrb[0].mxu0
        %2115 = vmatprep.mubr.f32.mxu0 0.0
        %2116 = vmatmul.mubr.f32.gmra.mrb[0].mxu0 %v1997
        %v2117 = vpop.f32.mrb[0].mxu0
        %v2118 = vadd.f32 0.0, %v2117
        %v2119 = vpop.f32.mrb[0].mxu0
        %2120 = vdwg.mxu0
        %v2121 = vadd.f32 %v1987, %v2083
        %v2122 = vadd.f32 %v1988, %v2088
        %v2123 = vadd.f32 %v1989, %v2093
        %v2124 = vadd.f32 %v1990, %v2098
        %v2125 = vadd.f32 %v1991, %v2103
        %v2126 = vadd.f32 %v1992, %v2108
        %v2127 = vadd.f32 %v1993, %v2113
        %v2128 = vadd.f32 %v1994, %v2118
        %s2129 = scalar_lea.vmem [#allocation9], 768
        %v2130 = vld [vmem:[%s2129] sm:$0xff]
        %v2131 = vld [vmem:[%s2129 + $0x8] sm:$0xff]
        %v2132 = vld [vmem:[%s2129 + $0x10] sm:$0xff]
        %v2133 = vld [vmem:[%s2129 + $0x18] sm:$0xff]
        %v2134 = vld [vmem:[%s2129 + $0x20] sm:$0xff]
        %v2135 = vld [vmem:[%s2129 + $0x28] sm:$0xff]
        %v2136 = vld [vmem:[%s2129 + $0x30] sm:$0xff]
        %v2137 = vld [vmem:[%s2129 + $0x38] sm:$0xff]
        %v2138 = vld [vmem:[%s2129 + $0x40] sm:$0xff]
        %v2139 = vld [vmem:[%s2129 + $0x48] sm:$0xff]
        %v2140 = vld [vmem:[%s2129 + $0x50] sm:$0xff]
        %v2141 = vld [vmem:[%s2129 + $0x58] sm:$0xff]
        %v2142 = vld [vmem:[%s2129 + $0x60] sm:$0xff]
        %v2143 = vld [vmem:[%s2129 + $0x68] sm:$0xff]
        %v2144 = vld [vmem:[%s2129 + $0x70] sm:$0xff]
        %v2145 = vld [vmem:[%s2129 + $0x78] sm:$0xff]
        %2146 = vmatprep.subr.mxu0 0.0
        %2147 = vmatpush1.msra.mxu0 %v2130
        %2148 = vmatprep.subr.mxu0 0.0
        %2149 = vmatpush1.msra.mxu0 %v2131
        %2150 = vmatprep.subr.mxu0 0.0
        %2151 = vmatpush1.msra.mxu0 %v2132
        %2152 = vmatprep.subr.mxu0 0.0
        %2153 = vmatpush1.msra.mxu0 %v2133
        %2154 = vmatprep.subr.mxu0 0.0
        %2155 = vmatpush1.msra.mxu0 %v2134
        %2156 = vmatprep.subr.mxu0 0.0
        %2157 = vmatpush1.msra.mxu0 %v2135
        %2158 = vmatprep.subr.mxu0 0.0
        %2159 = vmatpush1.msra.mxu0 %v2136
        %2160 = vmatprep.subr.mxu0 0.0
        %2161 = vmatpush1.msra.mxu0 %v2137
        %2162 = vmatprep.subr.mxu0 0.0
        %2163 = vmatpush1.msra.mxu0 %v2138
        %2164 = vmatprep.subr.mxu0 0.0
        %2165 = vmatpush1.msra.mxu0 %v2139
        %2166 = vmatprep.subr.mxu0 0.0
        %2167 = vmatpush1.msra.mxu0 %v2140
        %2168 = vmatprep.subr.mxu0 0.0
        %2169 = vmatpush1.msra.mxu0 %v2141
        %2170 = vmatprep.subr.mxu0 0.0
        %2171 = vmatpush1.msra.mxu0 %v2142
        %2172 = vmatprep.subr.mxu0 0.0
        %2173 = vmatpush1.msra.mxu0 %v2143
        %2174 = vmatprep.subr.mxu0 0.0
        %2175 = vmatpush1.msra.mxu0 %v2144
        %2176 = vmatprep.subr.mxu0 0.0
        %2177 = vmatpush1.msra.mxu0 %v2145
        %2178 = vmatprep.subr.mxu0 0.0
        %2179 = vmatpush1.msra.mxu0 0.0
        %2180 = vmatprep.subr.mxu0 0.0
        %2181 = vmatpush1.msra.mxu0 0.0
        %2182 = vmatprep.subr.mxu0 0.0
        %2183 = vmatpush1.msra.mxu0 0.0
        %2184 = vmatprep.subr.mxu0 0.0
        %2185 = vmatpush1.msra.mxu0 0.0
        %2186 = vmatprep.subr.mxu0 0.0
        %2187 = vmatpush1.msra.mxu0 0.0
        %2188 = vmatprep.subr.mxu0 0.0
        %2189 = vmatpush1.msra.mxu0 0.0
        %2190 = vmatprep.subr.mxu0 0.0
        %2191 = vmatpush1.msra.mxu0 0.0
        %2192 = vmatprep.subr.mxu0 0.0
        %2193 = vmatpush1.msra.mxu0 0.0
        %2194 = vmatprep.subr.mxu0 0.0
        %2195 = vmatpush1.msra.mxu0 0.0
        %2196 = vmatprep.subr.mxu0 0.0
        %2197 = vmatpush1.msra.mxu0 0.0
        %2198 = vmatprep.subr.mxu0 0.0
        %2199 = vmatpush1.msra.mxu0 0.0
        %2200 = vmatprep.subr.mxu0 0.0
        %2201 = vmatpush1.msra.mxu0 0.0
        %2202 = vmatprep.subr.mxu0 0.0
        %2203 = vmatpush1.msra.mxu0 0.0
        %2204 = vmatprep.subr.mxu0 0.0
        %2205 = vmatpush1.msra.mxu0 0.0
        %2206 = vmatprep.subr.mxu0 0.0
        %2207 = vmatpush1.msra.mxu0 0.0
        %2208 = vmatprep.subr.mxu0 0.0
        %2209 = vmatpush1.msra.mxu0 0.0
        %2210 = vmatprep.mubr.f32.mxu0 0.0
        %2211 = vmatmul.mubr.f32.gmra.mrb[0].mxu0 %v1243
        %v2212 = vpop.f32.mrb[0].mxu0
        %v2213 = vadd.f32 0.0, %v2212
        %v2214 = vpop.f32.mrb[0].mxu0
        %2215 = vmatprep.mubr.f32.mxu0 0.0
        %2216 = vmatmul.mubr.f32.gmra.mrb[0].mxu0 %v1245
        %v2217 = vpop.f32.mrb[0].mxu0
        %v2218 = vadd.f32 0.0, %v2217
        %v2219 = vpop.f32.mrb[0].mxu0
        %2220 = vmatprep.mubr.f32.mxu0 0.0
        %2221 = vmatmul.mubr.f32.gmra.mrb[0].mxu0 %v1247
        %v2222 = vpop.f32.mrb[0].mxu0
        %v2223 = vadd.f32 0.0, %v2222
        %v2224 = vpop.f32.mrb[0].mxu0
        %2225 = vmatprep.mubr.f32.mxu0 0.0
        %2226 = vmatmul.mubr.f32.gmra.mrb[0].mxu0 %v1249
        %v2227 = vpop.f32.mrb[0].mxu0
        %v2228 = vadd.f32 0.0, %v2227
        %v2229 = vpop.f32.mrb[0].mxu0
        %2230 = vmatprep.mubr.f32.mxu0 0.0
        %2231 = vmatmul.mubr.f32.gmra.mrb[0].mxu0 %v1251
        %v2232 = vpop.f32.mrb[0].mxu0
        %v2233 = vadd.f32 0.0, %v2232
        %v2234 = vpop.f32.mrb[0].mxu0
        %2235 = vmatprep.mubr.f32.mxu0 0.0
        %2236 = vmatmul.mubr.f32.gmra.mrb[0].mxu0 %v1253
        %v2237 = vpop.f32.mrb[0].mxu0
        %v2238 = vadd.f32 0.0, %v2237
        %v2239 = vpop.f32.mrb[0].mxu0
        %2240 = vmatprep.mubr.f32.mxu0 0.0
        %2241 = vmatmul.mubr.f32.gmra.mrb[0].mxu0 %v1255
        %v2242 = vpop.f32.mrb[0].mxu0
        %v2243 = vadd.f32 0.0, %v2242
        %v2244 = vpop.f32.mrb[0].mxu0
        %2245 = vmatprep.mubr.f32.mxu0 0.0
        %2246 = vmatmul.mubr.f32.gmra.mrb[0].mxu0 %v1257
        %v2247 = vpop.f32.mrb[0].mxu0
        %v2248 = vadd.f32 0.0, %v2247
        %v2249 = vpop.f32.mrb[0].mxu0
        %2250 = vdwg.mxu0
        %v2251 = vadd.f32 %v2121, %v2213
        %v2252 = vadd.f32 %v2122, %v2218
        %v2253 = vadd.f32 %v2123, %v2223
        %v2254 = vadd.f32 %v2124, %v2228
        %v2255 = vadd.f32 %v2125, %v2233
        %v2256 = vadd.f32 %v2126, %v2238
        %v2257 = vadd.f32 %v2127, %v2243
        %v2258 = vadd.f32 %v2128, %v2248
        %v2261 = vrot.slane %v1257, 1
        %v2262 = vrot.slane %v1258, 1
        %v2263 = vsel %vm518, %v2261, %v2262
        %s2265 = scalar_lea.vmem [#allocation9], 896
        %v2266 = vld [vmem:[%s2265] sm:$0xff]
        %v2267 = vld [vmem:[%s2265 + $0x8] sm:$0xff]
        %v2268 = vld [vmem:[%s2265 + $0x10] sm:$0xff]
        %v2269 = vld [vmem:[%s2265 + $0x18] sm:$0xff]
        %v2270 = vld [vmem:[%s2265 + $0x20] sm:$0xff]
        %v2271 = vld [vmem:[%s2265 + $0x28] sm:$0xff]
        %v2272 = vld [vmem:[%s2265 + $0x30] sm:$0xff]
        %v2273 = vld [vmem:[%s2265 + $0x38] sm:$0xff]
        %v2274 = vld [vmem:[%s2265 + $0x40] sm:$0xff]
        %v2275 = vld [vmem:[%s2265 + $0x48] sm:$0xff]
        %v2276 = vld [vmem:[%s2265 + $0x50] sm:$0xff]
        %v2277 = vld [vmem:[%s2265 + $0x58] sm:$0xff]
        %v2278 = vld [vmem:[%s2265 + $0x60] sm:$0xff]
        %v2279 = vld [vmem:[%s2265 + $0x68] sm:$0xff]
        %v2280 = vld [vmem:[%s2265 + $0x70] sm:$0xff]
        %v2281 = vld [vmem:[%s2265 + $0x78] sm:$0xff]
        %2282 = vmatprep.subr.mxu0 0.0
        %2283 = vmatpush1.msra.mxu0 %v2266
        %2284 = vmatprep.subr.mxu0 0.0
        %2285 = vmatpush1.msra.mxu0 %v2267
        %2286 = vmatprep.subr.mxu0 0.0
        %2287 = vmatpush1.msra.mxu0 %v2268
        %2288 = vmatprep.subr.mxu0 0.0
        %2289 = vmatpush1.msra.mxu0 %v2269
        %2290 = vmatprep.subr.mxu0 0.0
        %2291 = vmatpush1.msra.mxu0 %v2270
        %2292 = vmatprep.subr.mxu0 0.0
        %2293 = vmatpush1.msra.mxu0 %v2271
        %2294 = vmatprep.subr.mxu0 0.0
        %2295 = vmatpush1.msra.mxu0 %v2272
        %2296 = vmatprep.subr.mxu0 0.0
        %2297 = vmatpush1.msra.mxu0 %v2273
        %2298 = vmatprep.subr.mxu0 0.0
        %2299 = vmatpush1.msra.mxu0 %v2274
        %2300 = vmatprep.subr.mxu0 0.0
        %2301 = vmatpush1.msra.mxu0 %v2275
        %2302 = vmatprep.subr.mxu0 0.0
        %2303 = vmatpush1.msra.mxu0 %v2276
        %2304 = vmatprep.subr.mxu0 0.0
        %2305 = vmatpush1.msra.mxu0 %v2277
        %2306 = vmatprep.subr.mxu0 0.0
        %2307 = vmatpush1.msra.mxu0 %v2278
        %2308 = vmatprep.subr.mxu0 0.0
        %2309 = vmatpush1.msra.mxu0 %v2279
        %2310 = vmatprep.subr.mxu0 0.0
        %2311 = vmatpush1.msra.mxu0 %v2280
        %2312 = vmatprep.subr.mxu0 0.0
        %2313 = vmatpush1.msra.mxu0 %v2281
        %2314 = vmatprep.subr.mxu0 0.0
        %2315 = vmatpush1.msra.mxu0 0.0
        %2316 = vmatprep.subr.mxu0 0.0
        %2317 = vmatpush1.msra.mxu0 0.0
        %2318 = vmatprep.subr.mxu0 0.0
        %2319 = vmatpush1.msra.mxu0 0.0
        %2320 = vmatprep.subr.mxu0 0.0
        %2321 = vmatpush1.msra.mxu0 0.0
        %2322 = vmatprep.subr.mxu0 0.0
        %2323 = vmatpush1.msra.mxu0 0.0
        %2324 = vmatprep.subr.mxu0 0.0
        %2325 = vmatpush1.msra.mxu0 0.0
        %2326 = vmatprep.subr.mxu0 0.0
        %2327 = vmatpush1.msra.mxu0 0.0
        %2328 = vmatprep.subr.mxu0 0.0
        %2329 = vmatpush1.msra.mxu0 0.0
        %2330 = vmatprep.subr.mxu0 0.0
        %2331 = vmatpush1.msra.mxu0 0.0
        %2332 = vmatprep.subr.mxu0 0.0
        %2333 = vmatpush1.msra.mxu0 0.0
        %2334 = vmatprep.subr.mxu0 0.0
        %2335 = vmatpush1.msra.mxu0 0.0
        %2336 = vmatprep.subr.mxu0 0.0
        %2337 = vmatpush1.msra.mxu0 0.0
        %2338 = vmatprep.subr.mxu0 0.0
        %2339 = vmatpush1.msra.mxu0 0.0
        %2340 = vmatprep.subr.mxu0 0.0
        %2341 = vmatpush1.msra.mxu0 0.0
        %2342 = vmatprep.subr.mxu0 0.0
        %2343 = vmatpush1.msra.mxu0 0.0
        %2344 = vmatprep.subr.mxu0 0.0
        %2345 = vmatpush1.msra.mxu0 0.0
        %2346 = vmatprep.mubr.f32.mxu0 0.0
        %2347 = vmatmul.mubr.f32.gmra.mrb[0].mxu0 %v1412
        %v2348 = vpop.f32.mrb[0].mxu0
        %v2349 = vadd.f32 0.0, %v2348
        %v2350 = vpop.f32.mrb[0].mxu0
        %2351 = vmatprep.mubr.f32.mxu0 0.0
        %2352 = vmatmul.mubr.f32.gmra.mrb[0].mxu0 %v1415
        %v2353 = vpop.f32.mrb[0].mxu0
        %v2354 = vadd.f32 0.0, %v2353
        %v2355 = vpop.f32.mrb[0].mxu0
        %2356 = vmatprep.mubr.f32.mxu0 0.0
        %2357 = vmatmul.mubr.f32.gmra.mrb[0].mxu0 %v1418
        %v2358 = vpop.f32.mrb[0].mxu0
        %v2359 = vadd.f32 0.0, %v2358
        %v2360 = vpop.f32.mrb[0].mxu0
        %2361 = vmatprep.mubr.f32.mxu0 0.0
        %2362 = vmatmul.mubr.f32.gmra.mrb[0].mxu0 %v1421
        %v2363 = vpop.f32.mrb[0].mxu0
        %v2364 = vadd.f32 0.0, %v2363
        %v2365 = vpop.f32.mrb[0].mxu0
        %2366 = vmatprep.mubr.f32.mxu0 0.0
        %2367 = vmatmul.mubr.f32.gmra.mrb[0].mxu0 %v1424
        %v2368 = vpop.f32.mrb[0].mxu0
        %v2369 = vadd.f32 0.0, %v2368
        %v2370 = vpop.f32.mrb[0].mxu0
        %2371 = vmatprep.mubr.f32.mxu0 0.0
        %2372 = vmatmul.mubr.f32.gmra.mrb[0].mxu0 %v1427
        %v2373 = vpop.f32.mrb[0].mxu0
        %v2374 = vadd.f32 0.0, %v2373
        %v2375 = vpop.f32.mrb[0].mxu0
        %2376 = vmatprep.mubr.f32.mxu0 0.0
        %2377 = vmatmul.mubr.f32.gmra.mrb[0].mxu0 %v1863
        %v2378 = vpop.f32.mrb[0].mxu0
        %v2379 = vadd.f32 0.0, %v2378
        %v2380 = vpop.f32.mrb[0].mxu0
        %2381 = vmatprep.mubr.f32.mxu0 0.0
        %2382 = vmatmul.mubr.f32.gmra.mrb[0].mxu0 %v2263
        %v2383 = vpop.f32.mrb[0].mxu0
        %v2384 = vadd.f32 0.0, %v2383
        %v2385 = vpop.f32.mrb[0].mxu0
        %2386 = vdwg.mxu0
        %v2387 = vadd.f32 %v2251, %v2349
        %v2388 = vadd.f32 %v2252, %v2354
        %v2389 = vadd.f32 %v2253, %v2359
        %v2390 = vadd.f32 %v2254, %v2364
        %v2391 = vadd.f32 %v2255, %v2369
        %v2392 = vadd.f32 %v2256, %v2374
        %v2393 = vadd.f32 %v2257, %v2379
        %v2394 = vadd.f32 %v2258, %v2384
        %v2395 = vrot.slane %v1257, 2
        %v2396 = vrot.slane %v1258, 2
        %v2397 = vsel %vm1566, %v2395, %v2396
        %s2399 = scalar_lea.vmem [#allocation9], 1024
        %v2400 = vld [vmem:[%s2399] sm:$0xff]
        %v2401 = vld [vmem:[%s2399 + $0x8] sm:$0xff]
        %v2402 = vld [vmem:[%s2399 + $0x10] sm:$0xff]
        %v2403 = vld [vmem:[%s2399 + $0x18] sm:$0xff]
        %v2404 = vld [vmem:[%s2399 + $0x20] sm:$0xff]
        %v2405 = vld [vmem:[%s2399 + $0x28] sm:$0xff]
        %v2406 = vld [vmem:[%s2399 + $0x30] sm:$0xff]
        %v2407 = vld [vmem:[%s2399 + $0x38] sm:$0xff]
        %v2408 = vld [vmem:[%s2399 + $0x40] sm:$0xff]
        %v2409 = vld [vmem:[%s2399 + $0x48] sm:$0xff]
        %v2410 = vld [vmem:[%s2399 + $0x50] sm:$0xff]
        %v2411 = vld [vmem:[%s2399 + $0x58] sm:$0xff]
        %v2412 = vld [vmem:[%s2399 + $0x60] sm:$0xff]
        %v2413 = vld [vmem:[%s2399 + $0x68] sm:$0xff]
        %v2414 = vld [vmem:[%s2399 + $0x70] sm:$0xff]
        %v2415 = vld [vmem:[%s2399 + $0x78] sm:$0xff]
        %2416 = vmatprep.subr.mxu0 0.0
        %2417 = vmatpush1.msra.mxu0 %v2400
        %2418 = vmatprep.subr.mxu0 0.0
        %2419 = vmatpush1.msra.mxu0 %v2401
        %2420 = vmatprep.subr.mxu0 0.0
        %2421 = vmatpush1.msra.mxu0 %v2402
        %2422 = vmatprep.subr.mxu0 0.0
        %2423 = vmatpush1.msra.mxu0 %v2403
        %2424 = vmatprep.subr.mxu0 0.0
        %2425 = vmatpush1.msra.mxu0 %v2404
        %2426 = vmatprep.subr.mxu0 0.0
        %2427 = vmatpush1.msra.mxu0 %v2405
        %2428 = vmatprep.subr.mxu0 0.0
        %2429 = vmatpush1.msra.mxu0 %v2406
        %2430 = vmatprep.subr.mxu0 0.0
        %2431 = vmatpush1.msra.mxu0 %v2407
        %2432 = vmatprep.subr.mxu0 0.0
        %2433 = vmatpush1.msra.mxu0 %v2408
        %2434 = vmatprep.subr.mxu0 0.0
        %2435 = vmatpush1.msra.mxu0 %v2409
        %2436 = vmatprep.subr.mxu0 0.0
        %2437 = vmatpush1.msra.mxu0 %v2410
        %2438 = vmatprep.subr.mxu0 0.0
        %2439 = vmatpush1.msra.mxu0 %v2411
        %2440 = vmatprep.subr.mxu0 0.0
        %2441 = vmatpush1.msra.mxu0 %v2412
        %2442 = vmatprep.subr.mxu0 0.0
        %2443 = vmatpush1.msra.mxu0 %v2413
        %2444 = vmatprep.subr.mxu0 0.0
        %2445 = vmatpush1.msra.mxu0 %v2414
        %2446 = vmatprep.subr.mxu0 0.0
        %2447 = vmatpush1.msra.mxu0 %v2415
        %2448 = vmatprep.subr.mxu0 0.0
        %2449 = vmatpush1.msra.mxu0 0.0
        %2450 = vmatprep.subr.mxu0 0.0
        %2451 = vmatpush1.msra.mxu0 0.0
        %2452 = vmatprep.subr.mxu0 0.0
        %2453 = vmatpush1.msra.mxu0 0.0
        %2454 = vmatprep.subr.mxu0 0.0
        %2455 = vmatpush1.msra.mxu0 0.0
        %2456 = vmatprep.subr.mxu0 0.0
        %2457 = vmatpush1.msra.mxu0 0.0
        %2458 = vmatprep.subr.mxu0 0.0
        %2459 = vmatpush1.msra.mxu0 0.0
        %2460 = vmatprep.subr.mxu0 0.0
        %2461 = vmatpush1.msra.mxu0 0.0
        %2462 = vmatprep.subr.mxu0 0.0
        %2463 = vmatpush1.msra.mxu0 0.0
        %2464 = vmatprep.subr.mxu0 0.0
        %2465 = vmatpush1.msra.mxu0 0.0
        %2466 = vmatprep.subr.mxu0 0.0
        %2467 = vmatpush1.msra.mxu0 0.0
        %2468 = vmatprep.subr.mxu0 0.0
        %2469 = vmatpush1.msra.mxu0 0.0
        %2470 = vmatprep.subr.mxu0 0.0
        %2471 = vmatpush1.msra.mxu0 0.0
        %2472 = vmatprep.subr.mxu0 0.0
        %2473 = vmatpush1.msra.mxu0 0.0
        %2474 = vmatprep.subr.mxu0 0.0
        %2475 = vmatpush1.msra.mxu0 0.0
        %2476 = vmatprep.subr.mxu0 0.0
        %2477 = vmatpush1.msra.mxu0 0.0
        %2478 = vmatprep.subr.mxu0 0.0
        %2479 = vmatpush1.msra.mxu0 0.0
        %2480 = vmatprep.mubr.f32.mxu0 0.0
        %2481 = vmatmul.mubr.f32.gmra.mrb[0].mxu0 %v1575
        %v2482 = vpop.f32.mrb[0].mxu0
        %v2483 = vadd.f32 0.0, %v2482
        %v2484 = vpop.f32.mrb[0].mxu0
        %2485 = vmatprep.mubr.f32.mxu0 0.0
        %2486 = vmatmul.mubr.f32.gmra.mrb[0].mxu0 %v1578
        %v2487 = vpop.f32.mrb[0].mxu0
        %v2488 = vadd.f32 0.0, %v2487
        %v2489 = vpop.f32.mrb[0].mxu0
        %2490 = vmatprep.mubr.f32.mxu0 0.0
        %2491 = vmatmul.mubr.f32.gmra.mrb[0].mxu0 %v1581
        %v2492 = vpop.f32.mrb[0].mxu0
        %v2493 = vadd.f32 0.0, %v2492
        %v2494 = vpop.f32.mrb[0].mxu0
        %2495 = vmatprep.mubr.f32.mxu0 0.0
        %2496 = vmatmul.mubr.f32.gmra.mrb[0].mxu0 %v1584
        %v2497 = vpop.f32.mrb[0].mxu0
        %v2498 = vadd.f32 0.0, %v2497
        %v2499 = vpop.f32.mrb[0].mxu0
        %2500 = vmatprep.mubr.f32.mxu0 0.0
        %2501 = vmatmul.mubr.f32.gmra.mrb[0].mxu0 %v1587
        %v2502 = vpop.f32.mrb[0].mxu0
        %v2503 = vadd.f32 0.0, %v2502
        %v2504 = vpop.f32.mrb[0].mxu0
        %2505 = vmatprep.mubr.f32.mxu0 0.0
        %2506 = vmatmul.mubr.f32.gmra.mrb[0].mxu0 %v1590
        %v2507 = vpop.f32.mrb[0].mxu0
        %v2508 = vadd.f32 0.0, %v2507
        %v2509 = vpop.f32.mrb[0].mxu0
        %2510 = vmatprep.mubr.f32.mxu0 0.0
        %2511 = vmatmul.mubr.f32.gmra.mrb[0].mxu0 %v1997
        %v2512 = vpop.f32.mrb[0].mxu0
        %v2513 = vadd.f32 0.0, %v2512
        %v2514 = vpop.f32.mrb[0].mxu0
        %2515 = vmatprep.mubr.f32.mxu0 0.0
        %2516 = vmatmul.mubr.f32.gmra.mrb[0].mxu0 %v2397
        %v2517 = vpop.f32.mrb[0].mxu0
        %v2518 = vadd.f32 0.0, %v2517
        %v2519 = vpop.f32.mrb[0].mxu0
        %2520 = vdwg.mxu0
        %v2521 = vadd.f32 %v2387, %v2483
        %v2522 = vadd.f32 %v2388, %v2488
        %v2523 = vadd.f32 %v2389, %v2493
        %v2524 = vadd.f32 %v2390, %v2498
        %v2525 = vadd.f32 %v2391, %v2503
        %v2526 = vadd.f32 %v2392, %v2508
        %v2527 = vadd.f32 %v2393, %v2513
        %v2528 = vadd.f32 %v2394, %v2518
        %2529 = vst [vmem:[%s394] sm:$0xff] %v2521
        %2530 = vst [vmem:[%s394 + $0x8] sm:$0xff] %v2522
        %2531 = vst [vmem:[%s394 + $0x10] sm:$0xff] %v2523
        %2532 = vst [vmem:[%s394 + $0x18] sm:$0xff] %v2524
        %2533 = vst [vmem:[%s394 + $0x20] sm:$0xff] %v2525
        %2534 = vst [vmem:[%s394 + $0x28] sm:$0xff] %v2526
        %2535 = vst [vmem:[%s394 + $0x30] sm:$0xff] %v2527
        %2536 = vst [vmem:[%s394 + $0x38] sm:$0xff] %v2528
        %s2537 = sand.u32 %s230, 1
        %s2538 = scalar_lea.sflag [#allocation6], %s2537
        %s2539 = sand.u32 %s230, 1
        %s2540 = smul.addr %s2539, 64
        %s2541 = scalar_lea.vmem [#allocation12], %s2540
        // Predicated region
        $region73: #{tpu_custom_call.1} parent=55 // pred_check
          %p2542 = pneg %p240
        $region74: #{tpu_custom_call.1} parent=55 // pred_check_branch
          %2544 = sbr.rel (%p2542) target = $region76
        $region75: #{tpu_custom_call.1} parent=55 // pred_region
          %s2546 = ssub.s32 1024, 1024
          %2547 = vsyncadd %s2538, %s2546
          %s2548 = smul.addr %s28, 8
          %s2549 = smul.addr %s2548, 128
          %s2550 = scalar_lea.hbm %s9, %s2549
          %s2551 = sshll.u32 %s2541, 4
          %s2552 = int_to_ptr.vmem [resolvable:$true] %s2551
          %2557 = dma.vmem_to_hbm [thread:$0]  %s2552, 1024, %s2550, %s2538, 128, 128, 8
        $region76: #{tpu_custom_call.1} parent=55 // pred_fallthru
          _
      $region56: #{tpu_custom_call.1} parent=5 // pred_fallthru
        _
      %p2558 = scmp.le.s32.totalorder 2, %s23
      // Predicated region
      $region77: #{tpu_custom_call.1} parent=5 // pred_check
        %p2559 = pneg %p2558
      $region78: #{tpu_custom_call.1} parent=5 // pred_check_branch
        %2561 = sbr.rel (%p2559) target = $region80
      $region79: #{tpu_custom_call.1} parent=5 // pred_region
        %s2562 = ssub.s32 %s23, 2
        // Predicated region
        $region81: #{tpu_custom_call.1} parent=79 // pred_check
          %p2563 = pneg %p246
        $region82: #{tpu_custom_call.1} parent=79 // pred_check_branch
          %2565 = sbr.rel (%p2563) target = $region84
        $region83: #{tpu_custom_call.1} parent=79 // pred_region
          %s2566 = sand.u32 %s231, 1
          %s2567 = scalar_lea.sflag [#allocation6], %s2566
          %s2568 = sand.u32 %s231, 1
          %s2569 = smul.addr %s2568, 64
          %s2570 = scalar_lea.vmem [#allocation12], %s2569
          %2571 = dma.done %s2567, 1024
        $region84: #{tpu_custom_call.1} parent=79 // pred_fallthru
          _
      $region80: #{tpu_custom_call.1} parent=5 // pred_fallthru
        _
    $region6: #{tpu_custom_call.1} parent=1 // loop_footer
      %s27 = sadd.s32 1, %s23
    $region7: #{tpu_custom_call.1} parent=1 // loop_footer_branch
      %22 = sbr.rel target = $region3
    $region8: #{tpu_custom_call.1} parent=1 // loop_exit
      _
    %2572 = vsyncpa [#allocation5], 1
    %s2573 = scalar_lea.sflag [#allocation5], 1
    %2574 = vsyncpa %s2573, 1
    %2575 = vsyncpa [#allocation8], 1
    %2576 = vsyncpa [#allocation11], 1
    %2577 = vsyncpa [#allocation6], 1
    %s2578 = scalar_lea.sflag [#allocation6], 1
    %2579 = vsyncpa %s2578, 1

</llo_original>
